<compile_context>
chip_gen: v6e
topology: v6e:2x2x1
jax: 0.10.0
libtpu: 0.0.40
codegen_flags: <defaults>
</compile_context>

<pallas_src>
import functools

import jax
import jax.numpy as jnp
from jax.experimental import pallas as pl
from jax.experimental.pallas import tpu as pltpu

_GELU_C = 0.7978845608028654  # sqrt(2/pi)


def _gelu(x):
    # TODO(synk): PyTorch nn.GELU() default is the exact erf form; tanh approximation used here.
    return 0.5 * x * (1.0 + jnp.tanh(_GELU_C * (x + 0.044715 * x * x * x)))


def _layernorm_lastdim(h, gamma, beta, eps=1e-5):
    mu = jnp.mean(h, axis=-1, keepdims=True)
    var = jnp.mean((h - mu) ** 2, axis=-1, keepdims=True)
    return (h - mu) * jax.lax.rsqrt(var + eps) * gamma + beta


# ----------------------------------------------------------------------------
# Single fused basis kernel: both MLPBlocks (height & width bases) in one call.
# ----------------------------------------------------------------------------
def _basis_kernel(hw1, hb1, hg1, hbe1, hw2, hb2, hg2, hbe2, hw3, hb3,
                  ww1, wb1, wg1, wbe1, ww2, wb2, wg2, wbe2, ww3, wb3,
                  bhT_ref, bh_ref, bw_ref, bwT_ri_ref, *, H, W, m1, m2):
    f32 = jnp.float32

    def mlp(coords, w1, b1, g1, be1, w2, b2, g2, be2, w3, b3):
        h = coords * w1[...] + b1[...]                       # Linear(1, hid) via (N,1)*(1,hid)
        h = _gelu(_layernorm_lastdim(h, g1[...], be1[...]))
        h = jnp.dot(h, w2[...], preferred_element_type=f32) + b2[...]
        h = _gelu(_layernorm_lastdim(h, g2[...], be2[...]))
        return jnp.dot(h, w3[...], preferred_element_type=f32) + b3[...]

    # normalized 1-D coordinates (torch.linspace(0, 1, N)) generated in-kernel
    ch = jax.lax.broadcasted_iota(jnp.int32, (H, 1), 0).astype(f32) * (1.0 / max(H - 1, 1))
    cw = jax.lax.broadcasted_iota(jnp.int32, (W, 1), 0).astype(f32) * (1.0 / max(W - 1, 1))

    bh = mlp(ch, hw1, hb1, hg1, hbe1, hw2, hb2, hg2, hbe2, hw3, hb3)   # (H, 2*m1) = [Re | Im]
    bw = mlp(cw, ww1, wb1, wg1, wbe1, ww2, wb2, wg2, wbe2, ww3, wb3)   # (W, 2*m2) = [Re | Im]

    bh_ref[...] = bh
    bhT_ref[...] = bh.T                                                # (2*m1, H) = [Re ; Im]
    bw_ref[...] = bw

    bwr_t = bw[:, :m2].T                                               # (m2, W)
    bwi_t = bw[:, m2:].T
    # conjugate-transpose W basis with real/imag fused:  [[Re, -Im], [Im, Re]]  -> (2*m2, 2*W)
    bwT_ri_ref[...] = jnp.concatenate(
        [jnp.concatenate([bwr_t, -bwi_t], axis=1),
         jnp.concatenate([bwi_t, bwr_t], axis=1)], axis=0)


def _basis_call(ph, pw, H, W, m1, m2):
    kernel = functools.partial(_basis_kernel, H=H, W=W, m1=m1, m2=m2)
    return pl.pallas_call(
        kernel,
        out_shape=(
            jax.ShapeDtypeStruct((2 * m1, H), jnp.float32),     # Bh^T stacked [Re; Im]
            jax.ShapeDtypeStruct((H, 2 * m1), jnp.float32),     # Bh  stacked [Re | Im]
            jax.ShapeDtypeStruct((W, 2 * m2), jnp.float32),     # Bw  stacked [Re | Im]
            jax.ShapeDtypeStruct((2 * m2, 2 * W), jnp.float32),  # conj(Bw)^T block matrix
        ),
    )(ph["w1"], ph["b1"], ph["g1"], ph["be1"], ph["w2"], ph["b2"], ph["g2"], ph["be2"],
      ph["w3"], ph["b3"],
      pw["w1"], pw["b1"], pw["g1"], pw["be1"], pw["w2"], pw["b2"], pw["g2"], pw["be2"],
      pw["w3"], pw["b3"])


# ----------------------------------------------------------------------------
# Main LITBlock kernel (one grid step per batch element, batch axis "parallel")
# ----------------------------------------------------------------------------
def _lit_kernel(xchw_ref, xflat_ref, bhT_ref, bh_ref, bw_ref, bwT_ri_ref,
                wfr_ref, wfi_ref, wm_ref, bm_ref, gam_ref, bet_ref, ws_ref, bs_ref,
                o_ref, *, C, H, W, m1, m2):
    f32 = jnp.float32
    O = wm_ref.shape[0]
    HW = H * W

    # ---- forward transform over W: one (C*H, W) x (W, 2*m2) MXU matmul (Re/Im fused) ----
    U1 = jnp.dot(xchw_ref[...], bw_ref[...], preferred_element_type=f32)     # (C*H, 2m2)
    U1 = U1.reshape(C, H, 2 * m2)

    # ---- forward transform over H: single batched-over-C contraction (Re/Im fused) ----
    BhT_b = jnp.broadcast_to(bhT_ref[...][None], (C, 2 * m1, H))
    T2 = jnp.einsum('cmh,chn->cmn', BhT_b, U1, preferred_element_type=f32)   # (C, 2m1, 2m2)

    T2_r = T2[:, :m1, :m2] - T2[:, m1:, m2:]        # (C, m1, m2)   Re of the 2-D transform
    T2_i = T2[:, :m1, m2:] + T2[:, m1:, :m2]        # (C, m1, m2)   Im

    # ---- mode-space channel mixing with the learned complex weights (vectorized) ----
    Wr = wfr_ref[...]                               # (C, O, m1, m2)
    Wi = wfi_ref[...]
    P_r = jnp.sum(T2_r[:, None] * Wr - T2_i[:, None] * Wi, axis=0)           # (O, m1, m2)
    P_i = jnp.sum(T2_r[:, None] * Wi + T2_i[:, None] * Wr, axis=0)

    # ---- inverse transform over W with the conjugate basis: one batched contraction ----
    P_ri = jnp.concatenate([P_r, P_i], axis=2)                               # (O, m1, 2m2)
    BwT_b = jnp.broadcast_to(bwT_ri_ref[...][None], (O, 2 * m2, 2 * W))
    R1 = jnp.einsum('omn,onk->omk', P_ri, BwT_b, preferred_element_type=f32)  # (O, m1, 2W)
    R_ri = jnp.concatenate([R1[:, :, :W], R1[:, :, W:]], axis=1)             # (O, 2m1, W)

    # ---- inverse transform over H (conjugate basis), keep real part, normalize ----
    Bh_b = jnp.broadcast_to(bh_ref[...][None], (O, H, 2 * m1))
    Y3 = jnp.einsum('ohm,omw->ohw', Bh_b, R_ri,
                    preferred_element_type=f32) * (1.0 / float(HW))          # (O, H, W)

    # ---- single relayout to the lane-dense (O, H*W) slab for the whole epilogue ----
    Y = Y3.reshape(O, HW)

    # ---- 1x1 mixer conv as a channel MXU matmul ----
    MIX = jnp.dot(wm_ref[...], Y, preferred_element_type=f32) + bm_ref[...]  # (O, HW)

    # ---- LayerNorm2d over the channel dimension ----
    # TODO(synk): LayerNorm2d is not defined in the provided source; channel-wise LN (eps=1e-6) assumed.
    mu = jnp.mean(MIX, axis=0, keepdims=True)
    var = jnp.mean((MIX - mu) ** 2, axis=0, keepdims=True)
    act = _gelu((MIX - mu) * jax.lax.rsqrt(var + 1e-6) * gam_ref[...] + bet_ref[...])

    # ---- 1x1 shortcut conv as a channel MXU matmul, residual add, final GELU ----
    sc = jnp.dot(ws_ref[...], xflat_ref[...], preferred_element_type=f32) + bs_ref[...]
    o_ref[...] = _gelu(act + sc)


@jax.jit
def lit_block_forward(x, params):
    B, C, H, W = x.shape
    O, _, m1, m2 = params["wf_r"].shape

    # continuous bases evaluated at runtime resolution (single fused Pallas call)
    bhT, bh, bw, bwT_ri = _basis_call(params["mlp_h"], params["mlp_w"], H, W, m1, m2)

    # free views of x (no host-side transpose): transforms read (B, C*H, W),
    # the 1x1 shortcut matmul reads (B, C, H*W).
    x_chw = x.reshape(B, C * H, W)
    x_flat = x.reshape(B, C, H * W)

    # learned complex frequency weights, channel-major for the in-kernel reduction over C
    wf_r = jnp.transpose(params["wf_r"], (1, 0, 2, 3))    # (C, O, m1, m2)
    wf_i = jnp.transpose(params["wf_i"], (1, 0, 2, 3))

    kernel = functools.partial(_lit_kernel, C=C, H=H, W=W, m1=m1, m2=m2)

    def const_spec(shape):
        return pl.BlockSpec(shape, lambda b: (0,) * len(shape))

    out_flat = pl.pallas_call(
        kernel,
        out_shape=jax.ShapeDtypeStruct((B, O, H * W), jnp.float32),
        grid=(B,),
        in_specs=[
            pl.BlockSpec((None, C * H, W), lambda b: (b, 0, 0)),    # x view for transforms
            pl.BlockSpec((None, C, H * W), lambda b: (b, 0, 0)),    # x view for shortcut
            const_spec((2 * m1, H)),                                # Bh^T [Re; Im]
            const_spec((H, 2 * m1)),                                # Bh   [Re | Im]
            const_spec((W, 2 * m2)),                                # Bw   [Re | Im]
            const_spec((2 * m2, 2 * W)),                            # conj(Bw)^T block matrix
            const_spec((C, O, m1, m2)),                             # wf real
            const_spec((C, O, m1, m2)),                             # wf imag
            const_spec((O, O)),                                     # mixer weight
            const_spec((O, 1)),                                     # mixer bias
            const_spec((O, 1)),                                     # LN gamma
            const_spec((O, 1)),                                     # LN beta
            const_spec((O, C)),                                     # shortcut weight
            const_spec((O, 1)),                                     # shortcut bias
        ],
        out_specs=pl.BlockSpec((None, O, H * W), lambda b: (b, 0, 0)),
        compiler_params=pltpu.CompilerParams(
            dimension_semantics=("parallel",),      # independent batch steps (v7x megacore)
            vmem_limit_bytes=48 * 1024 * 1024,
        ),
    )(x_chw, x_flat, bhT, bh, bw, bwT_ri, wf_r, wf_i,
      params["mixer_w"], params["mixer_b"].reshape(O, 1),
      params["norm_g"].reshape(O, 1), params["norm_b"].reshape(O, 1),
      params["short_w"], params["short_b"].reshape(O, 1))

    # lane-dense kernel output -> NCHW (free view)
    return out_flat.reshape(B, O, H, W)


# ----------------------------------------------------------------------------
# Deterministic synthetic parameter construction (shapes from LITBlock.__init__)
# ----------------------------------------------------------------------------
def make_params(key, in_channels, out_channels, m1, m2, hidden):
    keys = jax.random.split(key, 8)

    def lin(k, fan_in, fan_out):
        k1, k2 = jax.random.split(k)
        bound = fan_in ** -0.5
        w = jax.random.uniform(k1, (fan_in, fan_out), jnp.float32, -bound, bound)
        b = jax.random.uniform(k2, (1, fan_out), jnp.float32, -bound, bound)
        return w, b

    def mlp_params(k, out_modes):
        k1, k2, k3 = jax.random.split(k, 3)
        w1, b1 = lin(k1, 1, hidden)
        w2, b2 = lin(k2, hidden, hidden)
        w3, b3 = lin(k3, hidden, 2 * out_modes)
        return dict(w1=w1, b1=b1, g1=jnp.ones((1, hidden), jnp.float32),
                    be1=jnp.zeros((1, hidden), jnp.float32),
                    w2=w2, b2=b2, g2=jnp.ones((1, hidden), jnp.float32),
                    be2=jnp.zeros((1, hidden), jnp.float32),
                    w3=w3, b3=b3)

    bound_m = out_channels ** -0.5
    bound_s = in_channels ** -0.5
    return dict(
        mlp_h=mlp_params(keys[0], m1),
        mlp_w=mlp_params(keys[1], m2),
        # nn.init.constant_(learned_weights_freq, 1.0) on a cfloat tensor -> (1 + 0j)
        wf_r=jnp.ones((out_channels, in_channels, m1, m2), jnp.float32),
        wf_i=jnp.zeros((out_channels, in_channels, m1, m2), jnp.float32),
        mixer_w=jax.random.uniform(keys[2], (out_channels, out_channels), jnp.float32, -bound_m, bound_m),
        mixer_b=jax.random.uniform(keys[3], (out_channels,), jnp.float32, -bound_m, bound_m),
        norm_g=jnp.ones((out_channels,), jnp.float32),
        norm_b=jnp.zeros((out_channels,), jnp.float32),
        short_w=jax.random.uniform(keys[4], (out_channels, in_channels), jnp.float32, -bound_s, bound_s),
        short_b=jax.random.uniform(keys[5], (out_channels,), jnp.float32, -bound_s, bound_s),
    )


if __name__ == "__main__":
    key = jax.random.PRNGKey(0)
    B, Cin, Cout, H, W = 2, 4, 4, 16, 16
    m1 = m2 = 4
    hidden = 32

    kx, kp = jax.random.split(key)
    x = jax.random.normal(kx, (B, Cin, H, W), jnp.float32)
    params = make_params(kp, Cin, Cout, m1, m2, hidden)

    out = jax.block_until_ready(lit_block_forward(x, params))
    assert out.shape == (B, Cout, H, W), out.shape
    assert bool(jnp.all(jnp.isfinite(out)))
    print("KERNEL_OK")
</pallas_src>

<mosaic_0001>
module attributes {stable_mosaic.version = 11 : i64} {
  func.func @_basis_kernel(%arg0: memref<1x32xf32, #tpu.memory_space<vmem>>, %arg1: memref<1x32xf32, #tpu.memory_space<vmem>>, %arg2: memref<1x32xf32, #tpu.memory_space<vmem>>, %arg3: memref<1x32xf32, #tpu.memory_space<vmem>>, %arg4: memref<32x32xf32, #tpu.memory_space<vmem>>, %arg5: memref<1x32xf32, #tpu.memory_space<vmem>>, %arg6: memref<1x32xf32, #tpu.memory_space<vmem>>, %arg7: memref<1x32xf32, #tpu.memory_space<vmem>>, %arg8: memref<32x8xf32, #tpu.memory_space<vmem>>, %arg9: memref<1x8xf32, #tpu.memory_space<vmem>>, %arg10: memref<1x32xf32, #tpu.memory_space<vmem>>, %arg11: memref<1x32xf32, #tpu.memory_space<vmem>>, %arg12: memref<1x32xf32, #tpu.memory_space<vmem>>, %arg13: memref<1x32xf32, #tpu.memory_space<vmem>>, %arg14: memref<32x32xf32, #tpu.memory_space<vmem>>, %arg15: memref<1x32xf32, #tpu.memory_space<vmem>>, %arg16: memref<1x32xf32, #tpu.memory_space<vmem>>, %arg17: memref<1x32xf32, #tpu.memory_space<vmem>>, %arg18: memref<32x8xf32, #tpu.memory_space<vmem>>, %arg19: memref<1x8xf32, #tpu.memory_space<vmem>>, %arg20: memref<8x16xf32, #tpu.memory_space<vmem>>, %arg21: memref<16x8xf32, #tpu.memory_space<vmem>>, %arg22: memref<16x8xf32, #tpu.memory_space<vmem>>, %arg23: memref<8x32xf32, #tpu.memory_space<vmem>>) attributes {dimension_semantics = [], scalar_prefetch = 0 : i64, scratch_operands = 0 : i64, tpu.core_type = #tpu.core_type<tc>} {
    %0 = tpu.iota {dimensions = array<i32: 0>} : vector<16x1xi32>
    %1 = arith.sitofp %0 : vector<16x1xi32> to vector<16x1xf32>
    %cst = arith.constant 0.0666666701 : f32
    %2 = vector.broadcast %cst : f32 to vector<16x1xf32>
    %3 = arith.mulf %1, %2 : vector<16x1xf32>
    %4 = tpu.iota {dimensions = array<i32: 0>} : vector<16x1xi32>
    %5 = arith.sitofp %4 : vector<16x1xi32> to vector<16x1xf32>
    %cst_0 = arith.constant 0.0666666701 : f32
    %6 = vector.broadcast %cst_0 : f32 to vector<16x1xf32>
    %7 = arith.mulf %5, %6 : vector<16x1xf32>
    %c0 = arith.constant 0 : index
    %c0_1 = arith.constant 0 : index
    %8 = vector.load %arg0[%c0, %c0_1] : memref<1x32xf32, #tpu.memory_space<vmem>>, vector<1x32xf32>
    %9 = vector.broadcast %3 : vector<16x1xf32> to vector<16x32xf32>
    %10 = vector.broadcast %8 : vector<1x32xf32> to vector<16x32xf32>
    %11 = arith.mulf %9, %10 : vector<16x32xf32>
    %c0_2 = arith.constant 0 : index
    %c0_3 = arith.constant 0 : index
    %12 = vector.load %arg1[%c0_2, %c0_3] : memref<1x32xf32, #tpu.memory_space<vmem>>, vector<1x32xf32>
    %13 = vector.broadcast %12 : vector<1x32xf32> to vector<16x32xf32>
    %14 = arith.addf %11, %13 : vector<16x32xf32>
    %c0_4 = arith.constant 0 : index
    %c0_5 = arith.constant 0 : index
    %15 = vector.load %arg2[%c0_4, %c0_5] : memref<1x32xf32, #tpu.memory_space<vmem>>, vector<1x32xf32>
    %c0_6 = arith.constant 0 : index
    %c0_7 = arith.constant 0 : index
    %16 = vector.load %arg3[%c0_6, %c0_7] : memref<1x32xf32, #tpu.memory_space<vmem>>, vector<1x32xf32>
    %cst_8 = arith.constant dense<0.000000e+00> : vector<16xf32>
    %17 = vector.multi_reduction <add>, %14, %cst_8 [1] : vector<16x32xf32> to vector<16xf32>
    %18 = vector.shape_cast %17 : vector<16xf32> to vector<16x1xf32>
    %cst_9 = arith.constant 3.200000e+01 : f32
    %19 = vector.broadcast %cst_9 : f32 to vector<16x1xf32>
    %20 = arith.divf %18, %19 : vector<16x1xf32>
    %21 = vector.broadcast %20 : vector<16x1xf32> to vector<16x32xf32>
    %22 = arith.subf %14, %21 : vector<16x32xf32>
    %23 = arith.mulf %22, %22 : vector<16x32xf32>
    %cst_10 = arith.constant dense<0.000000e+00> : vector<16xf32>
    %24 = vector.multi_reduction <add>, %23, %cst_10 [1] : vector<16x32xf32> to vector<16xf32>
    %25 = vector.shape_cast %24 : vector<16xf32> to vector<16x1xf32>
    %cst_11 = arith.constant 3.200000e+01 : f32
    %26 = vector.broadcast %cst_11 : f32 to vector<16x1xf32>
    %27 = arith.divf %25, %26 : vector<16x1xf32>
    %28 = vector.broadcast %20 : vector<16x1xf32> to vector<16x32xf32>
    %29 = arith.subf %14, %28 : vector<16x32xf32>
    %cst_12 = arith.constant 9.99999974E-6 : f32
    %30 = vector.broadcast %cst_12 : f32 to vector<16x1xf32>
    %31 = arith.addf %27, %30 : vector<16x1xf32>
    %32 = math.rsqrt %31 : vector<16x1xf32>
    %33 = vector.broadcast %32 : vector<16x1xf32> to vector<16x32xf32>
    %34 = arith.mulf %29, %33 : vector<16x32xf32>
    %35 = vector.broadcast %15 : vector<1x32xf32> to vector<16x32xf32>
    %36 = arith.mulf %34, %35 : vector<16x32xf32>
    %37 = vector.broadcast %16 : vector<1x32xf32> to vector<16x32xf32>
    %38 = arith.addf %36, %37 : vector<16x32xf32>
    %cst_13 = arith.constant 5.000000e-01 : f32
    %39 = vector.broadcast %cst_13 : f32 to vector<16x32xf32>
    %40 = arith.mulf %39, %38 : vector<16x32xf32>
    %cst_14 = arith.constant 4.471500e-02 : f32
    %41 = vector.broadcast %cst_14 : f32 to vector<16x32xf32>
    %42 = arith.mulf %41, %38 : vector<16x32xf32>
    %43 = arith.mulf %42, %38 : vector<16x32xf32>
    %44 = arith.mulf %43, %38 : vector<16x32xf32>
    %45 = arith.addf %38, %44 : vector<16x32xf32>
    %cst_15 = arith.constant 0.797884583 : f32
    %46 = vector.broadcast %cst_15 : f32 to vector<16x32xf32>
    %47 = arith.mulf %46, %45 : vector<16x32xf32>
    %48 = math.tanh %47 : vector<16x32xf32>
    %cst_16 = arith.constant 1.000000e+00 : f32
    %49 = vector.broadcast %cst_16 : f32 to vector<16x32xf32>
    %50 = arith.addf %49, %48 : vector<16x32xf32>
    %51 = arith.mulf %40, %50 : vector<16x32xf32>
    %c0_17 = arith.constant 0 : index
    %c0_18 = arith.constant 0 : index
    %52 = vector.load %arg4[%c0_17, %c0_18] : memref<32x32xf32, #tpu.memory_space<vmem>>, vector<32x32xf32>
    %cst_19 = arith.constant dense<0.000000e+00> : vector<16x32xf32>
    %53 = tpu.matmul %51, %52, %cst_19 {dimension_numbers = #tpu.dot_dimension_numbers<[1], [0], [0], [1], [0, 0, 1, 1], [], []>} : vector<16x32xf32>, vector<32x32xf32>, vector<16x32xf32> -> vector<16x32xf32>
    %c0_20 = arith.constant 0 : index
    %c0_21 = arith.constant 0 : index
    %54 = vector.load %arg5[%c0_20, %c0_21] : memref<1x32xf32, #tpu.memory_space<vmem>>, vector<1x32xf32>
    %55 = vector.broadcast %54 : vector<1x32xf32> to vector<16x32xf32>
    %56 = arith.addf %53, %55 : vector<16x32xf32>
    %c0_22 = arith.constant 0 : index
    %c0_23 = arith.constant 0 : index
    %57 = vector.load %arg6[%c0_22, %c0_23] : memref<1x32xf32, #tpu.memory_space<vmem>>, vector<1x32xf32>
    %c0_24 = arith.constant 0 : index
    %c0_25 = arith.constant 0 : index
    %58 = vector.load %arg7[%c0_24, %c0_25] : memref<1x32xf32, #tpu.memory_space<vmem>>, vector<1x32xf32>
    %cst_26 = arith.constant dense<0.000000e+00> : vector<16xf32>
    %59 = vector.multi_reduction <add>, %56, %cst_26 [1] : vector<16x32xf32> to vector<16xf32>
    %60 = vector.shape_cast %59 : vector<16xf32> to vector<16x1xf32>
    %cst_27 = arith.constant 3.200000e+01 : f32
    %61 = vector.broadcast %cst_27 : f32 to vector<16x1xf32>
    %62 = arith.divf %60, %61 : vector<16x1xf32>
    %63 = vector.broadcast %62 : vector<16x1xf32> to vector<16x32xf32>
    %64 = arith.subf %56, %63 : vector<16x32xf32>
    %65 = arith.mulf %64, %64 : vector<16x32xf32>
    %cst_28 = arith.constant dense<0.000000e+00> : vector<16xf32>
    %66 = vector.multi_reduction <add>, %65, %cst_28 [1] : vector<16x32xf32> to vector<16xf32>
    %67 = vector.shape_cast %66 : vector<16xf32> to vector<16x1xf32>
    %cst_29 = arith.constant 3.200000e+01 : f32
    %68 = vector.broadcast %cst_29 : f32 to vector<16x1xf32>
    %69 = arith.divf %67, %68 : vector<16x1xf32>
    %70 = vector.broadcast %62 : vector<16x1xf32> to vector<16x32xf32>
    %71 = arith.subf %56, %70 : vector<16x32xf32>
    %cst_30 = arith.constant 9.99999974E-6 : f32
    %72 = vector.broadcast %cst_30 : f32 to vector<16x1xf32>
    %73 = arith.addf %69, %72 : vector<16x1xf32>
    %74 = math.rsqrt %73 : vector<16x1xf32>
    %75 = vector.broadcast %74 : vector<16x1xf32> to vector<16x32xf32>
    %76 = arith.mulf %71, %75 : vector<16x32xf32>
    %77 = vector.broadcast %57 : vector<1x32xf32> to vector<16x32xf32>
    %78 = arith.mulf %76, %77 : vector<16x32xf32>
    %79 = vector.broadcast %58 : vector<1x32xf32> to vector<16x32xf32>
    %80 = arith.addf %78, %79 : vector<16x32xf32>
    %cst_31 = arith.constant 5.000000e-01 : f32
    %81 = vector.broadcast %cst_31 : f32 to vector<16x32xf32>
    %82 = arith.mulf %81, %80 : vector<16x32xf32>
    %cst_32 = arith.constant 4.471500e-02 : f32
    %83 = vector.broadcast %cst_32 : f32 to vector<16x32xf32>
    %84 = arith.mulf %83, %80 : vector<16x32xf32>
    %85 = arith.mulf %84, %80 : vector<16x32xf32>
    %86 = arith.mulf %85, %80 : vector<16x32xf32>
    %87 = arith.addf %80, %86 : vector<16x32xf32>
    %cst_33 = arith.constant 0.797884583 : f32
    %88 = vector.broadcast %cst_33 : f32 to vector<16x32xf32>
    %89 = arith.mulf %88, %87 : vector<16x32xf32>
    %90 = math.tanh %89 : vector<16x32xf32>
    %cst_34 = arith.constant 1.000000e+00 : f32
    %91 = vector.broadcast %cst_34 : f32 to vector<16x32xf32>
    %92 = arith.addf %91, %90 : vector<16x32xf32>
    %93 = arith.mulf %82, %92 : vector<16x32xf32>
    %c0_35 = arith.constant 0 : index
    %c0_36 = arith.constant 0 : index
    %94 = vector.load %arg8[%c0_35, %c0_36] : memref<32x8xf32, #tpu.memory_space<vmem>>, vector<32x8xf32>
    %cst_37 = arith.constant dense<0.000000e+00> : vector<16x8xf32>
    %95 = tpu.matmul %93, %94, %cst_37 {dimension_numbers = #tpu.dot_dimension_numbers<[1], [0], [0], [1], [0, 0, 1, 1], [], []>} : vector<16x32xf32>, vector<32x8xf32>, vector<16x8xf32> -> vector<16x8xf32>
    %c0_38 = arith.constant 0 : index
    %c0_39 = arith.constant 0 : index
    %96 = vector.load %arg9[%c0_38, %c0_39] : memref<1x8xf32, #tpu.memory_space<vmem>>, vector<1x8xf32>
    %97 = vector.broadcast %96 : vector<1x8xf32> to vector<16x8xf32>
    %98 = arith.addf %95, %97 : vector<16x8xf32>
    %c0_40 = arith.constant 0 : index
    %c0_41 = arith.constant 0 : index
    %99 = vector.load %arg10[%c0_40, %c0_41] : memref<1x32xf32, #tpu.memory_space<vmem>>, vector<1x32xf32>
    %100 = vector.broadcast %7 : vector<16x1xf32> to vector<16x32xf32>
    %101 = vector.broadcast %99 : vector<1x32xf32> to vector<16x32xf32>
    %102 = arith.mulf %100, %101 : vector<16x32xf32>
    %c0_42 = arith.constant 0 : index
    %c0_43 = arith.constant 0 : index
    %103 = vector.load %arg11[%c0_42, %c0_43] : memref<1x32xf32, #tpu.memory_space<vmem>>, vector<1x32xf32>
    %104 = vector.broadcast %103 : vector<1x32xf32> to vector<16x32xf32>
    %105 = arith.addf %102, %104 : vector<16x32xf32>
    %c0_44 = arith.constant 0 : index
    %c0_45 = arith.constant 0 : index
    %106 = vector.load %arg12[%c0_44, %c0_45] : memref<1x32xf32, #tpu.memory_space<vmem>>, vector<1x32xf32>
    %c0_46 = arith.constant 0 : index
    %c0_47 = arith.constant 0 : index
    %107 = vector.load %arg13[%c0_46, %c0_47] : memref<1x32xf32, #tpu.memory_space<vmem>>, vector<1x32xf32>
    %cst_48 = arith.constant dense<0.000000e+00> : vector<16xf32>
    %108 = vector.multi_reduction <add>, %105, %cst_48 [1] : vector<16x32xf32> to vector<16xf32>
    %109 = vector.shape_cast %108 : vector<16xf32> to vector<16x1xf32>
    %cst_49 = arith.constant 3.200000e+01 : f32
    %110 = vector.broadcast %cst_49 : f32 to vector<16x1xf32>
    %111 = arith.divf %109, %110 : vector<16x1xf32>
    %112 = vector.broadcast %111 : vector<16x1xf32> to vector<16x32xf32>
    %113 = arith.subf %105, %112 : vector<16x32xf32>
    %114 = arith.mulf %113, %113 : vector<16x32xf32>
    %cst_50 = arith.constant dense<0.000000e+00> : vector<16xf32>
    %115 = vector.multi_reduction <add>, %114, %cst_50 [1] : vector<16x32xf32> to vector<16xf32>
    %116 = vector.shape_cast %115 : vector<16xf32> to vector<16x1xf32>
    %cst_51 = arith.constant 3.200000e+01 : f32
    %117 = vector.broadcast %cst_51 : f32 to vector<16x1xf32>
    %118 = arith.divf %116, %117 : vector<16x1xf32>
    %119 = vector.broadcast %111 : vector<16x1xf32> to vector<16x32xf32>
    %120 = arith.subf %105, %119 : vector<16x32xf32>
    %cst_52 = arith.constant 9.99999974E-6 : f32
    %121 = vector.broadcast %cst_52 : f32 to vector<16x1xf32>
    %122 = arith.addf %118, %121 : vector<16x1xf32>
    %123 = math.rsqrt %122 : vector<16x1xf32>
    %124 = vector.broadcast %123 : vector<16x1xf32> to vector<16x32xf32>
    %125 = arith.mulf %120, %124 : vector<16x32xf32>
    %126 = vector.broadcast %106 : vector<1x32xf32> to vector<16x32xf32>
    %127 = arith.mulf %125, %126 : vector<16x32xf32>
    %128 = vector.broadcast %107 : vector<1x32xf32> to vector<16x32xf32>
    %129 = arith.addf %127, %128 : vector<16x32xf32>
    %cst_53 = arith.constant 5.000000e-01 : f32
    %130 = vector.broadcast %cst_53 : f32 to vector<16x32xf32>
    %131 = arith.mulf %130, %129 : vector<16x32xf32>
    %cst_54 = arith.constant 4.471500e-02 : f32
    %132 = vector.broadcast %cst_54 : f32 to vector<16x32xf32>
    %133 = arith.mulf %132, %129 : vector<16x32xf32>
    %134 = arith.mulf %133, %129 : vector<16x32xf32>
    %135 = arith.mulf %134, %129 : vector<16x32xf32>
    %136 = arith.addf %129, %135 : vector<16x32xf32>
    %cst_55 = arith.constant 0.797884583 : f32
    %137 = vector.broadcast %cst_55 : f32 to vector<16x32xf32>
    %138 = arith.mulf %137, %136 : vector<16x32xf32>
    %139 = math.tanh %138 : vector<16x32xf32>
    %cst_56 = arith.constant 1.000000e+00 : f32
    %140 = vector.broadcast %cst_56 : f32 to vector<16x32xf32>
    %141 = arith.addf %140, %139 : vector<16x32xf32>
    %142 = arith.mulf %131, %141 : vector<16x32xf32>
    %c0_57 = arith.constant 0 : index
    %c0_58 = arith.constant 0 : index
    %143 = vector.load %arg14[%c0_57, %c0_58] : memref<32x32xf32, #tpu.memory_space<vmem>>, vector<32x32xf32>
    %cst_59 = arith.constant dense<0.000000e+00> : vector<16x32xf32>
    %144 = tpu.matmul %142, %143, %cst_59 {dimension_numbers = #tpu.dot_dimension_numbers<[1], [0], [0], [1], [0, 0, 1, 1], [], []>} : vector<16x32xf32>, vector<32x32xf32>, vector<16x32xf32> -> vector<16x32xf32>
    %c0_60 = arith.constant 0 : index
    %c0_61 = arith.constant 0 : index
    %145 = vector.load %arg15[%c0_60, %c0_61] : memref<1x32xf32, #tpu.memory_space<vmem>>, vector<1x32xf32>
    %146 = vector.broadcast %145 : vector<1x32xf32> to vector<16x32xf32>
    %147 = arith.addf %144, %146 : vector<16x32xf32>
    %c0_62 = arith.constant 0 : index
    %c0_63 = arith.constant 0 : index
    %148 = vector.load %arg16[%c0_62, %c0_63] : memref<1x32xf32, #tpu.memory_space<vmem>>, vector<1x32xf32>
    %c0_64 = arith.constant 0 : index
    %c0_65 = arith.constant 0 : index
    %149 = vector.load %arg17[%c0_64, %c0_65] : memref<1x32xf32, #tpu.memory_space<vmem>>, vector<1x32xf32>
    %cst_66 = arith.constant dense<0.000000e+00> : vector<16xf32>
    %150 = vector.multi_reduction <add>, %147, %cst_66 [1] : vector<16x32xf32> to vector<16xf32>
    %151 = vector.shape_cast %150 : vector<16xf32> to vector<16x1xf32>
    %cst_67 = arith.constant 3.200000e+01 : f32
    %152 = vector.broadcast %cst_67 : f32 to vector<16x1xf32>
    %153 = arith.divf %151, %152 : vector<16x1xf32>
    %154 = vector.broadcast %153 : vector<16x1xf32> to vector<16x32xf32>
    %155 = arith.subf %147, %154 : vector<16x32xf32>
    %156 = arith.mulf %155, %155 : vector<16x32xf32>
    %cst_68 = arith.constant dense<0.000000e+00> : vector<16xf32>
    %157 = vector.multi_reduction <add>, %156, %cst_68 [1] : vector<16x32xf32> to vector<16xf32>
    %158 = vector.shape_cast %157 : vector<16xf32> to vector<16x1xf32>
    %cst_69 = arith.constant 3.200000e+01 : f32
    %159 = vector.broadcast %cst_69 : f32 to vector<16x1xf32>
    %160 = arith.divf %158, %159 : vector<16x1xf32>
    %161 = vector.broadcast %153 : vector<16x1xf32> to vector<16x32xf32>
    %162 = arith.subf %147, %161 : vector<16x32xf32>
    %cst_70 = arith.constant 9.99999974E-6 : f32
    %163 = vector.broadcast %cst_70 : f32 to vector<16x1xf32>
    %164 = arith.addf %160, %163 : vector<16x1xf32>
    %165 = math.rsqrt %164 : vector<16x1xf32>
    %166 = vector.broadcast %165 : vector<16x1xf32> to vector<16x32xf32>
    %167 = arith.mulf %162, %166 : vector<16x32xf32>
    %168 = vector.broadcast %148 : vector<1x32xf32> to vector<16x32xf32>
    %169 = arith.mulf %167, %168 : vector<16x32xf32>
    %170 = vector.broadcast %149 : vector<1x32xf32> to vector<16x32xf32>
    %171 = arith.addf %169, %170 : vector<16x32xf32>
    %cst_71 = arith.constant 5.000000e-01 : f32
    %172 = vector.broadcast %cst_71 : f32 to vector<16x32xf32>
    %173 = arith.mulf %172, %171 : vector<16x32xf32>
    %cst_72 = arith.constant 4.471500e-02 : f32
    %174 = vector.broadcast %cst_72 : f32 to vector<16x32xf32>
    %175 = arith.mulf %174, %171 : vector<16x32xf32>
    %176 = arith.mulf %175, %171 : vector<16x32xf32>
    %177 = arith.mulf %176, %171 : vector<16x32xf32>
    %178 = arith.addf %171, %177 : vector<16x32xf32>
    %cst_73 = arith.constant 0.797884583 : f32
    %179 = vector.broadcast %cst_73 : f32 to vector<16x32xf32>
    %180 = arith.mulf %179, %178 : vector<16x32xf32>
    %181 = math.tanh %180 : vector<16x32xf32>
    %cst_74 = arith.constant 1.000000e+00 : f32
    %182 = vector.broadcast %cst_74 : f32 to vector<16x32xf32>
    %183 = arith.addf %182, %181 : vector<16x32xf32>
    %184 = arith.mulf %173, %183 : vector<16x32xf32>
    %c0_75 = arith.constant 0 : index
    %c0_76 = arith.constant 0 : index
    %185 = vector.load %arg18[%c0_75, %c0_76] : memref<32x8xf32, #tpu.memory_space<vmem>>, vector<32x8xf32>
    %cst_77 = arith.constant dense<0.000000e+00> : vector<16x8xf32>
    %186 = tpu.matmul %184, %185, %cst_77 {dimension_numbers = #tpu.dot_dimension_numbers<[1], [0], [0], [1], [0, 0, 1, 1], [], []>} : vector<16x32xf32>, vector<32x8xf32>, vector<16x8xf32> -> vector<16x8xf32>
    %c0_78 = arith.constant 0 : index
    %c0_79 = arith.constant 0 : index
    %187 = vector.load %arg19[%c0_78, %c0_79] : memref<1x8xf32, #tpu.memory_space<vmem>>, vector<1x8xf32>
    %188 = vector.broadcast %187 : vector<1x8xf32> to vector<16x8xf32>
    %189 = arith.addf %186, %188 : vector<16x8xf32>
    %c0_80 = arith.constant 0 : index
    %c0_81 = arith.constant 0 : index
    %190 = vector.load %arg21[%c0_80, %c0_81] : memref<16x8xf32, #tpu.memory_space<vmem>>, vector<16x8xf32>
    tpu.vector_store %arg21[%c0_80, %c0_81], %98 {strides = array<i32>} : memref<16x8xf32, #tpu.memory_space<vmem>>, vector<16x8xf32>,
    %191 = tpu.transpose %98, [1, 0] : vector<16x8xf32> -> vector<8x16xf32>
    %c0_82 = arith.constant 0 : index
    %c0_83 = arith.constant 0 : index
    %192 = vector.load %arg20[%c0_82, %c0_83] : memref<8x16xf32, #tpu.memory_space<vmem>>, vector<8x16xf32>
    tpu.vector_store %arg20[%c0_82, %c0_83], %191 {strides = array<i32>} : memref<8x16xf32, #tpu.memory_space<vmem>>, vector<8x16xf32>,
    %c0_84 = arith.constant 0 : index
    %c0_85 = arith.constant 0 : index
    %193 = vector.load %arg22[%c0_84, %c0_85] : memref<16x8xf32, #tpu.memory_space<vmem>>, vector<16x8xf32>
    tpu.vector_store %arg22[%c0_84, %c0_85], %189 {strides = array<i32>} : memref<16x8xf32, #tpu.memory_space<vmem>>, vector<16x8xf32>,
    %194 = vector.extract_strided_slice %189 {offsets = [0, 0], sizes = [16, 4], strides = [1, 1]} : vector<16x8xf32> to vector<16x4xf32>
    %195 = tpu.transpose %194, [1, 0] : vector<16x4xf32> -> vector<4x16xf32>
    %196 = vector.extract_strided_slice %189 {offsets = [0, 4], sizes = [16, 4], strides = [1, 1]} : vector<16x8xf32> to vector<16x4xf32>
    %197 = tpu.transpose %196, [1, 0] : vector<16x4xf32> -> vector<4x16xf32>
    %cst_86 = arith.constant 0.000000e+00 : f32
    %198 = vector.broadcast %cst_86 : f32 to vector<4x16xf32>
    %199 = arith.subf %198, %197 : vector<4x16xf32>
    %200 = tpu.concatenate %195, %199 in 1 : vector<4x16xf32>, vector<4x16xf32> -> vector<4x32xf32>
    %201 = tpu.concatenate %197, %195 in 1 : vector<4x16xf32>, vector<4x16xf32> -> vector<4x32xf32>
    %202 = tpu.concatenate %200, %201 in 0 : vector<4x32xf32>, vector<4x32xf32> -> vector<8x32xf32>
    %c0_87 = arith.constant 0 : index
    %c0_88 = arith.constant 0 : index
    %203 = vector.load %arg23[%c0_87, %c0_88] : memref<8x32xf32, #tpu.memory_space<vmem>>, vector<8x32xf32>
    tpu.vector_store %arg23[%c0_87, %c0_88], %202 {strides = array<i32>} : memref<8x32xf32, #tpu.memory_space<vmem>>, vector<8x32xf32>,
    return
  }
}

module attributes {stable_mosaic.version = 11 : i64} {
  func.func @_lit_kernel(%arg0: i32, %arg1: memref<1x64x16xf32, #tpu.memory_space<vmem>>, %arg2: memref<1x4x256xf32, #tpu.memory_space<vmem>>, %arg3: memref<8x16xf32, #tpu.memory_space<vmem>>, %arg4: memref<16x8xf32, #tpu.memory_space<vmem>>, %arg5: memref<16x8xf32, #tpu.memory_space<vmem>>, %arg6: memref<8x32xf32, #tpu.memory_space<vmem>>, %arg7: memref<4x4x4x4xf32, #tpu.memory_space<vmem>>, %arg8: memref<4x4x4x4xf32, #tpu.memory_space<vmem>>, %arg9: memref<4x4xf32, #tpu.memory_space<vmem>>, %arg10: memref<4x1xf32, #tpu.memory_space<vmem>>, %arg11: memref<4x1xf32, #tpu.memory_space<vmem>>, %arg12: memref<4x1xf32, #tpu.memory_space<vmem>>, %arg13: memref<4x4xf32, #tpu.memory_space<vmem>>, %arg14: memref<4x1xf32, #tpu.memory_space<vmem>>, %arg15: memref<1x4x256xf32, #tpu.memory_space<vmem>>) attributes {dimension_semantics = [#tpu.dimension_semantics<parallel>], iteration_bounds = array<i64: 2>, scalar_prefetch = 0 : i64, scratch_operands = 0 : i64, tpu.core_type = #tpu.core_type<tc>, window_params = [{transform_indices = @transform_0, window_bounds = array<i64: 1, 64, 16>}, {transform_indices = @transform_1, window_bounds = array<i64: 1, 4, 256>}, {pipeline_mode = #tpu.pipeline_mode<synchronous>, transform_indices = @transform_2, window_bounds = array<i64: 8, 16>}, {pipeline_mode = #tpu.pipeline_mode<synchronous>, transform_indices = @transform_3, window_bounds = array<i64: 16, 8>}, {pipeline_mode = #tpu.pipeline_mode<synchronous>, transform_indices = @transform_4, window_bounds = array<i64: 16, 8>}, {pipeline_mode = #tpu.pipeline_mode<synchronous>, transform_indices = @transform_5, window_bounds = array<i64: 8, 32>}, {pipeline_mode = #tpu.pipeline_mode<synchronous>, transform_indices = @transform_6, window_bounds = array<i64: 4, 4, 4, 4>}, {pipeline_mode = #tpu.pipeline_mode<synchronous>, transform_indices = @transform_7, window_bounds = array<i64: 4, 4, 4, 4>}, {pipeline_mode = #tpu.pipeline_mode<synchronous>, transform_indices = @transform_8, window_bounds = array<i64: 4, 4>}, {pipeline_mode = #tpu.pipeline_mode<synchronous>, transform_indices = @transform_9, window_bounds = array<i64: 4, 1>}, {pipeline_mode = #tpu.pipeline_mode<synchronous>, transform_indices = @transform_10, window_bounds = array<i64: 4, 1>}, {pipeline_mode = #tpu.pipeline_mode<synchronous>, transform_indices = @transform_11, window_bounds = array<i64: 4, 1>}, {pipeline_mode = #tpu.pipeline_mode<synchronous>, transform_indices = @transform_12, window_bounds = array<i64: 4, 4>}, {pipeline_mode = #tpu.pipeline_mode<synchronous>, transform_indices = @transform_13, window_bounds = array<i64: 4, 1>}, {transform_indices = @transform_14, window_bounds = array<i64: 1, 4, 256>}]} {
    %c0 = arith.constant 0 : index
    %c0_0 = arith.constant 0 : index
    %c0_1 = arith.constant 0 : index
    %0 = vector.load %arg1[%c0, %c0_0, %c0_1] : memref<1x64x16xf32, #tpu.memory_space<vmem>>, vector<1x64x16xf32>
    %1 = vector.shape_cast %0 : vector<1x64x16xf32> to vector<64x16xf32>
    %c0_2 = arith.constant 0 : index
    %c0_3 = arith.constant 0 : index
    %2 = vector.load %arg5[%c0_2, %c0_3] : memref<16x8xf32, #tpu.memory_space<vmem>>, vector<16x8xf32>
    %cst = arith.constant dense<0.000000e+00> : vector<64x8xf32>
    %3 = tpu.matmul %1, %2, %cst {dimension_numbers = #tpu.dot_dimension_numbers<[1], [0], [0], [1], [0, 0, 1, 1], [], []>} : vector<64x16xf32>, vector<16x8xf32>, vector<64x8xf32> -> vector<64x8xf32>
    %4 = vector.shape_cast %3 : vector<64x8xf32> to vector<4x16x8xf32>
    %c0_4 = arith.constant 0 : index
    %c0_5 = arith.constant 0 : index
    %5 = vector.load %arg3[%c0_4, %c0_5] : memref<8x16xf32, #tpu.memory_space<vmem>>, vector<8x16xf32>
    %6 = vector.shape_cast %5 : vector<8x16xf32> to vector<1x8x16xf32>
    %7 = vector.shape_cast %6 : vector<1x8x16xf32> to vector<1x8x16xf32>
    %8 = vector.broadcast %7 : vector<1x8x16xf32> to vector<4x8x16xf32>
    "tpu.trace_start"() <{level = 10 : i32, message = "cmh,chn->cmn"}> : () -> ()
    %cst_6 = arith.constant dense<0.000000e+00> : vector<4x8x8xf32>
    %9 = tpu.matmul %8, %4, %cst_6 {dimension_numbers = #tpu.dot_dimension_numbers<[2], [1], [1], [2], [0, 0, 0, 1, 1, 2], [0], [0]>} : vector<4x8x16xf32>, vector<4x16x8xf32>, vector<4x8x8xf32> -> vector<4x8x8xf32>
    "tpu.trace_stop"() : () -> ()
    %10 = vector.extract_strided_slice %9 {offsets = [0, 0, 0], sizes = [4, 4, 4], strides = [1, 1, 1]} : vector<4x8x8xf32> to vector<4x4x4xf32>
    %11 = vector.extract_strided_slice %9 {offsets = [0, 4, 4], sizes = [4, 4, 4], strides = [1, 1, 1]} : vector<4x8x8xf32> to vector<4x4x4xf32>
    %12 = arith.subf %10, %11 : vector<4x4x4xf32>
    %13 = vector.extract_strided_slice %9 {offsets = [0, 0, 4], sizes = [4, 4, 4], strides = [1, 1, 1]} : vector<4x8x8xf32> to vector<4x4x4xf32>
    %14 = vector.extract_strided_slice %9 {offsets = [0, 4, 0], sizes = [4, 4, 4], strides = [1, 1, 1]} : vector<4x8x8xf32> to vector<4x4x4xf32>
    %15 = arith.addf %13, %14 : vector<4x4x4xf32>
    %c0_7 = arith.constant 0 : index
    %c0_8 = arith.constant 0 : index
    %c0_9 = arith.constant 0 : index
    %c0_10 = arith.constant 0 : index
    %16 = vector.load %arg7[%c0_7, %c0_8, %c0_9, %c0_10] : memref<4x4x4x4xf32, #tpu.memory_space<vmem>>, vector<4x4x4x4xf32>
    %c0_11 = arith.constant 0 : index
    %c0_12 = arith.constant 0 : index
    %c0_13 = arith.constant 0 : index
    %c0_14 = arith.constant 0 : index
    %17 = vector.load %arg8[%c0_11, %c0_12, %c0_13, %c0_14] : memref<4x4x4x4xf32, #tpu.memory_space<vmem>>, vector<4x4x4x4xf32>
    %18 = vector.shape_cast %12 : vector<4x4x4xf32> to vector<4x1x4x4xf32>
    %19 = vector.broadcast %18 : vector<4x1x4x4xf32> to vector<4x4x4x4xf32>
    %20 = arith.mulf %19, %16 : vector<4x4x4x4xf32>
    %21 = vector.shape_cast %15 : vector<4x4x4xf32> to vector<4x1x4x4xf32>
    %22 = vector.broadcast %21 : vector<4x1x4x4xf32> to vector<4x4x4x4xf32>
    %23 = arith.mulf %22, %17 : vector<4x4x4x4xf32>
    %24 = arith.subf %20, %23 : vector<4x4x4x4xf32>
    %cst_15 = arith.constant dense<0.000000e+00> : vector<4x4x4xf32>
    %25 = vector.multi_reduction <add>, %24, %cst_15 [0] : vector<4x4x4x4xf32> to vector<4x4x4xf32>
    %26 = vector.shape_cast %12 : vector<4x4x4xf32> to vector<4x1x4x4xf32>
    %27 = vector.broadcast %26 : vector<4x1x4x4xf32> to vector<4x4x4x4xf32>
    %28 = arith.mulf %27, %17 : vector<4x4x4x4xf32>
    %29 = vector.shape_cast %15 : vector<4x4x4xf32> to vector<4x1x4x4xf32>
    %30 = vector.broadcast %29 : vector<4x1x4x4xf32> to vector<4x4x4x4xf32>
    %31 = arith.mulf %30, %16 : vector<4x4x4x4xf32>
    %32 = arith.addf %28, %31 : vector<4x4x4x4xf32>
    %cst_16 = arith.constant dense<0.000000e+00> : vector<4x4x4xf32>
    %33 = vector.multi_reduction <add>, %32, %cst_16 [0] : vector<4x4x4x4xf32> to vector<4x4x4xf32>
    %34 = tpu.concatenate %25, %33 in 2 : vector<4x4x4xf32>, vector<4x4x4xf32> -> vector<4x4x8xf32>
    %c0_17 = arith.constant 0 : index
    %c0_18 = arith.constant 0 : index
    %35 = vector.load %arg6[%c0_17, %c0_18] : memref<8x32xf32, #tpu.memory_space<vmem>>, vector<8x32xf32>
    %36 = vector.shape_cast %35 : vector<8x32xf32> to vector<1x8x32xf32>
    %37 = vector.shape_cast %36 : vector<1x8x32xf32> to vector<1x8x32xf32>
    %38 = vector.broadcast %37 : vector<1x8x32xf32> to vector<4x8x32xf32>
    "tpu.trace_start"() <{level = 10 : i32, message = "omn,onk->omk"}> : () -> ()
    %cst_19 = arith.constant dense<0.000000e+00> : vector<4x4x32xf32>
    %39 = tpu.matmul %34, %38, %cst_19 {dimension_numbers = #tpu.dot_dimension_numbers<[2], [1], [1], [2], [0, 0, 0, 1, 1, 2], [0], [0]>} : vector<4x4x8xf32>, vector<4x8x32xf32>, vector<4x4x32xf32> -> vector<4x4x32xf32>
    "tpu.trace_stop"() : () -> ()
    %40 = vector.extract_strided_slice %39 {offsets = [0, 0, 0], sizes = [4, 4, 16], strides = [1, 1, 1]} : vector<4x4x32xf32> to vector<4x4x16xf32>
    %41 = vector.extract_strided_slice %39 {offsets = [0, 0, 16], sizes = [4, 4, 16], strides = [1, 1, 1]} : vector<4x4x32xf32> to vector<4x4x16xf32>
    %42 = tpu.concatenate %40, %41 in 1 : vector<4x4x16xf32>, vector<4x4x16xf32> -> vector<4x8x16xf32>
    %c0_20 = arith.constant 0 : index
    %c0_21 = arith.constant 0 : index
    %43 = vector.load %arg4[%c0_20, %c0_21] : memref<16x8xf32, #tpu.memory_space<vmem>>, vector<16x8xf32>
    %44 = vector.shape_cast %43 : vector<16x8xf32> to vector<1x16x8xf32>
    %45 = vector.shape_cast %44 : vector<1x16x8xf32> to vector<1x16x8xf32>
    %46 = vector.broadcast %45 : vector<1x16x8xf32> to vector<4x16x8xf32>
    "tpu.trace_start"() <{level = 10 : i32, message = "ohm,omw->ohw"}> : () -> ()
    %cst_22 = arith.constant dense<0.000000e+00> : vector<4x16x16xf32>
    %47 = tpu.matmul %46, %42, %cst_22 {dimension_numbers = #tpu.dot_dimension_numbers<[2], [1], [1], [2], [0, 0, 0, 1, 1, 2], [0], [0]>} : vector<4x16x8xf32>, vector<4x8x16xf32>, vector<4x16x16xf32> -> vector<4x16x16xf32>
    "tpu.trace_stop"() : () -> ()
    %cst_23 = arith.constant 3.906250e-03 : f32
    %48 = vector.broadcast %cst_23 : f32 to vector<4x16x16xf32>
    %49 = arith.mulf %47, %48 : vector<4x16x16xf32>
    %50 = vector.shape_cast %49 : vector<4x16x16xf32> to vector<4x256xf32>
    %c0_24 = arith.constant 0 : index
    %c0_25 = arith.constant 0 : index
    %51 = vector.load %arg9[%c0_24, %c0_25] : memref<4x4xf32, #tpu.memory_space<vmem>>, vector<4x4xf32>
    %cst_26 = arith.constant dense<0.000000e+00> : vector<4x256xf32>
    %52 = tpu.matmul %51, %50, %cst_26 {dimension_numbers = #tpu.dot_dimension_numbers<[1], [0], [0], [1], [0, 0, 1, 1], [], []>} : vector<4x4xf32>, vector<4x256xf32>, vector<4x256xf32> -> vector<4x256xf32>
    %c0_27 = arith.constant 0 : index
    %c0_28 = arith.constant 0 : index
    %53 = vector.load %arg10[%c0_27, %c0_28] : memref<4x1xf32, #tpu.memory_space<vmem>>, vector<4x1xf32>
    %54 = vector.broadcast %53 : vector<4x1xf32> to vector<4x256xf32>
    %55 = arith.addf %52, %54 : vector<4x256xf32>
    %cst_29 = arith.constant dense<0.000000e+00> : vector<256xf32>
    %56 = vector.multi_reduction <add>, %55, %cst_29 [0] : vector<4x256xf32> to vector<256xf32>
    %57 = vector.shape_cast %56 : vector<256xf32> to vector<1x256xf32>
    %cst_30 = arith.constant 4.000000e+00 : f32
    %58 = vector.broadcast %cst_30 : f32 to vector<1x256xf32>
    %59 = arith.divf %57, %58 : vector<1x256xf32>
    %60 = vector.broadcast %59 : vector<1x256xf32> to vector<4x256xf32>
    %61 = arith.subf %55, %60 : vector<4x256xf32>
    %62 = arith.mulf %61, %61 : vector<4x256xf32>
    %cst_31 = arith.constant dense<0.000000e+00> : vector<256xf32>
    %63 = vector.multi_reduction <add>, %62, %cst_31 [0] : vector<4x256xf32> to vector<256xf32>
    %64 = vector.shape_cast %63 : vector<256xf32> to vector<1x256xf32>
    %cst_32 = arith.constant 4.000000e+00 : f32
    %65 = vector.broadcast %cst_32 : f32 to vector<1x256xf32>
    %66 = arith.divf %64, %65 : vector<1x256xf32>
    %67 = vector.broadcast %59 : vector<1x256xf32> to vector<4x256xf32>
    %68 = arith.subf %55, %67 : vector<4x256xf32>
    %cst_33 = arith.constant 9.99999997E-7 : f32
    %69 = vector.broadcast %cst_33 : f32 to vector<1x256xf32>
    %70 = arith.addf %66, %69 : vector<1x256xf32>
    %71 = math.rsqrt %70 : vector<1x256xf32>
    %72 = vector.broadcast %71 : vector<1x256xf32> to vector<4x256xf32>
    %73 = arith.mulf %68, %72 : vector<4x256xf32>
    %c0_34 = arith.constant 0 : index
    %c0_35 = arith.constant 0 : index
    %74 = vector.load %arg11[%c0_34, %c0_35] : memref<4x1xf32, #tpu.memory_space<vmem>>, vector<4x1xf32>
    %75 = vector.broadcast %74 : vector<4x1xf32> to vector<4x256xf32>
    %76 = arith.mulf %73, %75 : vector<4x256xf32>
    %c0_36 = arith.constant 0 : index
    %c0_37 = arith.constant 0 : index
    %77 = vector.load %arg12[%c0_36, %c0_37] : memref<4x1xf32, #tpu.memory_space<vmem>>, vector<4x1xf32>
    %78 = vector.broadcast %77 : vector<4x1xf32> to vector<4x256xf32>
    %79 = arith.addf %76, %78 : vector<4x256xf32>
    %cst_38 = arith.constant 5.000000e-01 : f32
    %80 = vector.broadcast %cst_38 : f32 to vector<4x256xf32>
    %81 = arith.mulf %80, %79 : vector<4x256xf32>
    %cst_39 = arith.constant 4.471500e-02 : f32
    %82 = vector.broadcast %cst_39 : f32 to vector<4x256xf32>
    %83 = arith.mulf %82, %79 : vector<4x256xf32>
    %84 = arith.mulf %83, %79 : vector<4x256xf32>
    %85 = arith.mulf %84, %79 : vector<4x256xf32>
    %86 = arith.addf %79, %85 : vector<4x256xf32>
    %cst_40 = arith.constant 0.797884583 : f32
    %87 = vector.broadcast %cst_40 : f32 to vector<4x256xf32>
    %88 = arith.mulf %87, %86 : vector<4x256xf32>
    %89 = math.tanh %88 : vector<4x256xf32>
    %cst_41 = arith.constant 1.000000e+00 : f32
    %90 = vector.broadcast %cst_41 : f32 to vector<4x256xf32>
    %91 = arith.addf %90, %89 : vector<4x256xf32>
    %92 = arith.mulf %81, %91 : vector<4x256xf32>
    %c0_42 = arith.constant 0 : index
    %c0_43 = arith.constant 0 : index
    %93 = vector.load %arg13[%c0_42, %c0_43] : memref<4x4xf32, #tpu.memory_space<vmem>>, vector<4x4xf32>
    %c0_44 = arith.constant 0 : index
    %c0_45 = arith.constant 0 : index
    %c0_46 = arith.constant 0 : index
    %94 = vector.load %arg2[%c0_44, %c0_45, %c0_46] : memref<1x4x256xf32, #tpu.memory_space<vmem>>, vector<1x4x256xf32>
    %95 = vector.shape_cast %94 : vector<1x4x256xf32> to vector<4x256xf32>
    %cst_47 = arith.constant dense<0.000000e+00> : vector<4x256xf32>
    %96 = tpu.matmul %93, %95, %cst_47 {dimension_numbers = #tpu.dot_dimension_numbers<[1], [0], [0], [1], [0, 0, 1, 1], [], []>} : vector<4x4xf32>, vector<4x256xf32>, vector<4x256xf32> -> vector<4x256xf32>
    %c0_48 = arith.constant 0 : index
    %c0_49 = arith.constant 0 : index
    %97 = vector.load %arg14[%c0_48, %c0_49] : memref<4x1xf32, #tpu.memory_space<vmem>>, vector<4x1xf32>
    %98 = vector.broadcast %97 : vector<4x1xf32> to vector<4x256xf32>
    %99 = arith.addf %96, %98 : vector<4x256xf32>
    %100 = arith.addf %92, %99 : vector<4x256xf32>
    %cst_50 = arith.constant 5.000000e-01 : f32
    %101 = vector.broadcast %cst_50 : f32 to vector<4x256xf32>
    %102 = arith.mulf %101, %100 : vector<4x256xf32>
    %cst_51 = arith.constant 4.471500e-02 : f32
    %103 = vector.broadcast %cst_51 : f32 to vector<4x256xf32>
    %104 = arith.mulf %103, %100 : vector<4x256xf32>
    %105 = arith.mulf %104, %100 : vector<4x256xf32>
    %106 = arith.mulf %105, %100 : vector<4x256xf32>
    %107 = arith.addf %100, %106 : vector<4x256xf32>
    %cst_52 = arith.constant 0.797884583 : f32
    %108 = vector.broadcast %cst_52 : f32 to vector<4x256xf32>
    %109 = arith.mulf %108, %107 : vector<4x256xf32>
    %110 = math.tanh %109 : vector<4x256xf32>
    %cst_53 = arith.constant 1.000000e+00 : f32
    %111 = vector.broadcast %cst_53 : f32 to vector<4x256xf32>
    %112 = arith.addf %111, %110 : vector<4x256xf32>
    %113 = arith.mulf %102, %112 : vector<4x256xf32>
    %c0_54 = arith.constant 0 : index
    %c0_55 = arith.constant 0 : index
    %c0_56 = arith.constant 0 : index
    %114 = vector.load %arg15[%c0_54, %c0_55, %c0_56] : memref<1x4x256xf32, #tpu.memory_space<vmem>>, vector<1x4x256xf32>
    %115 = vector.shape_cast %114 : vector<1x4x256xf32> to vector<4x256xf32>
    %116 = vector.shape_cast %113 : vector<4x256xf32> to vector<1x4x256xf32>
    tpu.vector_store %arg15[%c0_54, %c0_55, %c0_56], %116 {strides = array<i32>} : memref<1x4x256xf32, #tpu.memory_space<vmem>>, vector<1x4x256xf32>,
    return
  }
  func.func @transform_0(%arg0: i32) -> (i32, i32, i32) {
    %c0_i32 = arith.constant 0 : i32
    %c0_i32_0 = arith.constant 0 : i32
    %c0_i32_1 = arith.constant 0 : i32
    return %arg0, %c0_i32, %c0_i32_0 : i32, i32, i32
  }
  func.func @transform_1(%arg0: i32) -> (i32, i32, i32) {
    %c0_i32 = arith.constant 0 : i32
    %c0_i32_0 = arith.constant 0 : i32
    %c0_i32_1 = arith.constant 0 : i32
    return %arg0, %c0_i32, %c0_i32_0 : i32, i32, i32
  }
  func.func @transform_2(%arg0: i32) -> (i32, i32) {
    %c0_i32 = arith.constant 0 : i32
    %c0_i32_0 = arith.constant 0 : i32
    %c0_i32_1 = arith.constant 0 : i32
    return %c0_i32, %c0_i32_0 : i32, i32
  }
  func.func @transform_3(%arg0: i32) -> (i32, i32) {
    %c0_i32 = arith.constant 0 : i32
    %c0_i32_0 = arith.constant 0 : i32
    %c0_i32_1 = arith.constant 0 : i32
    return %c0_i32, %c0_i32_0 : i32, i32
  }
  func.func @transform_4(%arg0: i32) -> (i32, i32) {
    %c0_i32 = arith.constant 0 : i32
    %c0_i32_0 = arith.constant 0 : i32
    %c0_i32_1 = arith.constant 0 : i32
    return %c0_i32, %c0_i32_0 : i32, i32
  }
  func.func @transform_5(%arg0: i32) -> (i32, i32) {
    %c0_i32 = arith.constant 0 : i32
    %c0_i32_0 = arith.constant 0 : i32
    %c0_i32_1 = arith.constant 0 : i32
    return %c0_i32, %c0_i32_0 : i32, i32
  }
  func.func @transform_6(%arg0: i32) -> (i32, i32, i32, i32) {
    %c0_i32 = arith.constant 0 : i32
    %c0_i32_0 = arith.constant 0 : i32
    %c0_i32_1 = arith.constant 0 : i32
    %c0_i32_2 = arith.constant 0 : i32
    %c0_i32_3 = arith.constant 0 : i32
    return %c0_i32, %c0_i32_0, %c0_i32_1, %c0_i32_2 : i32, i32, i32, i32
  }
  func.func @transform_7(%arg0: i32) -> (i32, i32, i32, i32) {
    %c0_i32 = arith.constant 0 : i32
    %c0_i32_0 = arith.constant 0 : i32
    %c0_i32_1 = arith.constant 0 : i32
    %c0_i32_2 = arith.constant 0 : i32
    %c0_i32_3 = arith.constant 0 : i32
    return %c0_i32, %c0_i32_0, %c0_i32_1, %c0_i32_2 : i32, i32, i32, i32
  }
  func.func @transform_8(%arg0: i32) -> (i32, i32) {
    %c0_i32 = arith.constant 0 : i32
    %c0_i32_0 = arith.constant 0 : i32
    %c0_i32_1 = arith.constant 0 : i32
    return %c0_i32, %c0_i32_0 : i32, i32
  }
  func.func @transform_9(%arg0: i32) -> (i32, i32) {
    %c0_i32 = arith.constant 0 : i32
    %c0_i32_0 = arith.constant 0 : i32
    %c0_i32_1 = arith.constant 0 : i32
    return %c0_i32, %c0_i32_0 : i32, i32
  }
  func.func @transform_10(%arg0: i32) -> (i32, i32) {
    %c0_i32 = arith.constant 0 : i32
    %c0_i32_0 = arith.constant 0 : i32
    %c0_i32_1 = arith.constant 0 : i32
    return %c0_i32, %c0_i32_0 : i32, i32
  }
  func.func @transform_11(%arg0: i32) -> (i32, i32) {
    %c0_i32 = arith.constant 0 : i32
    %c0_i32_0 = arith.constant 0 : i32
    %c0_i32_1 = arith.constant 0 : i32
    return %c0_i32, %c0_i32_0 : i32, i32
  }
  func.func @transform_12(%arg0: i32) -> (i32, i32) {
    %c0_i32 = arith.constant 0 : i32
    %c0_i32_0 = arith.constant 0 : i32
    %c0_i32_1 = arith.constant 0 : i32
    return %c0_i32, %c0_i32_0 : i32, i32
  }
  func.func @transform_13(%arg0: i32) -> (i32, i32) {
    %c0_i32 = arith.constant 0 : i32
    %c0_i32_0 = arith.constant 0 : i32
    %c0_i32_1 = arith.constant 0 : i32
    return %c0_i32, %c0_i32_0 : i32, i32
  }
  func.func @transform_14(%arg0: i32) -> (i32, i32, i32) {
    %c0_i32 = arith.constant 0 : i32
    %c0_i32_0 = arith.constant 0 : i32
    %c0_i32_1 = arith.constant 0 : i32
    return %arg0, %c0_i32, %c0_i32_0 : i32, i32, i32
  }
}

</mosaic_0001>

<llo_original>
// kernel: lit_block_forward.2
$region0: #{lit_block_forward.2}
  #allocation0 [shape = 'u32[]', space=smem, size = 0x4, offset = 0x4, fixed_abs, tag = 'smem constant byte address 0x4 - core index']
  #allocation1 [shape = 'u32[144,128]{1,0:T(1,128)}', space=vmem, size = 0x12000, scoped, tag = 'internal scratch']
  %s0 = inlined_call_operand.vmem [shape: f32[1,32], index: 0, kind: input, shape index: {}]
  %s1 = inlined_call_operand.vmem [shape: f32[1,32], index: 1, kind: input, shape index: {}]
  %s2 = inlined_call_operand.vmem [shape: f32[1,32], index: 2, kind: input, shape index: {}]
  %s3 = inlined_call_operand.vmem [shape: f32[1,32], index: 3, kind: input, shape index: {}]
  %s4 = inlined_call_operand.vmem [shape: f32[32,32], index: 4, kind: input, shape index: {}]
  %s5 = inlined_call_operand.vmem [shape: f32[1,32], index: 5, kind: input, shape index: {}]
  %s6 = inlined_call_operand.vmem [shape: f32[1,32], index: 6, kind: input, shape index: {}]
  %s7 = inlined_call_operand.vmem [shape: f32[1,32], index: 7, kind: input, shape index: {}]
  %s8 = inlined_call_operand.vmem [shape: f32[32,8], index: 8, kind: input, shape index: {}]
  %s9 = inlined_call_operand.vmem [shape: f32[1,8], index: 9, kind: input, shape index: {}]
  %s10 = inlined_call_operand.vmem [shape: f32[1,32], index: 10, kind: input, shape index: {}]
  %s11 = inlined_call_operand.vmem [shape: f32[1,32], index: 11, kind: input, shape index: {}]
  %s12 = inlined_call_operand.vmem [shape: f32[1,32], index: 12, kind: input, shape index: {}]
  %s13 = inlined_call_operand.vmem [shape: f32[1,32], index: 13, kind: input, shape index: {}]
  %s14 = inlined_call_operand.vmem [shape: f32[32,32], index: 14, kind: input, shape index: {}]
  %s15 = inlined_call_operand.vmem [shape: f32[1,32], index: 15, kind: input, shape index: {}]
  %s16 = inlined_call_operand.vmem [shape: f32[1,32], index: 16, kind: input, shape index: {}]
  %s17 = inlined_call_operand.vmem [shape: f32[1,32], index: 17, kind: input, shape index: {}]
  %s18 = inlined_call_operand.vmem [shape: f32[32,8], index: 18, kind: input, shape index: {}]
  %s19 = inlined_call_operand.vmem [shape: f32[1,8], index: 19, kind: input, shape index: {}]
  %s20 = inlined_call_operand.vmem [shape: f32[8,16], index: 20, kind: output, shape index: {0}]
  %s21 = inlined_call_operand.vmem [shape: f32[16,8], index: 21, kind: output, shape index: {1}]
  %s22 = inlined_call_operand.vmem [shape: f32[16,8], index: 22, kind: output, shape index: {2}]
  %s23 = inlined_call_operand.vmem [shape: f32[8,32], index: 23, kind: output, shape index: {3}]
  %24 = xla_tuple %s20, %s21, %s22, %s23
  %s25 = sld [smem:[#allocation0]]
  $region114: #{lit_block_forward.2} parent=0
    _
  %s27 = ssub.s32 1, %s25
  %s28 = scalar_select 0, %s27, %s25
  // Predicated region
  $region2: #{lit_block_forward.2} parent=0 // pred_check
    _
  $region3: #{lit_block_forward.2} parent=0 // pred_check_branch
    %30 = sbr.rel (0) target = $region5
  $region4: #{lit_block_forward.2} parent=0 // pred_region
    _
  $region5: #{lit_block_forward.2} parent=0 // pred_fallthru
    _
  // Predicated region
  $region6: #{lit_block_forward.2} parent=0 // pred_check
    _
  $region7: #{lit_block_forward.2} parent=0 // pred_check_branch
    %32 = sbr.rel (0) target = $region9
  $region8: #{lit_block_forward.2} parent=0 // pred_region
    _
  $region9: #{lit_block_forward.2} parent=0 // pred_fallthru
    _
  // Predicated region
  $region10: #{lit_block_forward.2} parent=0 // pred_check
    _
  $region11: #{lit_block_forward.2} parent=0 // pred_check_branch
    %34 = sbr.rel (0) target = $region13
  $region12: #{lit_block_forward.2} parent=0 // pred_region
    _
  $region13: #{lit_block_forward.2} parent=0 // pred_fallthru
    _
  // Predicated region
  $region14: #{lit_block_forward.2} parent=0 // pred_check
    _
  $region15: #{lit_block_forward.2} parent=0 // pred_check_branch
    %36 = sbr.rel (0) target = $region17
  $region16: #{lit_block_forward.2} parent=0 // pred_region
    _
  $region17: #{lit_block_forward.2} parent=0 // pred_fallthru
    _
  // Predicated region
  $region18: #{lit_block_forward.2} parent=0 // pred_check
    _
  $region19: #{lit_block_forward.2} parent=0 // pred_check_branch
    %38 = sbr.rel (0) target = $region21
  $region20: #{lit_block_forward.2} parent=0 // pred_region
    _
  $region21: #{lit_block_forward.2} parent=0 // pred_fallthru
    _
  // Predicated region
  $region22: #{lit_block_forward.2} parent=0 // pred_check
    _
  $region23: #{lit_block_forward.2} parent=0 // pred_check_branch
    %40 = sbr.rel (0) target = $region25
  $region24: #{lit_block_forward.2} parent=0 // pred_region
    _
  $region25: #{lit_block_forward.2} parent=0 // pred_fallthru
    _
  // Predicated region
  $region26: #{lit_block_forward.2} parent=0 // pred_check
    _
  $region27: #{lit_block_forward.2} parent=0 // pred_check_branch
    %42 = sbr.rel (0) target = $region29
  $region28: #{lit_block_forward.2} parent=0 // pred_region
    _
  $region29: #{lit_block_forward.2} parent=0 // pred_fallthru
    _
  // Predicated region
  $region30: #{lit_block_forward.2} parent=0 // pred_check
    _
  $region31: #{lit_block_forward.2} parent=0 // pred_check_branch
    %44 = sbr.rel (0) target = $region33
  $region32: #{lit_block_forward.2} parent=0 // pred_region
    _
  $region33: #{lit_block_forward.2} parent=0 // pred_fallthru
    _
  // Predicated region
  $region34: #{lit_block_forward.2} parent=0 // pred_check
    _
  $region35: #{lit_block_forward.2} parent=0 // pred_check_branch
    %46 = sbr.rel (0) target = $region37
  $region36: #{lit_block_forward.2} parent=0 // pred_region
    _
  $region37: #{lit_block_forward.2} parent=0 // pred_fallthru
    _
  // Predicated region
  $region38: #{lit_block_forward.2} parent=0 // pred_check
    _
  $region39: #{lit_block_forward.2} parent=0 // pred_check_branch
    %48 = sbr.rel (0) target = $region41
  $region40: #{lit_block_forward.2} parent=0 // pred_region
    _
  $region41: #{lit_block_forward.2} parent=0 // pred_fallthru
    _
  // Predicated region
  $region42: #{lit_block_forward.2} parent=0 // pred_check
    _
  $region43: #{lit_block_forward.2} parent=0 // pred_check_branch
    %50 = sbr.rel (0) target = $region45
  $region44: #{lit_block_forward.2} parent=0 // pred_region
    _
  $region45: #{lit_block_forward.2} parent=0 // pred_fallthru
    _
  // Predicated region
  $region46: #{lit_block_forward.2} parent=0 // pred_check
    _
  $region47: #{lit_block_forward.2} parent=0 // pred_check_branch
    %52 = sbr.rel (0) target = $region49
  $region48: #{lit_block_forward.2} parent=0 // pred_region
    _
  $region49: #{lit_block_forward.2} parent=0 // pred_fallthru
    _
  // Predicated region
  $region50: #{lit_block_forward.2} parent=0 // pred_check
    _
  $region51: #{lit_block_forward.2} parent=0 // pred_check_branch
    %54 = sbr.rel (0) target = $region53
  $region52: #{lit_block_forward.2} parent=0 // pred_region
    _
  $region53: #{lit_block_forward.2} parent=0 // pred_fallthru
    _
  // Predicated region
  $region54: #{lit_block_forward.2} parent=0 // pred_check
    _
  $region55: #{lit_block_forward.2} parent=0 // pred_check_branch
    %56 = sbr.rel (0) target = $region57
  $region56: #{lit_block_forward.2} parent=0 // pred_region
    _
  $region57: #{lit_block_forward.2} parent=0 // pred_fallthru
    _
  // Predicated region
  $region58: #{lit_block_forward.2} parent=0 // pred_check
    _
  $region59: #{lit_block_forward.2} parent=0 // pred_check_branch
    %58 = sbr.rel (0) target = $region61
  $region60: #{lit_block_forward.2} parent=0 // pred_region
    _
  $region61: #{lit_block_forward.2} parent=0 // pred_fallthru
    _
  // Predicated region
  $region62: #{lit_block_forward.2} parent=0 // pred_check
    _
  $region63: #{lit_block_forward.2} parent=0 // pred_check_branch
    %60 = sbr.rel (0) target = $region65
  $region64: #{lit_block_forward.2} parent=0 // pred_region
    _
  $region65: #{lit_block_forward.2} parent=0 // pred_fallthru
    _
  // Predicated region
  $region66: #{lit_block_forward.2} parent=0 // pred_check
    _
  $region67: #{lit_block_forward.2} parent=0 // pred_check_branch
    %62 = sbr.rel (0) target = $region69
  $region68: #{lit_block_forward.2} parent=0 // pred_region
    _
  $region69: #{lit_block_forward.2} parent=0 // pred_fallthru
    _
  // Predicated region
  $region70: #{lit_block_forward.2} parent=0 // pred_check
    _
  $region71: #{lit_block_forward.2} parent=0 // pred_check_branch
    %64 = sbr.rel (0) target = $region73
  $region72: #{lit_block_forward.2} parent=0 // pred_region
    _
  $region73: #{lit_block_forward.2} parent=0 // pred_fallthru
    _
  // Predicated region
  $region74: #{lit_block_forward.2} parent=0 // pred_check
    _
  $region75: #{lit_block_forward.2} parent=0 // pred_check_branch
    %66 = sbr.rel (0) target = $region77
  $region76: #{lit_block_forward.2} parent=0 // pred_region
    _
  $region77: #{lit_block_forward.2} parent=0 // pred_fallthru
    _
  // Predicated region
  $region78: #{lit_block_forward.2} parent=0 // pred_check
    _
  $region79: #{lit_block_forward.2} parent=0 // pred_check_branch
    %68 = sbr.rel (0) target = $region81
  $region80: #{lit_block_forward.2} parent=0 // pred_region
    _
  $region81: #{lit_block_forward.2} parent=0 // pred_fallthru
    _
  %v69 = vlaneseq
  %v70 = vshrl.u32 %v69, 7
  %v71 = vadd.s32 %v70, 8
  %v72 = vcvt.s32.f32 %v70
  %v73 = vcvt.s32.f32 %v71
  %v74 = vmul.f32 %v72, 0.06666667
  %v75 = vmul.f32 %v73, 0.06666667
  %v76 = vld [vmem:[%s0] sm:$0x1]
  %v78 = vlaneseq
  %v79 = vshrl.u32 %v78, 7
  %v80 = vsub.s32 0, %v79
  %v81 = vrot.slane %v76, %v80
  %v83 = vmul.f32 %v74, %v81
  %v84 = vmul.f32 %v75, %v81
  %v85 = vld [vmem:[%s1] sm:$0x1]
  %v87 = vlaneseq
  %v88 = vshrl.u32 %v87, 7
  %v89 = vsub.s32 0, %v88
  %v90 = vrot.slane %v85, %v89
  %v92 = vadd.f32 %v83, %v90
  %v93 = vadd.f32 %v84, %v90
  %v94 = vld [vmem:[%s2] sm:$0x1]
  %v95 = vld [vmem:[%s3] sm:$0x1]
  %vm96 = vcmask 261120
  %v97 = vsel %vm96, %v92, 0.0
  %98 = vadd.xlane.f32.xlu0 %v97
  %v99 = vpop.xlane.xlu0 %98
  %v100 = vsel %vm96, %v93, 0.0
  %101 = vadd.xlane.f32.xlu0 %v100
  %v102 = vpop.xlane.xlu0 %101
  %v103 = vrcp.pop 32.0
  %v104 = vmul.f32 %v99, %v103
  %v105 = vmul.f32 %v102, %v103
  %v106 = vsub.f32 %v92, %v104
  %v107 = vsub.f32 %v93, %v105
  %v108 = vmul.f32 %v106, %v106
  %v109 = vmul.f32 %v107, %v107
  %v110 = vsel %vm96, %v108, 0.0
  %111 = vadd.xlane.f32.xlu0 %v110
  %v112 = vpop.xlane.xlu0 %111
  %v113 = vsel %vm96, %v109, 0.0
  %114 = vadd.xlane.f32.xlu0 %v113
  %v115 = vpop.xlane.xlu0 %114
  %v116 = vmul.f32 %v112, %v103
  %v117 = vmul.f32 %v115, %v103
  %v118 = vadd.f32 %v116, 1e-05
  %v119 = vadd.f32 %v117, 1e-05
  %v120 = vrsqrt.pop %v118
  %v121 = vrsqrt.pop %v119
  %v122 = vmul.f32 %v106, %v120
  %v123 = vmul.f32 %v107, %v121
  %v125 = vlaneseq
  %v126 = vshrl.u32 %v125, 7
  %v127 = vsub.s32 0, %v126
  %v128 = vrot.slane %v94, %v127
  %v130 = vmul.f32 %v122, %v128
  %v131 = vmul.f32 %v123, %v128
  %v133 = vlaneseq
  %v134 = vshrl.u32 %v133, 7
  %v135 = vsub.s32 0, %v134
  %v136 = vrot.slane %v95, %v135
  %v138 = vadd.f32 %v130, %v136
  %v139 = vadd.f32 %v131, %v136
  %v140 = vmul.f32 %v138, 0.5
  %v141 = vmul.f32 %v139, 0.5
  %v142 = vmul.f32 %v138, 0.044715
  %v143 = vmul.f32 %v139, 0.044715
  %v144 = vmul.f32 %v142, %v138
  %v145 = vmul.f32 %v143, %v139
  %v146 = vmul.f32 %v144, %v138
  %v147 = vmul.f32 %v145, %v139
  %v148 = vadd.f32 %v138, %v146
  %v149 = vadd.f32 %v139, %v147
  %v150 = vmul.f32 %v148, 0.7978846
  %v151 = vmul.f32 %v149, 0.7978846
  %v152 = vtanh.pop %v150
  %v153 = vtanh.pop %v151
  %v154 = vadd.f32 %v152, 1.0
  %v155 = vadd.f32 %v153, 1.0
  %v156 = vmul.f32 %v140, %v154
  %v157 = vmul.f32 %v141, %v155
  %v158 = vld [vmem:[%s4] sm:$0xff]
  %v159 = vld [vmem:[%s4 + $0x8] sm:$0xff]
  %v160 = vld [vmem:[%s4 + $0x10] sm:$0xff]
  %v161 = vld [vmem:[%s4 + $0x18] sm:$0xff]
  %v162 = vld [vmem:[%s5] sm:$0x1]
  %v164 = vlaneseq
  %v165 = vshrl.u32 %v164, 7
  %v166 = vsub.s32 0, %v165
  %v167 = vrot.slane %v162, %v166
  %v170 = vsel %vm96, %v156, 0
  %v173 = vsel %vm96, %v157, 0
  %175 = vmatprep.subr.mxu0 0.0
  %176 = vmatpush1.msra.mxu0 0.0
  %177 = vmatprep.subr.mxu0 0.0
  %178 = vmatpush1.msra.mxu0 0.0
  %179 = vmatprep.subr.mxu0 0.0
  %180 = vmatpush1.msra.mxu0 0.0
  %181 = vmatprep.subr.mxu0 0.0
  %182 = vmatpush1.msra.mxu0 0.0
  %183 = vmatprep.subr.mxu0 0.0
  %184 = vmatpush1.msra.mxu0 0.0
  %185 = vmatprep.subr.mxu0 0.0
  %186 = vmatpush1.msra.mxu0 0.0
  %187 = vmatprep.subr.mxu0 0.0
  %188 = vmatpush1.msra.mxu0 0.0
  %189 = vmatprep.subr.mxu0 0.0
  %190 = vmatpush1.msra.mxu0 0.0
  %191 = vmatprep.subr.mxu0 0.0
  %192 = vmatpush1.msra.mxu0 0.0
  %193 = vmatprep.subr.mxu0 0.0
  %194 = vmatpush1.msra.mxu0 0.0
  %195 = vmatprep.subr.mxu0 0.0
  %196 = vmatpush1.msra.mxu0 0.0
  %197 = vmatprep.subr.mxu0 0.0
  %198 = vmatpush1.msra.mxu0 0.0
  %199 = vmatprep.subr.mxu0 0.0
  %200 = vmatpush1.msra.mxu0 %v161
  %201 = vmatprep.subr.mxu0 0.0
  %202 = vmatpush1.msra.mxu0 %v160
  %203 = vmatprep.subr.mxu0 0.0
  %204 = vmatpush1.msra.mxu0 %v159
  %205 = vmatprep.subr.mxu0 0.0
  %206 = vmatpush1.msra.mxu0 %v158
  %207 = vmatprep.subr.mxu0 0.0
  %208 = vmatpush2.msra.mxu0 0.0
  %209 = vmatprep.subr.mxu0 0.0
  %210 = vmatpush2.msra.mxu0 0.0
  %211 = vmatprep.subr.mxu0 0.0
  %212 = vmatpush2.msra.mxu0 0.0
  %213 = vmatprep.subr.mxu0 0.0
  %214 = vmatpush2.msra.mxu0 0.0
  %215 = vmatprep.subr.mxu0 0.0
  %216 = vmatpush2.msra.mxu0 0.0
  %217 = vmatprep.subr.mxu0 0.0
  %218 = vmatpush2.msra.mxu0 0.0
  %219 = vmatprep.subr.mxu0 0.0
  %220 = vmatpush2.msra.mxu0 0.0
  %221 = vmatprep.subr.mxu0 0.0
  %222 = vmatpush2.msra.mxu0 0.0
  %223 = vmatprep.subr.mxu0 0.0
  %224 = vmatpush2.msra.mxu0 0.0
  %225 = vmatprep.subr.mxu0 0.0
  %226 = vmatpush2.msra.mxu0 0.0
  %227 = vmatprep.subr.mxu0 0.0
  %228 = vmatpush2.msra.mxu0 0.0
  %229 = vmatprep.subr.mxu0 0.0
  %230 = vmatpush2.msra.mxu0 0.0
  %231 = vmatprep.subr.mxu0 0.0
  %232 = vmatpush2.msra.mxu0 0.0
  %233 = vmatprep.subr.mxu0 0.0
  %234 = vmatpush2.msra.mxu0 0.0
  %235 = vmatprep.subr.mxu0 0.0
  %236 = vmatpush2.msra.mxu0 0.0
  %237 = vmatprep.subr.mxu0 0.0
  %238 = vmatpush2.msra.mxu0 0.0
  %239 = vmatprep.mubr.f32.mxu0 0.0
  %240 = vmatmul.mubr.f32.gmra.mxu0 %v170
  %v241 = vpop.f32.mrf.mxu0
  %v242 = vadd.f32 %v167, %v241
  %v243 = vpop.f32.mrf.mxu0
  %244 = vmatprep.mubr.f32.mxu0 0.0
  %245 = vmatmul.mubr.f32.gmra.mxu0 %v173
  %v246 = vpop.f32.mrf.mxu0
  %v247 = vadd.f32 %v167, %v246
  %v248 = vpop.f32.mrf.mxu0
  %249 = vdwg.mxu0
  %v250 = vld [vmem:[%s6] sm:$0x1]
  %v251 = vld [vmem:[%s7] sm:$0x1]
  %v252 = vsel %vm96, %v242, 0.0
  %253 = vadd.xlane.f32.xlu0 %v252
  %v254 = vpop.xlane.xlu0 %253
  %v255 = vsel %vm96, %v247, 0.0
  %256 = vadd.xlane.f32.xlu0 %v255
  %v257 = vpop.xlane.xlu0 %256
  %v258 = vmul.f32 %v254, %v103
  %v259 = vmul.f32 %v257, %v103
  %v260 = vsub.f32 %v242, %v258
  %v261 = vsub.f32 %v247, %v259
  %v262 = vmul.f32 %v260, %v260
  %v263 = vmul.f32 %v261, %v261
  %v264 = vsel %vm96, %v262, 0.0
  %265 = vadd.xlane.f32.xlu0 %v264
  %v266 = vpop.xlane.xlu0 %265
  %v267 = vsel %vm96, %v263, 0.0
  %268 = vadd.xlane.f32.xlu0 %v267
  %v269 = vpop.xlane.xlu0 %268
  %v270 = vmul.f32 %v266, %v103
  %v271 = vmul.f32 %v269, %v103
  %v272 = vadd.f32 %v270, 1e-05
  %v273 = vadd.f32 %v271, 1e-05
  %v274 = vrsqrt.pop %v272
  %v275 = vrsqrt.pop %v273
  %v276 = vmul.f32 %v260, %v274
  %v277 = vmul.f32 %v261, %v275
  %v279 = vlaneseq
  %v280 = vshrl.u32 %v279, 7
  %v281 = vsub.s32 0, %v280
  %v282 = vrot.slane %v250, %v281
  %v284 = vmul.f32 %v276, %v282
  %v285 = vmul.f32 %v277, %v282
  %v287 = vlaneseq
  %v288 = vshrl.u32 %v287, 7
  %v289 = vsub.s32 0, %v288
  %v290 = vrot.slane %v251, %v289
  %v292 = vadd.f32 %v284, %v290
  %v293 = vadd.f32 %v285, %v290
  %v294 = vmul.f32 %v292, 0.5
  %v295 = vmul.f32 %v293, 0.5
  %v296 = vmul.f32 %v292, 0.044715
  %v297 = vmul.f32 %v293, 0.044715
  %v298 = vmul.f32 %v296, %v292
  %v299 = vmul.f32 %v297, %v293
  %v300 = vmul.f32 %v298, %v292
  %v301 = vmul.f32 %v299, %v293
  %v302 = vadd.f32 %v292, %v300
  %v303 = vadd.f32 %v293, %v301
  %v304 = vmul.f32 %v302, 0.7978846
  %v305 = vmul.f32 %v303, 0.7978846
  %v306 = vtanh.pop %v304
  %v307 = vtanh.pop %v305
  %v308 = vadd.f32 %v306, 1.0
  %v309 = vadd.f32 %v307, 1.0
  %v310 = vmul.f32 %v294, %v308
  %v311 = vmul.f32 %v295, %v309
  %v312 = vld [vmem:[%s8] sm:$0xff]
  %v313 = vld [vmem:[%s8 + $0x8] sm:$0xff]
  %v314 = vld [vmem:[%s8 + $0x10] sm:$0xff]
  %v315 = vld [vmem:[%s8 + $0x18] sm:$0xff]
  %v316 = vld [vmem:[%s9] sm:$0x1]
  %v318 = vlaneseq
  %v319 = vshrl.u32 %v318, 7
  %v320 = vsub.s32 0, %v319
  %v321 = vrot.slane %v316, %v320
  %v324 = vsel %vm96, %v310, 0
  %v327 = vsel %vm96, %v311, 0
  %329 = vmatprep.subr.mxu0 0.0
  %330 = vmatpush1.msra.mxu0 0.0
  %331 = vmatprep.subr.mxu0 0.0
  %332 = vmatpush1.msra.mxu0 0.0
  %333 = vmatprep.subr.mxu0 0.0
  %334 = vmatpush1.msra.mxu0 0.0
  %335 = vmatprep.subr.mxu0 0.0
  %336 = vmatpush1.msra.mxu0 0.0
  %337 = vmatprep.subr.mxu0 0.0
  %338 = vmatpush1.msra.mxu0 0.0
  %339 = vmatprep.subr.mxu0 0.0
  %340 = vmatpush1.msra.mxu0 0.0
  %341 = vmatprep.subr.mxu0 0.0
  %342 = vmatpush1.msra.mxu0 0.0
  %343 = vmatprep.subr.mxu0 0.0
  %344 = vmatpush1.msra.mxu0 0.0
  %345 = vmatprep.subr.mxu0 0.0
  %346 = vmatpush1.msra.mxu0 0.0
  %347 = vmatprep.subr.mxu0 0.0
  %348 = vmatpush1.msra.mxu0 0.0
  %349 = vmatprep.subr.mxu0 0.0
  %350 = vmatpush1.msra.mxu0 0.0
  %351 = vmatprep.subr.mxu0 0.0
  %352 = vmatpush1.msra.mxu0 0.0
  %353 = vmatprep.subr.mxu0 0.0
  %354 = vmatpush1.msra.mxu0 %v315
  %355 = vmatprep.subr.mxu0 0.0
  %356 = vmatpush1.msra.mxu0 %v314
  %357 = vmatprep.subr.mxu0 0.0
  %358 = vmatpush1.msra.mxu0 %v313
  %359 = vmatprep.subr.mxu0 0.0
  %360 = vmatpush1.msra.mxu0 %v312
  %361 = vmatprep.subr.mxu0 0.0
  %362 = vmatpush2.msra.mxu0 0.0
  %363 = vmatprep.subr.mxu0 0.0
  %364 = vmatpush2.msra.mxu0 0.0
  %365 = vmatprep.subr.mxu0 0.0
  %366 = vmatpush2.msra.mxu0 0.0
  %367 = vmatprep.subr.mxu0 0.0
  %368 = vmatpush2.msra.mxu0 0.0
  %369 = vmatprep.subr.mxu0 0.0
  %370 = vmatpush2.msra.mxu0 0.0
  %371 = vmatprep.subr.mxu0 0.0
  %372 = vmatpush2.msra.mxu0 0.0
  %373 = vmatprep.subr.mxu0 0.0
  %374 = vmatpush2.msra.mxu0 0.0
  %375 = vmatprep.subr.mxu0 0.0
  %376 = vmatpush2.msra.mxu0 0.0
  %377 = vmatprep.subr.mxu0 0.0
  %378 = vmatpush2.msra.mxu0 0.0
  %379 = vmatprep.subr.mxu0 0.0
  %380 = vmatpush2.msra.mxu0 0.0
  %381 = vmatprep.subr.mxu0 0.0
  %382 = vmatpush2.msra.mxu0 0.0
  %383 = vmatprep.subr.mxu0 0.0
  %384 = vmatpush2.msra.mxu0 0.0
  %385 = vmatprep.subr.mxu0 0.0
  %386 = vmatpush2.msra.mxu0 0.0
  %387 = vmatprep.subr.mxu0 0.0
  %388 = vmatpush2.msra.mxu0 0.0
  %389 = vmatprep.subr.mxu0 0.0
  %390 = vmatpush2.msra.mxu0 0.0
  %391 = vmatprep.subr.mxu0 0.0
  %392 = vmatpush2.msra.mxu0 0.0
  %393 = vmatprep.mubr.f32.mxu0 0.0
  %394 = vmatmul.mubr.f32.gmra.mxu0 %v324
  %v395 = vpop.f32.mrf.mxu0
  %v396 = vadd.f32 %v321, %v395
  %v397 = vpop.f32.mrf.mxu0
  %398 = vmatprep.mubr.f32.mxu0 0.0
  %399 = vmatmul.mubr.f32.gmra.mxu0 %v327
  %v400 = vpop.f32.mrf.mxu0
  %v401 = vadd.f32 %v321, %v400
  %v402 = vpop.f32.mrf.mxu0
  %403 = vdwg.mxu0
  %v404 = vld [vmem:[%s10] sm:$0x1]
  %v406 = vlaneseq
  %v407 = vshrl.u32 %v406, 7
  %v408 = vsub.s32 0, %v407
  %v409 = vrot.slane %v404, %v408
  %v411 = vmul.f32 %v74, %v409
  %v412 = vmul.f32 %v75, %v409
  %v413 = vld [vmem:[%s11] sm:$0x1]
  %v415 = vlaneseq
  %v416 = vshrl.u32 %v415, 7
  %v417 = vsub.s32 0, %v416
  %v418 = vrot.slane %v413, %v417
  %v420 = vadd.f32 %v411, %v418
  %v421 = vadd.f32 %v412, %v418
  %v422 = vld [vmem:[%s12] sm:$0x1]
  %v423 = vld [vmem:[%s13] sm:$0x1]
  %v424 = vsel %vm96, %v420, 0.0
  %425 = vadd.xlane.f32.xlu0 %v424
  %v426 = vpop.xlane.xlu0 %425
  %v427 = vsel %vm96, %v421, 0.0
  %428 = vadd.xlane.f32.xlu0 %v427
  %v429 = vpop.xlane.xlu0 %428
  %v430 = vmul.f32 %v426, %v103
  %v431 = vmul.f32 %v429, %v103
  %v432 = vsub.f32 %v420, %v430
  %v433 = vsub.f32 %v421, %v431
  %v434 = vmul.f32 %v432, %v432
  %v435 = vmul.f32 %v433, %v433
  %v436 = vsel %vm96, %v434, 0.0
  %437 = vadd.xlane.f32.xlu0 %v436
  %v438 = vpop.xlane.xlu0 %437
  %v439 = vsel %vm96, %v435, 0.0
  %440 = vadd.xlane.f32.xlu0 %v439
  %v441 = vpop.xlane.xlu0 %440
  %v442 = vmul.f32 %v438, %v103
  %v443 = vmul.f32 %v441, %v103
  %v444 = vadd.f32 %v442, 1e-05
  %v445 = vadd.f32 %v443, 1e-05
  %v446 = vrsqrt.pop %v444
  %v447 = vrsqrt.pop %v445
  %v448 = vmul.f32 %v432, %v446
  %v449 = vmul.f32 %v433, %v447
  %v451 = vlaneseq
  %v452 = vshrl.u32 %v451, 7
  %v453 = vsub.s32 0, %v452
  %v454 = vrot.slane %v422, %v453
  %v456 = vmul.f32 %v448, %v454
  %v457 = vmul.f32 %v449, %v454
  %v459 = vlaneseq
  %v460 = vshrl.u32 %v459, 7
  %v461 = vsub.s32 0, %v460
  %v462 = vrot.slane %v423, %v461
  %v464 = vadd.f32 %v456, %v462
  %v465 = vadd.f32 %v457, %v462
  %v466 = vmul.f32 %v464, 0.5
  %v467 = vmul.f32 %v465, 0.5
  %v468 = vmul.f32 %v464, 0.044715
  %v469 = vmul.f32 %v465, 0.044715
  %v470 = vmul.f32 %v468, %v464
  %v471 = vmul.f32 %v469, %v465
  %v472 = vmul.f32 %v470, %v464
  %v473 = vmul.f32 %v471, %v465
  %v474 = vadd.f32 %v464, %v472
  %v475 = vadd.f32 %v465, %v473
  %v476 = vmul.f32 %v474, 0.7978846
  %v477 = vmul.f32 %v475, 0.7978846
  %v478 = vtanh.pop %v476
  %v479 = vtanh.pop %v477
  %v480 = vadd.f32 %v478, 1.0
  %v481 = vadd.f32 %v479, 1.0
  %v482 = vmul.f32 %v466, %v480
  %v483 = vmul.f32 %v467, %v481
  %v484 = vld [vmem:[%s14] sm:$0xff]
  %v485 = vld [vmem:[%s14 + $0x8] sm:$0xff]
  %v486 = vld [vmem:[%s14 + $0x10] sm:$0xff]
  %v487 = vld [vmem:[%s14 + $0x18] sm:$0xff]
  %v488 = vld [vmem:[%s15] sm:$0x1]
  %v490 = vlaneseq
  %v491 = vshrl.u32 %v490, 7
  %v492 = vsub.s32 0, %v491
  %v493 = vrot.slane %v488, %v492
  %v496 = vsel %vm96, %v482, 0
  %v499 = vsel %vm96, %v483, 0
  %501 = vmatprep.subr.mxu0 0.0
  %502 = vmatpush1.msra.mxu0 0.0
  %503 = vmatprep.subr.mxu0 0.0
  %504 = vmatpush1.msra.mxu0 0.0
  %505 = vmatprep.subr.mxu0 0.0
  %506 = vmatpush1.msra.mxu0 0.0
  %507 = vmatprep.subr.mxu0 0.0
  %508 = vmatpush1.msra.mxu0 0.0
  %509 = vmatprep.subr.mxu0 0.0
  %510 = vmatpush1.msra.mxu0 0.0
  %511 = vmatprep.subr.mxu0 0.0
  %512 = vmatpush1.msra.mxu0 0.0
  %513 = vmatprep.subr.mxu0 0.0
  %514 = vmatpush1.msra.mxu0 0.0
  %515 = vmatprep.subr.mxu0 0.0
  %516 = vmatpush1.msra.mxu0 0.0
  %517 = vmatprep.subr.mxu0 0.0
  %518 = vmatpush1.msra.mxu0 0.0
  %519 = vmatprep.subr.mxu0 0.0
  %520 = vmatpush1.msra.mxu0 0.0
  %521 = vmatprep.subr.mxu0 0.0
  %522 = vmatpush1.msra.mxu0 0.0
  %523 = vmatprep.subr.mxu0 0.0
  %524 = vmatpush1.msra.mxu0 0.0
  %525 = vmatprep.subr.mxu0 0.0
  %526 = vmatpush1.msra.mxu0 %v487
  %527 = vmatprep.subr.mxu0 0.0
  %528 = vmatpush1.msra.mxu0 %v486
  %529 = vmatprep.subr.mxu0 0.0
  %530 = vmatpush1.msra.mxu0 %v485
  %531 = vmatprep.subr.mxu0 0.0
  %532 = vmatpush1.msra.mxu0 %v484
  %533 = vmatprep.subr.mxu0 0.0
  %534 = vmatpush2.msra.mxu0 0.0
  %535 = vmatprep.subr.mxu0 0.0
  %536 = vmatpush2.msra.mxu0 0.0
  %537 = vmatprep.subr.mxu0 0.0
  %538 = vmatpush2.msra.mxu0 0.0
  %539 = vmatprep.subr.mxu0 0.0
  %540 = vmatpush2.msra.mxu0 0.0
  %541 = vmatprep.subr.mxu0 0.0
  %542 = vmatpush2.msra.mxu0 0.0
  %543 = vmatprep.subr.mxu0 0.0
  %544 = vmatpush2.msra.mxu0 0.0
  %545 = vmatprep.subr.mxu0 0.0
  %546 = vmatpush2.msra.mxu0 0.0
  %547 = vmatprep.subr.mxu0 0.0
  %548 = vmatpush2.msra.mxu0 0.0
  %549 = vmatprep.subr.mxu0 0.0
  %550 = vmatpush2.msra.mxu0 0.0
  %551 = vmatprep.subr.mxu0 0.0
  %552 = vmatpush2.msra.mxu0 0.0
  %553 = vmatprep.subr.mxu0 0.0
  %554 = vmatpush2.msra.mxu0 0.0
  %555 = vmatprep.subr.mxu0 0.0
  %556 = vmatpush2.msra.mxu0 0.0
  %557 = vmatprep.subr.mxu0 0.0
  %558 = vmatpush2.msra.mxu0 0.0
  %559 = vmatprep.subr.mxu0 0.0
  %560 = vmatpush2.msra.mxu0 0.0
  %561 = vmatprep.subr.mxu0 0.0
  %562 = vmatpush2.msra.mxu0 0.0
  %563 = vmatprep.subr.mxu0 0.0
  %564 = vmatpush2.msra.mxu0 0.0
  %565 = vmatprep.mubr.f32.mxu0 0.0
  %566 = vmatmul.mubr.f32.gmra.mxu0 %v496
  %v567 = vpop.f32.mrf.mxu0
  %v568 = vadd.f32 %v493, %v567
  %v569 = vpop.f32.mrf.mxu0
  %570 = vmatprep.mubr.f32.mxu0 0.0
  %571 = vmatmul.mubr.f32.gmra.mxu0 %v499
  %v572 = vpop.f32.mrf.mxu0
  %v573 = vadd.f32 %v493, %v572
  %v574 = vpop.f32.mrf.mxu0
  %575 = vdwg.mxu0
  %v576 = vld [vmem:[%s16] sm:$0x1]
  %v577 = vld [vmem:[%s17] sm:$0x1]
  %v578 = vsel %vm96, %v568, 0.0
  %579 = vadd.xlane.f32.xlu0 %v578
  %v580 = vpop.xlane.xlu0 %579
  %v581 = vsel %vm96, %v573, 0.0
  %582 = vadd.xlane.f32.xlu0 %v581
  %v583 = vpop.xlane.xlu0 %582
  %v584 = vmul.f32 %v580, %v103
  %v585 = vmul.f32 %v583, %v103
  %v586 = vsub.f32 %v568, %v584
  %v587 = vsub.f32 %v573, %v585
  %v588 = vmul.f32 %v586, %v586
  %v589 = vmul.f32 %v587, %v587
  %v590 = vsel %vm96, %v588, 0.0
  %591 = vadd.xlane.f32.xlu0 %v590
  %v592 = vpop.xlane.xlu0 %591
  %v593 = vsel %vm96, %v589, 0.0
  %594 = vadd.xlane.f32.xlu0 %v593
  %v595 = vpop.xlane.xlu0 %594
  %v596 = vmul.f32 %v592, %v103
  %v597 = vmul.f32 %v595, %v103
  %v598 = vadd.f32 %v596, 1e-05
  %v599 = vadd.f32 %v597, 1e-05
  %v600 = vrsqrt.pop %v598
  %v601 = vrsqrt.pop %v599
  %v602 = vmul.f32 %v586, %v600
  %v603 = vmul.f32 %v587, %v601
  %v605 = vlaneseq
  %v606 = vshrl.u32 %v605, 7
  %v607 = vsub.s32 0, %v606
  %v608 = vrot.slane %v576, %v607
  %v610 = vmul.f32 %v602, %v608
  %v611 = vmul.f32 %v603, %v608
  %v613 = vlaneseq
  %v614 = vshrl.u32 %v613, 7
  %v615 = vsub.s32 0, %v614
  %v616 = vrot.slane %v577, %v615
  %v618 = vadd.f32 %v610, %v616
  %v619 = vadd.f32 %v611, %v616
  %v620 = vmul.f32 %v618, 0.5
  %v621 = vmul.f32 %v619, 0.5
  %v622 = vmul.f32 %v618, 0.044715
  %v623 = vmul.f32 %v619, 0.044715
  %v624 = vmul.f32 %v622, %v618
  %v625 = vmul.f32 %v623, %v619
  %v626 = vmul.f32 %v624, %v618
  %v627 = vmul.f32 %v625, %v619
  %v628 = vadd.f32 %v618, %v626
  %v629 = vadd.f32 %v619, %v627
  %v630 = vmul.f32 %v628, 0.7978846
  %v631 = vmul.f32 %v629, 0.7978846
  %v632 = vtanh.pop %v630
  %v633 = vtanh.pop %v631
  %v634 = vadd.f32 %v632, 1.0
  %v635 = vadd.f32 %v633, 1.0
  %v636 = vmul.f32 %v620, %v634
  %v637 = vmul.f32 %v621, %v635
  %v638 = vld [vmem:[%s18] sm:$0xff]
  %v639 = vld [vmem:[%s18 + $0x8] sm:$0xff]
  %v640 = vld [vmem:[%s18 + $0x10] sm:$0xff]
  %v641 = vld [vmem:[%s18 + $0x18] sm:$0xff]
  %v642 = vld [vmem:[%s19] sm:$0x1]
  %v644 = vlaneseq
  %v645 = vshrl.u32 %v644, 7
  %v646 = vsub.s32 0, %v645
  %v647 = vrot.slane %v642, %v646
  %v650 = vsel %vm96, %v636, 0
  %v653 = vsel %vm96, %v637, 0
  %655 = vmatprep.subr.mxu0 0.0
  %656 = vmatpush1.msra.mxu0 0.0
  %657 = vmatprep.subr.mxu0 0.0
  %658 = vmatpush1.msra.mxu0 0.0
  %659 = vmatprep.subr.mxu0 0.0
  %660 = vmatpush1.msra.mxu0 0.0
  %661 = vmatprep.subr.mxu0 0.0
  %662 = vmatpush1.msra.mxu0 0.0
  %663 = vmatprep.subr.mxu0 0.0
  %664 = vmatpush1.msra.mxu0 0.0
  %665 = vmatprep.subr.mxu0 0.0
  %666 = vmatpush1.msra.mxu0 0.0
  %667 = vmatprep.subr.mxu0 0.0
  %668 = vmatpush1.msra.mxu0 0.0
  %669 = vmatprep.subr.mxu0 0.0
  %670 = vmatpush1.msra.mxu0 0.0
  %671 = vmatprep.subr.mxu0 0.0
  %672 = vmatpush1.msra.mxu0 0.0
  %673 = vmatprep.subr.mxu0 0.0
  %674 = vmatpush1.msra.mxu0 0.0
  %675 = vmatprep.subr.mxu0 0.0
  %676 = vmatpush1.msra.mxu0 0.0
  %677 = vmatprep.subr.mxu0 0.0
  %678 = vmatpush1.msra.mxu0 0.0
  %679 = vmatprep.subr.mxu0 0.0
  %680 = vmatpush1.msra.mxu0 %v641
  %681 = vmatprep.subr.mxu0 0.0
  %682 = vmatpush1.msra.mxu0 %v640
  %683 = vmatprep.subr.mxu0 0.0
  %684 = vmatpush1.msra.mxu0 %v639
  %685 = vmatprep.subr.mxu0 0.0
  %686 = vmatpush1.msra.mxu0 %v638
  %687 = vmatprep.subr.mxu0 0.0
  %688 = vmatpush2.msra.mxu0 0.0
  %689 = vmatprep.subr.mxu0 0.0
  %690 = vmatpush2.msra.mxu0 0.0
  %691 = vmatprep.subr.mxu0 0.0
  %692 = vmatpush2.msra.mxu0 0.0
  %693 = vmatprep.subr.mxu0 0.0
  %694 = vmatpush2.msra.mxu0 0.0
  %695 = vmatprep.subr.mxu0 0.0
  %696 = vmatpush2.msra.mxu0 0.0
  %697 = vmatprep.subr.mxu0 0.0
  %698 = vmatpush2.msra.mxu0 0.0
  %699 = vmatprep.subr.mxu0 0.0
  %700 = vmatpush2.msra.mxu0 0.0
  %701 = vmatprep.subr.mxu0 0.0
  %702 = vmatpush2.msra.mxu0 0.0
  %703 = vmatprep.subr.mxu0 0.0
  %704 = vmatpush2.msra.mxu0 0.0
  %705 = vmatprep.subr.mxu0 0.0
  %706 = vmatpush2.msra.mxu0 0.0
  %707 = vmatprep.subr.mxu0 0.0
  %708 = vmatpush2.msra.mxu0 0.0
  %709 = vmatprep.subr.mxu0 0.0
  %710 = vmatpush2.msra.mxu0 0.0
  %711 = vmatprep.subr.mxu0 0.0
  %712 = vmatpush2.msra.mxu0 0.0
  %713 = vmatprep.subr.mxu0 0.0
  %714 = vmatpush2.msra.mxu0 0.0
  %715 = vmatprep.subr.mxu0 0.0
  %716 = vmatpush2.msra.mxu0 0.0
  %717 = vmatprep.subr.mxu0 0.0
  %718 = vmatpush2.msra.mxu0 0.0
  %719 = vmatprep.mubr.f32.mxu0 0.0
  %720 = vmatmul.mubr.f32.gmra.mxu0 %v650
  %v721 = vpop.f32.mrf.mxu0
  %v722 = vadd.f32 %v647, %v721
  %v723 = vpop.f32.mrf.mxu0
  %724 = vmatprep.mubr.f32.mxu0 0.0
  %725 = vmatmul.mubr.f32.gmra.mxu0 %v653
  %v726 = vpop.f32.mrf.mxu0
  %v727 = vadd.f32 %v647, %v726
  %v728 = vpop.f32.mrf.mxu0
  %729 = vdwg.mxu0
  %vm730 = vcmask 64512
  %731 = vst.msk [vmem:[%s21] sm:$0xff] %vm730, %v396
  %732 = vst.msk [vmem:[%s21 + $0x8] sm:$0xff] %vm730, %v401
  %733 = vxpose.xlu0.b32.start [1/16] %v396, 128
  %734 = vxpose.xlu0.b32.cont [2/16] %v401, 128
  %735 = vxpose.xlu0.b32.cont [3/16] 0.0, 128
  %736 = vxpose.xlu0.b32.cont [4/16] 0.0, 128
  %737 = vxpose.xlu0.b32.cont [5/16] 0.0, 128
  %738 = vxpose.xlu0.b32.cont [6/16] 0.0, 128
  %739 = vxpose.xlu0.b32.cont [7/16] 0.0, 128
  %740 = vxpose.xlu0.b32.cont [8/16] 0.0, 128
  %741 = vxpose.xlu0.b32.cont [9/16] 0.0, 128
  %742 = vxpose.xlu0.b32.cont [10/16] 0.0, 128
  %743 = vxpose.xlu0.b32.cont [11/16] 0.0, 128
  %744 = vxpose.xlu0.b32.cont [12/16] 0.0, 128
  %745 = vxpose.xlu0.b32.cont [13/16] 0.0, 128
  %746 = vxpose.xlu0.b32.cont [14/16] 0.0, 128
  %747 = vxpose.xlu0.b32.cont [15/16] 0.0, 128
  %748 = vxpose.xlu0.b32.end [16/16] 0.0, 128
  %v749 = vpop.trf.xlu0
  %v750 = vpop.trf.xlu0
  %v751 = vpop.trf.xlu0
  %v752 = vpop.trf.xlu0
  %v753 = vpop.trf.xlu0
  %v754 = vpop.trf.xlu0
  %v755 = vpop.trf.xlu0
  %v756 = vpop.trf.xlu0
  %v757 = vpop.trf.xlu0
  %v758 = vpop.trf.xlu0
  %v759 = vpop.trf.xlu0
  %v760 = vpop.trf.xlu0
  %v761 = vpop.trf.xlu0
  %v762 = vpop.trf.xlu0
  %v763 = vpop.trf.xlu0
  %v764 = vpop.trf.xlu0
  %vm765 = vcmask 130048
  %766 = vst.msk [vmem:[%s20] sm:$0xff] %vm765, %v749
  %767 = vst.msk [vmem:[%s22] sm:$0xff] %vm730, %v722
  %768 = vst.msk [vmem:[%s22 + $0x8] sm:$0xff] %vm730, %v727
  %769 = vxpose.xlu0.b32.start [1/16] %v722, 128
  %770 = vxpose.xlu0.b32.cont [2/16] %v727, 128
  %771 = vxpose.xlu0.b32.cont [3/16] 0.0, 128
  %772 = vxpose.xlu0.b32.cont [4/16] 0.0, 128
  %773 = vxpose.xlu0.b32.cont [5/16] 0.0, 128
  %774 = vxpose.xlu0.b32.cont [6/16] 0.0, 128
  %775 = vxpose.xlu0.b32.cont [7/16] 0.0, 128
  %776 = vxpose.xlu0.b32.cont [8/16] 0.0, 128
  %777 = vxpose.xlu0.b32.cont [9/16] 0.0, 128
  %778 = vxpose.xlu0.b32.cont [10/16] 0.0, 128
  %779 = vxpose.xlu0.b32.cont [11/16] 0.0, 128
  %780 = vxpose.xlu0.b32.cont [12/16] 0.0, 128
  %781 = vxpose.xlu0.b32.cont [13/16] 0.0, 128
  %782 = vxpose.xlu0.b32.cont [14/16] 0.0, 128
  %783 = vxpose.xlu0.b32.cont [15/16] 0.0, 128
  %784 = vxpose.xlu0.b32.end [16/16] 0.0, 128
  %v785 = vpop.trf.xlu0
  %v786 = vpop.trf.xlu0
  %v787 = vpop.trf.xlu0
  %v788 = vpop.trf.xlu0
  %v789 = vpop.trf.xlu0
  %v790 = vpop.trf.xlu0
  %v791 = vpop.trf.xlu0
  %v792 = vpop.trf.xlu0
  %v793 = vpop.trf.xlu0
  %v794 = vpop.trf.xlu0
  %v795 = vpop.trf.xlu0
  %v796 = vpop.trf.xlu0
  %v797 = vpop.trf.xlu0
  %v798 = vpop.trf.xlu0
  %v799 = vpop.trf.xlu0
  %v800 = vpop.trf.xlu0
  %803 = vrot.lane.b32.xlu0 %v722, 124
  %v804 = vpop.permute.xlu0 %803
  %805 = vrot.lane.b32.xlu0 %v727, 124
  %v806 = vpop.permute.xlu0 %805
  %809 = vxpose.xlu0.b32.start [1/16] %v804, 128
  %810 = vxpose.xlu0.b32.cont [2/16] %v806, 128
  %811 = vxpose.xlu0.b32.cont [3/16] 0.0, 128
  %812 = vxpose.xlu0.b32.cont [4/16] 0.0, 128
  %813 = vxpose.xlu0.b32.cont [5/16] 0.0, 128
  %814 = vxpose.xlu0.b32.cont [6/16] 0.0, 128
  %815 = vxpose.xlu0.b32.cont [7/16] 0.0, 128
  %816 = vxpose.xlu0.b32.cont [8/16] 0.0, 128
  %817 = vxpose.xlu0.b32.cont [9/16] 0.0, 128
  %818 = vxpose.xlu0.b32.cont [10/16] 0.0, 128
  %819 = vxpose.xlu0.b32.cont [11/16] 0.0, 128
  %820 = vxpose.xlu0.b32.cont [12/16] 0.0, 128
  %821 = vxpose.xlu0.b32.cont [13/16] 0.0, 128
  %822 = vxpose.xlu0.b32.cont [14/16] 0.0, 128
  %823 = vxpose.xlu0.b32.cont [15/16] 0.0, 128
  %824 = vxpose.xlu0.b32.end [16/16] 0.0, 128
  %v825 = vpop.trf.xlu0
  %v826 = vpop.trf.xlu0
  %v827 = vpop.trf.xlu0
  %v828 = vpop.trf.xlu0
  %v829 = vpop.trf.xlu0
  %v830 = vpop.trf.xlu0
  %v831 = vpop.trf.xlu0
  %v832 = vpop.trf.xlu0
  %v833 = vpop.trf.xlu0
  %v834 = vpop.trf.xlu0
  %v835 = vpop.trf.xlu0
  %v836 = vpop.trf.xlu0
  %v837 = vpop.trf.xlu0
  %v838 = vpop.trf.xlu0
  %v839 = vpop.trf.xlu0
  %v840 = vpop.trf.xlu0
  %v841 = vsub.f32 0.0, %v825
  %843 = vrot.lane.b32.xlu0 %v841, 16
  %v844 = vpop.permute.xlu0 %843
  %v846 = vsel %vm765, %v785, %v844
  %848 = vrot.lane.b32.xlu0 %v785, 16
  %v849 = vpop.permute.xlu0 %848
  %v851 = vsel %vm765, %v825, %v849
  %v853 = vrot.slane %v851, 4
  %vm855 = vcmask 1043456
  %v856 = vsel %vm855, %v846, %v853
  %857 = vst.msk [vmem:[%s23] sm:$0xff] %vm96, %v856
  // Predicated region
  $region82: #{lit_block_forward.2} parent=0 // pred_check
    _
  $region83: #{lit_block_forward.2} parent=0 // pred_check_branch
    %859 = sbr.rel (0) target = $region85
  $region84: #{lit_block_forward.2} parent=0 // pred_region
    _
  $region85: #{lit_block_forward.2} parent=0 // pred_fallthru
    _
  // Predicated region
  $region86: #{lit_block_forward.2} parent=0 // pred_check
    _
  $region87: #{lit_block_forward.2} parent=0 // pred_check_branch
    %861 = sbr.rel (0) target = $region89
  $region88: #{lit_block_forward.2} parent=0 // pred_region
    _
  $region89: #{lit_block_forward.2} parent=0 // pred_fallthru
    _
  // Predicated region
  $region90: #{lit_block_forward.2} parent=0 // pred_check
    _
  $region91: #{lit_block_forward.2} parent=0 // pred_check_branch
    %863 = sbr.rel (0) target = $region93
  $region92: #{lit_block_forward.2} parent=0 // pred_region
    _
  $region93: #{lit_block_forward.2} parent=0 // pred_fallthru
    _
  // Predicated region
  $region94: #{lit_block_forward.2} parent=0 // pred_check
    _
  $region95: #{lit_block_forward.2} parent=0 // pred_check_branch
    %865 = sbr.rel (0) target = $region97
  $region96: #{lit_block_forward.2} parent=0 // pred_region
    _
  $region97: #{lit_block_forward.2} parent=0 // pred_fallthru
    _
  // Predicated region
  $region98: #{lit_block_forward.2} parent=0 // pred_check
    _
  $region99: #{lit_block_forward.2} parent=0 // pred_check_branch
    %867 = sbr.rel (0) target = $region101
  $region100: #{lit_block_forward.2} parent=0 // pred_region
    _
  $region101: #{lit_block_forward.2} parent=0 // pred_fallthru
    _
  // Predicated region
  $region102: #{lit_block_forward.2} parent=0 // pred_check
    _
  $region103: #{lit_block_forward.2} parent=0 // pred_check_branch
    %869 = sbr.rel (0) target = $region105
  $region104: #{lit_block_forward.2} parent=0 // pred_region
    _
  $region105: #{lit_block_forward.2} parent=0 // pred_fallthru
    _
  // Predicated region
  $region106: #{lit_block_forward.2} parent=0 // pred_check
    _
  $region107: #{lit_block_forward.2} parent=0 // pred_check_branch
    %871 = sbr.rel (0) target = $region109
  $region108: #{lit_block_forward.2} parent=0 // pred_region
    _
  $region109: #{lit_block_forward.2} parent=0 // pred_fallthru
    _
  // Predicated region
  $region110: #{lit_block_forward.2} parent=0 // pred_check
    _
  $region111: #{lit_block_forward.2} parent=0 // pred_check_branch
    %873 = sbr.rel (0) target = $region113
  $region112: #{lit_block_forward.2} parent=0 // pred_region
    _
  $region113: #{lit_block_forward.2} parent=0 // pred_fallthru
    _

// kernel: lit_block_forward.3
$region0: #{lit_block_forward.3}
  #allocation0 [shape = 'u32[]', space=smem, size = 0x4, offset = 0x4, fixed_abs, tag = 'smem constant byte address 0x4 - core index']
  #allocation1 [shape = 'u32[144,128]{1,0:T(1,128)}', space=vmem, size = 0x12000, scoped, tag = 'internal scratch']
  %s0 = inlined_call_operand.vmem [shape: f32[2,64,16], index: 0, kind: input, shape index: {}]
  %s1 = inlined_call_operand.vmem [shape: f32[2,4,256], index: 1, kind: input, shape index: {}]
  %s2 = inlined_call_operand.vmem [shape: f32[8,16], index: 2, kind: input, shape index: {}]
  %s3 = inlined_call_operand.vmem [shape: f32[16,8], index: 3, kind: input, shape index: {}]
  %s4 = inlined_call_operand.vmem [shape: f32[16,8], index: 4, kind: input, shape index: {}]
  %s5 = inlined_call_operand.vmem [shape: f32[8,32], index: 5, kind: input, shape index: {}]
  %s6 = inlined_call_operand.vmem [shape: f32[4,4,4,4], index: 6, kind: input, shape index: {}]
  %s7 = inlined_call_operand.vmem [shape: f32[4,4,4,4], index: 7, kind: input, shape index: {}]
  %s8 = inlined_call_operand.vmem [shape: f32[4,4], index: 8, kind: input, shape index: {}]
  %s9 = inlined_call_operand.vmem [shape: f32[4,1], index: 9, kind: input, shape index: {}]
  %s10 = inlined_call_operand.vmem [shape: f32[4,1], index: 10, kind: input, shape index: {}]
  %s11 = inlined_call_operand.vmem [shape: f32[4,1], index: 11, kind: input, shape index: {}]
  %s12 = inlined_call_operand.vmem [shape: f32[4,4], index: 12, kind: input, shape index: {}]
  %s13 = inlined_call_operand.vmem [shape: f32[4,1], index: 13, kind: input, shape index: {}]
  %s14 = inlined_call_operand.vmem [shape: f32[2,4,256], index: 14, kind: output, shape index: {}]
  %s15 = sld [smem:[#allocation0]]
  $region89: #{lit_block_forward.3} parent=0
    _
  %s17 = ssub.s32 1, %s15
  %s18 = scalar_select 0, %s17, %s15
  loop: start=0, step=1, limit=4
  $region2: #{lit_block_forward.3} parent=0 // loop_pre_header
    _
  $region3: #{lit_block_forward.3} parent=0 // loop_header
    %s20 = sphi 0, %s24
    %p21 = scmp.ge.s32.totalorder %s20, 4
    %s30 = sphi 0, %s32
    %s33 = sphi 0, %s30
    %s34 = sphi 0, %s33
    %s50 = sphi 0, %s34
    %s56 = sphi 0, %s58
    %s59 = sphi 0, %s56
    %s60 = sphi 0, %s59
    %s76 = sphi 0, %s60
    %s80 = sphi 0, %s80
    %s82 = sphi 0, %s80
    %s83 = sphi 0, %s82
    %s97 = sphi 0, %s83
    %s101 = sphi 0, %s101
    %s103 = sphi 0, %s101
    %s104 = sphi 0, %s103
    %s118 = sphi 0, %s104
    %s122 = sphi 0, %s122
    %s124 = sphi 0, %s122
    %s125 = sphi 0, %s124
    %s139 = sphi 0, %s125
    %s143 = sphi 0, %s143
    %s145 = sphi 0, %s143
    %s146 = sphi 0, %s145
    %s160 = sphi 0, %s146
    %s164 = sphi 0, %s164
    %s166 = sphi 0, %s164
    %s167 = sphi 0, %s166
    %s181 = sphi 0, %s167
    %s185 = sphi 0, %s185
    %s187 = sphi 0, %s185
    %s188 = sphi 0, %s187
    %s202 = sphi 0, %s188
    %s206 = sphi 0, %s206
    %s208 = sphi 0, %s206
    %s209 = sphi 0, %s208
    %s223 = sphi 0, %s209
    %s227 = sphi 0, %s227
    %s229 = sphi 0, %s227
    %s230 = sphi 0, %s229
    %s244 = sphi 0, %s230
    %s248 = sphi 0, %s248
    %s250 = sphi 0, %s248
    %s251 = sphi 0, %s250
    %s265 = sphi 0, %s251
    %s269 = sphi 0, %s269
    %s271 = sphi 0, %s269
    %s272 = sphi 0, %s271
    %s286 = sphi 0, %s272
    %s290 = sphi 0, %s290
    %s292 = sphi 0, %s290
    %s293 = sphi 0, %s292
    %s307 = sphi 0, %s293
    %s311 = sphi 0, %s311
    %s313 = sphi 0, %s311
    %s314 = sphi 0, %s313
    %s328 = sphi 0, %s314
    %s334 = sphi 0, %s336
    %s337 = sphi 0, %s334
    %s338 = sphi 0, %s337
    %s354 = sphi 0, %s338
  $region4: #{lit_block_forward.3} parent=0 // loop_header_branch
    %23 = sbr.rel (%p21) target = $region8
  $region5: #{lit_block_forward.3} parent=0 // loop_body
    %s25 = ssub.s32 %s20, 1
    %s26 = ssub.s32 %s20, 2
    %s27 = sadd.s32 %s20, 1
    %s28 = ssub.s32 %s20, %s27
    %p29 = scmp.eq.s32.totalorder %s28, 0
    %s31 = sadd.s32 %s30, 1
    %s32 = scalar_select %p29, %s30, %s31
    %p35 = pneg %p29
    %p36 = scmp.eq.s32.totalorder %s20, 1
    %p37 = por %p35, %p36
    %p38 = scmp.ne.s32.totalorder %s30, %s33
    %p39 = scmp.eq.s32.totalorder %s20, 0
    %p40 = por %p38, %p39
    %p41 = scmp.ne.s32.totalorder %s30, %s33
    %p42 = scmp.eq.s32.totalorder %s25, 1
    %p43 = por %p41, %p42
    %p44 = scmp.ne.s32.totalorder %s33, %s34
    %p45 = scmp.eq.s32.totalorder %s25, 0
    %p46 = por %p44, %p45
    %p47 = scmp.ne.s32.totalorder %s33, %s34
    %p48 = scmp.eq.s32.totalorder %s26, 1
    %p49 = por %p47, %p48
    %p51 = scmp.ne.s32.totalorder %s34, %s50
    %p52 = scmp.eq.s32.totalorder %s26, 0
    %p53 = por %p51, %p52
    %s54 = ssub.s32 %s20, %s27
    %p55 = scmp.eq.s32.totalorder %s54, 0
    %s57 = sadd.s32 %s56, 1
    %s58 = scalar_select %p55, %s56, %s57
    %p61 = pneg %p55
    %p62 = scmp.eq.s32.totalorder %s20, 1
    %p63 = por %p61, %p62
    %p64 = scmp.ne.s32.totalorder %s56, %s59
    %p65 = scmp.eq.s32.totalorder %s20, 0
    %p66 = por %p64, %p65
    %p67 = scmp.ne.s32.totalorder %s56, %s59
    %p68 = scmp.eq.s32.totalorder %s25, 1
    %p69 = por %p67, %p68
    %p70 = scmp.ne.s32.totalorder %s59, %s60
    %p71 = scmp.eq.s32.totalorder %s25, 0
    %p72 = por %p70, %p71
    %p73 = scmp.ne.s32.totalorder %s59, %s60
    %p74 = scmp.eq.s32.totalorder %s26, 1
    %p75 = por %p73, %p74
    %p77 = scmp.ne.s32.totalorder %s60, %s76
    %p78 = scmp.eq.s32.totalorder %s26, 0
    %p79 = por %p77, %p78
    %s81 = sadd.s32 %s80, 1
    %p84 = scmp.eq.s32.totalorder %s20, 1
    %p85 = scmp.ne.s32.totalorder %s80, %s82
    %p86 = scmp.eq.s32.totalorder %s20, 0
    %p87 = por %p85, %p86
    %p88 = scmp.ne.s32.totalorder %s80, %s82
    %p89 = scmp.eq.s32.totalorder %s25, 1
    %p90 = por %p88, %p89
    %p91 = scmp.ne.s32.totalorder %s82, %s83
    %p92 = scmp.eq.s32.totalorder %s25, 0
    %p93 = por %p91, %p92
    %p94 = scmp.ne.s32.totalorder %s82, %s83
    %p95 = scmp.eq.s32.totalorder %s26, 1
    %p96 = por %p94, %p95
    %p98 = scmp.ne.s32.totalorder %s83, %s97
    %p99 = scmp.eq.s32.totalorder %s26, 0
    %p100 = por %p98, %p99
    %s102 = sadd.s32 %s101, 1
    %p105 = scmp.eq.s32.totalorder %s20, 1
    %p106 = scmp.ne.s32.totalorder %s101, %s103
    %p107 = scmp.eq.s32.totalorder %s20, 0
    %p108 = por %p106, %p107
    %p109 = scmp.ne.s32.totalorder %s101, %s103
    %p110 = scmp.eq.s32.totalorder %s25, 1
    %p111 = por %p109, %p110
    %p112 = scmp.ne.s32.totalorder %s103, %s104
    %p113 = scmp.eq.s32.totalorder %s25, 0
    %p114 = por %p112, %p113
    %p115 = scmp.ne.s32.totalorder %s103, %s104
    %p116 = scmp.eq.s32.totalorder %s26, 1
    %p117 = por %p115, %p116
    %p119 = scmp.ne.s32.totalorder %s104, %s118
    %p120 = scmp.eq.s32.totalorder %s26, 0
    %p121 = por %p119, %p120
    %s123 = sadd.s32 %s122, 1
    %p126 = scmp.eq.s32.totalorder %s20, 1
    %p127 = scmp.ne.s32.totalorder %s122, %s124
    %p128 = scmp.eq.s32.totalorder %s20, 0
    %p129 = por %p127, %p128
    %p130 = scmp.ne.s32.totalorder %s122, %s124
    %p131 = scmp.eq.s32.totalorder %s25, 1
    %p132 = por %p130, %p131
    %p133 = scmp.ne.s32.totalorder %s124, %s125
    %p134 = scmp.eq.s32.totalorder %s25, 0
    %p135 = por %p133, %p134
    %p136 = scmp.ne.s32.totalorder %s124, %s125
    %p137 = scmp.eq.s32.totalorder %s26, 1
    %p138 = por %p136, %p137
    %p140 = scmp.ne.s32.totalorder %s125, %s139
    %p141 = scmp.eq.s32.totalorder %s26, 0
    %p142 = por %p140, %p141
    %s144 = sadd.s32 %s143, 1
    %p147 = scmp.eq.s32.totalorder %s20, 1
    %p148 = scmp.ne.s32.totalorder %s143, %s145
    %p149 = scmp.eq.s32.totalorder %s20, 0
    %p150 = por %p148, %p149
    %p151 = scmp.ne.s32.totalorder %s143, %s145
    %p152 = scmp.eq.s32.totalorder %s25, 1
    %p153 = por %p151, %p152
    %p154 = scmp.ne.s32.totalorder %s145, %s146
    %p155 = scmp.eq.s32.totalorder %s25, 0
    %p156 = por %p154, %p155
    %p157 = scmp.ne.s32.totalorder %s145, %s146
    %p158 = scmp.eq.s32.totalorder %s26, 1
    %p159 = por %p157, %p158
    %p161 = scmp.ne.s32.totalorder %s146, %s160
    %p162 = scmp.eq.s32.totalorder %s26, 0
    %p163 = por %p161, %p162
    %s165 = sadd.s32 %s164, 1
    %p168 = scmp.eq.s32.totalorder %s20, 1
    %p169 = scmp.ne.s32.totalorder %s164, %s166
    %p170 = scmp.eq.s32.totalorder %s20, 0
    %p171 = por %p169, %p170
    %p172 = scmp.ne.s32.totalorder %s164, %s166
    %p173 = scmp.eq.s32.totalorder %s25, 1
    %p174 = por %p172, %p173
    %p175 = scmp.ne.s32.totalorder %s166, %s167
    %p176 = scmp.eq.s32.totalorder %s25, 0
    %p177 = por %p175, %p176
    %p178 = scmp.ne.s32.totalorder %s166, %s167
    %p179 = scmp.eq.s32.totalorder %s26, 1
    %p180 = por %p178, %p179
    %p182 = scmp.ne.s32.totalorder %s167, %s181
    %p183 = scmp.eq.s32.totalorder %s26, 0
    %p184 = por %p182, %p183
    %s186 = sadd.s32 %s185, 1
    %p189 = scmp.eq.s32.totalorder %s20, 1
    %p190 = scmp.ne.s32.totalorder %s185, %s187
    %p191 = scmp.eq.s32.totalorder %s20, 0
    %p192 = por %p190, %p191
    %p193 = scmp.ne.s32.totalorder %s185, %s187
    %p194 = scmp.eq.s32.totalorder %s25, 1
    %p195 = por %p193, %p194
    %p196 = scmp.ne.s32.totalorder %s187, %s188
    %p197 = scmp.eq.s32.totalorder %s25, 0
    %p198 = por %p196, %p197
    %p199 = scmp.ne.s32.totalorder %s187, %s188
    %p200 = scmp.eq.s32.totalorder %s26, 1
    %p201 = por %p199, %p200
    %p203 = scmp.ne.s32.totalorder %s188, %s202
    %p204 = scmp.eq.s32.totalorder %s26, 0
    %p205 = por %p203, %p204
    %s207 = sadd.s32 %s206, 1
    %p210 = scmp.eq.s32.totalorder %s20, 1
    %p211 = scmp.ne.s32.totalorder %s206, %s208
    %p212 = scmp.eq.s32.totalorder %s20, 0
    %p213 = por %p211, %p212
    %p214 = scmp.ne.s32.totalorder %s206, %s208
    %p215 = scmp.eq.s32.totalorder %s25, 1
    %p216 = por %p214, %p215
    %p217 = scmp.ne.s32.totalorder %s208, %s209
    %p218 = scmp.eq.s32.totalorder %s25, 0
    %p219 = por %p217, %p218
    %p220 = scmp.ne.s32.totalorder %s208, %s209
    %p221 = scmp.eq.s32.totalorder %s26, 1
    %p222 = por %p220, %p221
    %p224 = scmp.ne.s32.totalorder %s209, %s223
    %p225 = scmp.eq.s32.totalorder %s26, 0
    %p226 = por %p224, %p225
    %s228 = sadd.s32 %s227, 1
    %p231 = scmp.eq.s32.totalorder %s20, 1
    %p232 = scmp.ne.s32.totalorder %s227, %s229
    %p233 = scmp.eq.s32.totalorder %s20, 0
    %p234 = por %p232, %p233
    %p235 = scmp.ne.s32.totalorder %s227, %s229
    %p236 = scmp.eq.s32.totalorder %s25, 1
    %p237 = por %p235, %p236
    %p238 = scmp.ne.s32.totalorder %s229, %s230
    %p239 = scmp.eq.s32.totalorder %s25, 0
    %p240 = por %p238, %p239
    %p241 = scmp.ne.s32.totalorder %s229, %s230
    %p242 = scmp.eq.s32.totalorder %s26, 1
    %p243 = por %p241, %p242
    %p245 = scmp.ne.s32.totalorder %s230, %s244
    %p246 = scmp.eq.s32.totalorder %s26, 0
    %p247 = por %p245, %p246
    %s249 = sadd.s32 %s248, 1
    %p252 = scmp.eq.s32.totalorder %s20, 1
    %p253 = scmp.ne.s32.totalorder %s248, %s250
    %p254 = scmp.eq.s32.totalorder %s20, 0
    %p255 = por %p253, %p254
    %p256 = scmp.ne.s32.totalorder %s248, %s250
    %p257 = scmp.eq.s32.totalorder %s25, 1
    %p258 = por %p256, %p257
    %p259 = scmp.ne.s32.totalorder %s250, %s251
    %p260 = scmp.eq.s32.totalorder %s25, 0
    %p261 = por %p259, %p260
    %p262 = scmp.ne.s32.totalorder %s250, %s251
    %p263 = scmp.eq.s32.totalorder %s26, 1
    %p264 = por %p262, %p263
    %p266 = scmp.ne.s32.totalorder %s251, %s265
    %p267 = scmp.eq.s32.totalorder %s26, 0
    %p268 = por %p266, %p267
    %s270 = sadd.s32 %s269, 1
    %p273 = scmp.eq.s32.totalorder %s20, 1
    %p274 = scmp.ne.s32.totalorder %s269, %s271
    %p275 = scmp.eq.s32.totalorder %s20, 0
    %p276 = por %p274, %p275
    %p277 = scmp.ne.s32.totalorder %s269, %s271
    %p278 = scmp.eq.s32.totalorder %s25, 1
    %p279 = por %p277, %p278
    %p280 = scmp.ne.s32.totalorder %s271, %s272
    %p281 = scmp.eq.s32.totalorder %s25, 0
    %p282 = por %p280, %p281
    %p283 = scmp.ne.s32.totalorder %s271, %s272
    %p284 = scmp.eq.s32.totalorder %s26, 1
    %p285 = por %p283, %p284
    %p287 = scmp.ne.s32.totalorder %s272, %s286
    %p288 = scmp.eq.s32.totalorder %s26, 0
    %p289 = por %p287, %p288
    %s291 = sadd.s32 %s290, 1
    %p294 = scmp.eq.s32.totalorder %s20, 1
    %p295 = scmp.ne.s32.totalorder %s290, %s292
    %p296 = scmp.eq.s32.totalorder %s20, 0
    %p297 = por %p295, %p296
    %p298 = scmp.ne.s32.totalorder %s290, %s292
    %p299 = scmp.eq.s32.totalorder %s25, 1
    %p300 = por %p298, %p299
    %p301 = scmp.ne.s32.totalorder %s292, %s293
    %p302 = scmp.eq.s32.totalorder %s25, 0
    %p303 = por %p301, %p302
    %p304 = scmp.ne.s32.totalorder %s292, %s293
    %p305 = scmp.eq.s32.totalorder %s26, 1
    %p306 = por %p304, %p305
    %p308 = scmp.ne.s32.totalorder %s293, %s307
    %p309 = scmp.eq.s32.totalorder %s26, 0
    %p310 = por %p308, %p309
    %s312 = sadd.s32 %s311, 1
    %p315 = scmp.eq.s32.totalorder %s20, 1
    %p316 = scmp.ne.s32.totalorder %s311, %s313
    %p317 = scmp.eq.s32.totalorder %s20, 0
    %p318 = por %p316, %p317
    %p319 = scmp.ne.s32.totalorder %s311, %s313
    %p320 = scmp.eq.s32.totalorder %s25, 1
    %p321 = por %p319, %p320
    %p322 = scmp.ne.s32.totalorder %s313, %s314
    %p323 = scmp.eq.s32.totalorder %s25, 0
    %p324 = por %p322, %p323
    %p325 = scmp.ne.s32.totalorder %s313, %s314
    %p326 = scmp.eq.s32.totalorder %s26, 1
    %p327 = por %p325, %p326
    %p329 = scmp.ne.s32.totalorder %s314, %s328
    %p330 = scmp.eq.s32.totalorder %s26, 0
    %p331 = por %p329, %p330
    %s332 = ssub.s32 %s20, %s27
    %p333 = scmp.eq.s32.totalorder %s332, 0
    %s335 = sadd.s32 %s334, 1
    %s336 = scalar_select %p333, %s334, %s335
    %p339 = pneg %p333
    %p340 = scmp.eq.s32.totalorder %s20, 1
    %p341 = por %p339, %p340
    %p342 = scmp.ne.s32.totalorder %s334, %s337
    %p343 = scmp.eq.s32.totalorder %s20, 0
    %p344 = por %p342, %p343
    %p345 = scmp.ne.s32.totalorder %s334, %s337
    %p346 = scmp.eq.s32.totalorder %s25, 1
    %p347 = por %p345, %p346
    %p348 = scmp.ne.s32.totalorder %s337, %s338
    %p349 = scmp.eq.s32.totalorder %s25, 0
    %p350 = por %p348, %p349
    %p351 = scmp.ne.s32.totalorder %s337, %s338
    %p352 = scmp.eq.s32.totalorder %s26, 1
    %p353 = por %p351, %p352
    %p355 = scmp.ne.s32.totalorder %s338, %s354
    %p356 = scmp.eq.s32.totalorder %s26, 0
    %p357 = por %p355, %p356
    %p358 = scmp.le.s32.totalorder 1, %s20
    %p359 = scmp.lt.s32.totalorder %s20, 3
    %p360 = pnand %p358, %p359
    %p361 = pneg %p360
    // Predicated region
    $region9: #{lit_block_forward.3} parent=5 // pred_check
      _
    $region10: #{lit_block_forward.3} parent=5 // pred_check_branch
      %363 = sbr.rel (%p360) target = $region12
    $region11: #{lit_block_forward.3} parent=5 // pred_region
      %s364 = ssub.s32 %s20, 1
      // Predicated region
      $region13: #{lit_block_forward.3} parent=11 // pred_check
        %p365 = pneg %p93
      $region14: #{lit_block_forward.3} parent=11 // pred_check_branch
        %367 = sbr.rel (%p365) target = $region16
      $region15: #{lit_block_forward.3} parent=11 // pred_region
        _
      $region16: #{lit_block_forward.3} parent=11 // pred_fallthru
        _
      // Predicated region
      $region17: #{lit_block_forward.3} parent=11 // pred_check
        %p368 = pneg %p114
      $region18: #{lit_block_forward.3} parent=11 // pred_check_branch
        %370 = sbr.rel (%p368) target = $region20
      $region19: #{lit_block_forward.3} parent=11 // pred_region
        _
      $region20: #{lit_block_forward.3} parent=11 // pred_fallthru
        _
      // Predicated region
      $region21: #{lit_block_forward.3} parent=11 // pred_check
        %p371 = pneg %p135
      $region22: #{lit_block_forward.3} parent=11 // pred_check_branch
        %373 = sbr.rel (%p371) target = $region24
      $region23: #{lit_block_forward.3} parent=11 // pred_region
        _
      $region24: #{lit_block_forward.3} parent=11 // pred_fallthru
        _
      // Predicated region
      $region25: #{lit_block_forward.3} parent=11 // pred_check
        %p374 = pneg %p156
      $region26: #{lit_block_forward.3} parent=11 // pred_check_branch
        %376 = sbr.rel (%p374) target = $region28
      $region27: #{lit_block_forward.3} parent=11 // pred_region
        _
      $region28: #{lit_block_forward.3} parent=11 // pred_fallthru
        _
      // Predicated region
      $region29: #{lit_block_forward.3} parent=11 // pred_check
        %p377 = pneg %p177
      $region30: #{lit_block_forward.3} parent=11 // pred_check_branch
        %379 = sbr.rel (%p377) target = $region32
      $region31: #{lit_block_forward.3} parent=11 // pred_region
        _
      $region32: #{lit_block_forward.3} parent=11 // pred_fallthru
        _
      // Predicated region
      $region33: #{lit_block_forward.3} parent=11 // pred_check
        %p380 = pneg %p198
      $region34: #{lit_block_forward.3} parent=11 // pred_check_branch
        %382 = sbr.rel (%p380) target = $region36
      $region35: #{lit_block_forward.3} parent=11 // pred_region
        _
      $region36: #{lit_block_forward.3} parent=11 // pred_fallthru
        _
      // Predicated region
      $region37: #{lit_block_forward.3} parent=11 // pred_check
        %p383 = pneg %p219
      $region38: #{lit_block_forward.3} parent=11 // pred_check_branch
        %385 = sbr.rel (%p383) target = $region40
      $region39: #{lit_block_forward.3} parent=11 // pred_region
        _
      $region40: #{lit_block_forward.3} parent=11 // pred_fallthru
        _
      // Predicated region
      $region41: #{lit_block_forward.3} parent=11 // pred_check
        %p386 = pneg %p240
      $region42: #{lit_block_forward.3} parent=11 // pred_check_branch
        %388 = sbr.rel (%p386) target = $region44
      $region43: #{lit_block_forward.3} parent=11 // pred_region
        _
      $region44: #{lit_block_forward.3} parent=11 // pred_fallthru
        _
      // Predicated region
      $region45: #{lit_block_forward.3} parent=11 // pred_check
        %p389 = pneg %p261
      $region46: #{lit_block_forward.3} parent=11 // pred_check_branch
        %391 = sbr.rel (%p389) target = $region48
      $region47: #{lit_block_forward.3} parent=11 // pred_region
        _
      $region48: #{lit_block_forward.3} parent=11 // pred_fallthru
        _
      // Predicated region
      $region49: #{lit_block_forward.3} parent=11 // pred_check
        %p392 = pneg %p282
      $region50: #{lit_block_forward.3} parent=11 // pred_check_branch
        %394 = sbr.rel (%p392) target = $region52
      $region51: #{lit_block_forward.3} parent=11 // pred_region
        _
      $region52: #{lit_block_forward.3} parent=11 // pred_fallthru
        _
      // Predicated region
      $region53: #{lit_block_forward.3} parent=11 // pred_check
        %p395 = pneg %p303
      $region54: #{lit_block_forward.3} parent=11 // pred_check_branch
        %397 = sbr.rel (%p395) target = $region56
      $region55: #{lit_block_forward.3} parent=11 // pred_region
        _
      $region56: #{lit_block_forward.3} parent=11 // pred_fallthru
        _
      // Predicated region
      $region57: #{lit_block_forward.3} parent=11 // pred_check
        %p398 = pneg %p324
      $region58: #{lit_block_forward.3} parent=11 // pred_check_branch
        %400 = sbr.rel (%p398) target = $region60
      $region59: #{lit_block_forward.3} parent=11 // pred_region
        _
      $region60: #{lit_block_forward.3} parent=11 // pred_fallthru
        _
    $region12: #{lit_block_forward.3} parent=5 // pred_fallthru
      _
    %p401 = scmp.lt.s32.totalorder %s20, 2
    // Predicated region
    $region61: #{lit_block_forward.3} parent=5 // pred_check
      %p402 = pneg %p401
    $region62: #{lit_block_forward.3} parent=5 // pred_check_branch
      %404 = sbr.rel (%p402) target = $region64
    $region63: #{lit_block_forward.3} parent=5 // pred_region
      // Predicated region
      $region65: #{lit_block_forward.3} parent=63 // pred_check
        %p405 = pneg %p40
      $region66: #{lit_block_forward.3} parent=63 // pred_check_branch
        %407 = sbr.rel (%p405) target = $region68
      $region67: #{lit_block_forward.3} parent=63 // pred_region
        %p408 = scmp.lt.s32.totalorder %s20, 1
        %s409 = scalar_select %p408, %s20, 1
        %s410 = smul.addr %s409, 8
        %s411 = smul.addr %s410, 8
        %s412 = scalar_lea.vmem %s0, %s411
      $region68: #{lit_block_forward.3} parent=63 // pred_fallthru
        _
      // Predicated region
      $region69: #{lit_block_forward.3} parent=63 // pred_check
        %p413 = pneg %p66
      $region70: #{lit_block_forward.3} parent=63 // pred_check_branch
        %415 = sbr.rel (%p413) target = $region72
      $region71: #{lit_block_forward.3} parent=63 // pred_region
        %p416 = scmp.lt.s32.totalorder %s20, 1
        %s417 = scalar_select %p416, %s20, 1
        %s418 = smul.addr %s417, 2
        %s419 = smul.addr %s418, 4
        %s420 = scalar_lea.vmem %s1, %s419
      $region72: #{lit_block_forward.3} parent=63 // pred_fallthru
        _
    $region64: #{lit_block_forward.3} parent=5 // pred_fallthru
      _
    %p421 = scmp.le.s32.totalorder 1, %s20
    %p422 = scmp.lt.s32.totalorder %s20, 3
    %p423 = pnand %p421, %p422
    %p424 = pneg %p423
    // Predicated region
    $region73: #{lit_block_forward.3} parent=5 // pred_check
      _
    $region74: #{lit_block_forward.3} parent=5 // pred_check_branch
      %426 = sbr.rel (%p423) target = $region76
    $region75: #{lit_block_forward.3} parent=5 // pred_region
      %s427 = ssub.s32 %s20, 1
      %p428 = scmp.lt.s32.totalorder %s25, 1
      %s429 = scalar_select %p428, %s25, 1
      %s430 = smul.addr %s429, 8
      %s431 = smul.addr %s430, 8
      %s432 = scalar_lea.vmem %s0, %s431
      %p433 = pneg %p46
      %p434 = pneg %p43
      %p435 = scmp.lt.s32.totalorder %s25, 1
      %s436 = scalar_select %p435, %s25, 1
      %s437 = smul.addr %s436, 2
      %s438 = smul.addr %s437, 4
      %s439 = scalar_lea.vmem %s1, %s438
      %p440 = pneg %p72
      %p441 = pneg %p69
      %p442 = pneg %p93
      %p443 = pneg %p90
      %p444 = pneg %p114
      %p445 = pneg %p111
      %p446 = pneg %p135
      %p447 = pneg %p132
      %p448 = pneg %p156
      %p449 = pneg %p153
      %p450 = pneg %p177
      %p451 = pneg %p174
      %p452 = pneg %p198
      %p453 = pneg %p195
      %p454 = pneg %p219
      %p455 = pneg %p216
      %p456 = pneg %p240
      %p457 = pneg %p237
      %p458 = pneg %p261
      %p459 = pneg %p258
      %p460 = pneg %p282
      %p461 = pneg %p279
      %p462 = pneg %p303
      %p463 = pneg %p300
      %p464 = pneg %p324
      %p465 = pneg %p321
      %p466 = pneg %p350
      %p467 = pneg %p347
      %p468 = scmp.lt.s32.totalorder %s25, 1
      %s469 = scalar_select %p468, %s25, 1
      %s470 = smul.addr %s469, 2
      %s471 = smul.addr %s470, 4
      %s472 = scalar_lea.vmem %s14, %s471
      %p473 = scmp.lt.s32.totalorder %s25, 1
      %s474 = scalar_select %p473, %s25, 1
      %s475 = smul.addr %s474, 8
      %s476 = smul.addr %s475, 8
      %s477 = scalar_lea.vmem %s0, %s476
      %p478 = scmp.lt.s32.totalorder %s25, 1
      %s479 = scalar_select %p478, %s25, 1
      %s480 = smul.addr %s479, 2
      %s481 = smul.addr %s480, 4
      %s482 = scalar_lea.vmem %s1, %s481
      %p483 = scmp.lt.s32.totalorder %s25, 1
      %s484 = scalar_select %p483, %s25, 1
      %s485 = smul.addr %s484, 2
      %s486 = smul.addr %s485, 4
      %s487 = scalar_lea.vmem %s14, %s486
      %v488 = vld [vmem:[%s477] sm:$0xff]
      %v489 = vld [vmem:[%s477 + $0x8] sm:$0xff]
      %v490 = vld [vmem:[%s477 + $0x10] sm:$0xff]
      %v491 = vld [vmem:[%s477 + $0x18] sm:$0xff]
      %v492 = vld [vmem:[%s477 + $0x20] sm:$0xff]
      %v493 = vld [vmem:[%s477 + $0x28] sm:$0xff]
      %v494 = vld [vmem:[%s477 + $0x30] sm:$0xff]
      %v495 = vld [vmem:[%s477 + $0x38] sm:$0xff]
      %v496 = vld [vmem:[%s4] sm:$0xff]
      %v497 = vld [vmem:[%s4 + $0x8] sm:$0xff]
      %vm498 = vcmask 130048
      %v500 = vsel %vm498, %v488, 0
      %v503 = vsel %vm498, %v489, 0
      %v506 = vsel %vm498, %v490, 0
      %v509 = vsel %vm498, %v491, 0
      %v512 = vsel %vm498, %v492, 0
      %v515 = vsel %vm498, %v493, 0
      %v518 = vsel %vm498, %v494, 0
      %v521 = vsel %vm498, %v495, 0
      %523 = vmatprep.subr.mxu0 0.0
      %524 = vmatpush1.msra.mxu0 0.0
      %525 = vmatprep.subr.mxu0 0.0
      %526 = vmatpush1.msra.mxu0 0.0
      %527 = vmatprep.subr.mxu0 0.0
      %528 = vmatpush1.msra.mxu0 0.0
      %529 = vmatprep.subr.mxu0 0.0
      %530 = vmatpush1.msra.mxu0 0.0
      %531 = vmatprep.subr.mxu0 0.0
      %532 = vmatpush1.msra.mxu0 0.0
      %533 = vmatprep.subr.mxu0 0.0
      %534 = vmatpush1.msra.mxu0 0.0
      %535 = vmatprep.subr.mxu0 0.0
      %536 = vmatpush1.msra.mxu0 0.0
      %537 = vmatprep.subr.mxu0 0.0
      %538 = vmatpush1.msra.mxu0 0.0
      %539 = vmatprep.subr.mxu0 0.0
      %540 = vmatpush1.msra.mxu0 0.0
      %541 = vmatprep.subr.mxu0 0.0
      %542 = vmatpush1.msra.mxu0 0.0
      %543 = vmatprep.subr.mxu0 0.0
      %544 = vmatpush1.msra.mxu0 0.0
      %545 = vmatprep.subr.mxu0 0.0
      %546 = vmatpush1.msra.mxu0 0.0
      %547 = vmatprep.subr.mxu0 0.0
      %548 = vmatpush1.msra.mxu0 0.0
      %549 = vmatprep.subr.mxu0 0.0
      %550 = vmatpush1.msra.mxu0 0.0
      %551 = vmatprep.subr.mxu0 0.0
      %552 = vmatpush1.msra.mxu0 %v497
      %553 = vmatprep.subr.mxu0 0.0
      %554 = vmatpush1.msra.mxu0 %v496
      %555 = vmatprep.subr.mxu0 0.0
      %556 = vmatpush2.msra.mxu0 0.0
      %557 = vmatprep.subr.mxu0 0.0
      %558 = vmatpush2.msra.mxu0 0.0
      %559 = vmatprep.subr.mxu0 0.0
      %560 = vmatpush2.msra.mxu0 0.0
      %561 = vmatprep.subr.mxu0 0.0
      %562 = vmatpush2.msra.mxu0 0.0
      %563 = vmatprep.subr.mxu0 0.0
      %564 = vmatpush2.msra.mxu0 0.0
      %565 = vmatprep.subr.mxu0 0.0
      %566 = vmatpush2.msra.mxu0 0.0
      %567 = vmatprep.subr.mxu0 0.0
      %568 = vmatpush2.msra.mxu0 0.0
      %569 = vmatprep.subr.mxu0 0.0
      %570 = vmatpush2.msra.mxu0 0.0
      %571 = vmatprep.subr.mxu0 0.0
      %572 = vmatpush2.msra.mxu0 0.0
      %573 = vmatprep.subr.mxu0 0.0
      %574 = vmatpush2.msra.mxu0 0.0
      %575 = vmatprep.subr.mxu0 0.0
      %576 = vmatpush2.msra.mxu0 0.0
      %577 = vmatprep.subr.mxu0 0.0
      %578 = vmatpush2.msra.mxu0 0.0
      %579 = vmatprep.subr.mxu0 0.0
      %580 = vmatpush2.msra.mxu0 0.0
      %581 = vmatprep.subr.mxu0 0.0
      %582 = vmatpush2.msra.mxu0 0.0
      %583 = vmatprep.subr.mxu0 0.0
      %584 = vmatpush2.msra.mxu0 0.0
      %585 = vmatprep.subr.mxu0 0.0
      %586 = vmatpush2.msra.mxu0 0.0
      %587 = vmatprep.mubr.f32.mxu0 0.0
      %588 = vmatmul.mubr.f32.gmra.mxu0 %v500
      %v589 = vpop.f32.mrf.mxu0
      %v590 = vadd.f32 0.0, %v589
      %v591 = vpop.f32.mrf.mxu0
      %592 = vmatprep.mubr.f32.mxu0 0.0
      %593 = vmatmul.mubr.f32.gmra.mxu0 %v503
      %v594 = vpop.f32.mrf.mxu0
      %v595 = vadd.f32 0.0, %v594
      %v596 = vpop.f32.mrf.mxu0
      %597 = vmatprep.mubr.f32.mxu0 0.0
      %598 = vmatmul.mubr.f32.gmra.mxu0 %v506
      %v599 = vpop.f32.mrf.mxu0
      %v600 = vadd.f32 0.0, %v599
      %v601 = vpop.f32.mrf.mxu0
      %602 = vmatprep.mubr.f32.mxu0 0.0
      %603 = vmatmul.mubr.f32.gmra.mxu0 %v509
      %v604 = vpop.f32.mrf.mxu0
      %v605 = vadd.f32 0.0, %v604
      %v606 = vpop.f32.mrf.mxu0
      %607 = vmatprep.mubr.f32.mxu0 0.0
      %608 = vmatmul.mubr.f32.gmra.mxu0 %v512
      %v609 = vpop.f32.mrf.mxu0
      %v610 = vadd.f32 0.0, %v609
      %v611 = vpop.f32.mrf.mxu0
      %612 = vmatprep.mubr.f32.mxu0 0.0
      %613 = vmatmul.mubr.f32.gmra.mxu0 %v515
      %v614 = vpop.f32.mrf.mxu0
      %v615 = vadd.f32 0.0, %v614
      %v616 = vpop.f32.mrf.mxu0
      %617 = vmatprep.mubr.f32.mxu0 0.0
      %618 = vmatmul.mubr.f32.gmra.mxu0 %v518
      %v619 = vpop.f32.mrf.mxu0
      %v620 = vadd.f32 0.0, %v619
      %v621 = vpop.f32.mrf.mxu0
      %622 = vmatprep.mubr.f32.mxu0 0.0
      %623 = vmatmul.mubr.f32.gmra.mxu0 %v521
      %v624 = vpop.f32.mrf.mxu0
      %v625 = vadd.f32 0.0, %v624
      %v626 = vpop.f32.mrf.mxu0
      %627 = vdwg.mxu0
      %v628 = vld [vmem:[%s2] sm:$0xff]
      %v630 = vsel %vm498, %v628, 0
      %632 = vmatprep.subr.mxu0 0.0
      %633 = vmatpush1.msra.mxu0 0.0
      %634 = vmatprep.subr.mxu0 0.0
      %635 = vmatpush1.msra.mxu0 0.0
      %636 = vmatprep.subr.mxu0 0.0
      %637 = vmatpush1.msra.mxu0 0.0
      %638 = vmatprep.subr.mxu0 0.0
      %639 = vmatpush1.msra.mxu0 0.0
      %640 = vmatprep.subr.mxu0 0.0
      %641 = vmatpush1.msra.mxu0 0.0
      %642 = vmatprep.subr.mxu0 0.0
      %643 = vmatpush1.msra.mxu0 0.0
      %644 = vmatprep.subr.mxu0 0.0
      %645 = vmatpush1.msra.mxu0 0.0
      %646 = vmatprep.subr.mxu0 0.0
      %647 = vmatpush1.msra.mxu0 0.0
      %648 = vmatprep.subr.mxu0 0.0
      %649 = vmatpush1.msra.mxu0 0.0
      %650 = vmatprep.subr.mxu0 0.0
      %651 = vmatpush1.msra.mxu0 0.0
      %652 = vmatprep.subr.mxu0 0.0
      %653 = vmatpush1.msra.mxu0 0.0
      %654 = vmatprep.subr.mxu0 0.0
      %655 = vmatpush1.msra.mxu0 0.0
      %656 = vmatprep.subr.mxu0 0.0
      %657 = vmatpush1.msra.mxu0 0.0
      %658 = vmatprep.subr.mxu0 0.0
      %659 = vmatpush1.msra.mxu0 0.0
      %660 = vmatprep.subr.mxu0 0.0
      %661 = vmatpush1.msra.mxu0 %v595
      %662 = vmatprep.subr.mxu0 0.0
      %663 = vmatpush1.msra.mxu0 %v590
      %664 = vmatprep.subr.mxu0 0.0
      %665 = vmatpush2.msra.mxu0 0.0
      %666 = vmatprep.subr.mxu0 0.0
      %667 = vmatpush2.msra.mxu0 0.0
      %668 = vmatprep.subr.mxu0 0.0
      %669 = vmatpush2.msra.mxu0 0.0
      %670 = vmatprep.subr.mxu0 0.0
      %671 = vmatpush2.msra.mxu0 0.0
      %672 = vmatprep.subr.mxu0 0.0
      %673 = vmatpush2.msra.mxu0 0.0
      %674 = vmatprep.subr.mxu0 0.0
      %675 = vmatpush2.msra.mxu0 0.0
      %676 = vmatprep.subr.mxu0 0.0
      %677 = vmatpush2.msra.mxu0 0.0
      %678 = vmatprep.subr.mxu0 0.0
      %679 = vmatpush2.msra.mxu0 0.0
      %680 = vmatprep.subr.mxu0 0.0
      %681 = vmatpush2.msra.mxu0 0.0
      %682 = vmatprep.subr.mxu0 0.0
      %683 = vmatpush2.msra.mxu0 0.0
      %684 = vmatprep.subr.mxu0 0.0
      %685 = vmatpush2.msra.mxu0 0.0
      %686 = vmatprep.subr.mxu0 0.0
      %687 = vmatpush2.msra.mxu0 0.0
      %688 = vmatprep.subr.mxu0 0.0
      %689 = vmatpush2.msra.mxu0 0.0
      %690 = vmatprep.subr.mxu0 0.0
      %691 = vmatpush2.msra.mxu0 0.0
      %692 = vmatprep.subr.mxu0 0.0
      %693 = vmatpush2.msra.mxu0 0.0
      %694 = vmatprep.subr.mxu0 0.0
      %695 = vmatpush2.msra.mxu0 0.0
      %696 = vmatprep.mubr.f32.mxu0 0.0
      %697 = vmatmul.mubr.f32.gmra.mxu0 %v630
      %v698 = vpop.f32.mrf.mxu0
      %v699 = vadd.f32 0.0, %v698
      %v700 = vpop.f32.mrf.mxu0
      %701 = vdwg.mxu0
      %702 = vmatprep.subr.mxu0 0.0
      %703 = vmatpush1.msra.mxu0 0.0
      %704 = vmatprep.subr.mxu0 0.0
      %705 = vmatpush1.msra.mxu0 0.0
      %706 = vmatprep.subr.mxu0 0.0
      %707 = vmatpush1.msra.mxu0 0.0
      %708 = vmatprep.subr.mxu0 0.0
      %709 = vmatpush1.msra.mxu0 0.0
      %710 = vmatprep.subr.mxu0 0.0
      %711 = vmatpush1.msra.mxu0 0.0
      %712 = vmatprep.subr.mxu0 0.0
      %713 = vmatpush1.msra.mxu0 0.0
      %714 = vmatprep.subr.mxu0 0.0
      %715 = vmatpush1.msra.mxu0 0.0
      %716 = vmatprep.subr.mxu0 0.0
      %717 = vmatpush1.msra.mxu0 0.0
      %718 = vmatprep.subr.mxu0 0.0
      %719 = vmatpush1.msra.mxu0 0.0
      %720 = vmatprep.subr.mxu0 0.0
      %721 = vmatpush1.msra.mxu0 0.0
      %722 = vmatprep.subr.mxu0 0.0
      %723 = vmatpush1.msra.mxu0 0.0
      %724 = vmatprep.subr.mxu0 0.0
      %725 = vmatpush1.msra.mxu0 0.0
      %726 = vmatprep.subr.mxu0 0.0
      %727 = vmatpush1.msra.mxu0 0.0
      %728 = vmatprep.subr.mxu0 0.0
      %729 = vmatpush1.msra.mxu0 0.0
      %730 = vmatprep.subr.mxu0 0.0
      %731 = vmatpush1.msra.mxu0 %v605
      %732 = vmatprep.subr.mxu0 0.0
      %733 = vmatpush1.msra.mxu0 %v600
      %734 = vmatprep.subr.mxu0 0.0
      %735 = vmatpush2.msra.mxu0 0.0
      %736 = vmatprep.subr.mxu0 0.0
      %737 = vmatpush2.msra.mxu0 0.0
      %738 = vmatprep.subr.mxu0 0.0
      %739 = vmatpush2.msra.mxu0 0.0
      %740 = vmatprep.subr.mxu0 0.0
      %741 = vmatpush2.msra.mxu0 0.0
      %742 = vmatprep.subr.mxu0 0.0
      %743 = vmatpush2.msra.mxu0 0.0
      %744 = vmatprep.subr.mxu0 0.0
      %745 = vmatpush2.msra.mxu0 0.0
      %746 = vmatprep.subr.mxu0 0.0
      %747 = vmatpush2.msra.mxu0 0.0
      %748 = vmatprep.subr.mxu0 0.0
      %749 = vmatpush2.msra.mxu0 0.0
      %750 = vmatprep.subr.mxu0 0.0
      %751 = vmatpush2.msra.mxu0 0.0
      %752 = vmatprep.subr.mxu0 0.0
      %753 = vmatpush2.msra.mxu0 0.0
      %754 = vmatprep.subr.mxu0 0.0
      %755 = vmatpush2.msra.mxu0 0.0
      %756 = vmatprep.subr.mxu0 0.0
      %757 = vmatpush2.msra.mxu0 0.0
      %758 = vmatprep.subr.mxu0 0.0
      %759 = vmatpush2.msra.mxu0 0.0
      %760 = vmatprep.subr.mxu0 0.0
      %761 = vmatpush2.msra.mxu0 0.0
      %762 = vmatprep.subr.mxu0 0.0
      %763 = vmatpush2.msra.mxu0 0.0
      %764 = vmatprep.subr.mxu0 0.0
      %765 = vmatpush2.msra.mxu0 0.0
      %766 = vmatprep.mubr.f32.mxu0 0.0
      %767 = vmatmul.mubr.f32.gmra.mxu0 %v630
      %v768 = vpop.f32.mrf.mxu0
      %v769 = vadd.f32 0.0, %v768
      %v770 = vpop.f32.mrf.mxu0
      %771 = vdwg.mxu0
      %772 = vmatprep.subr.mxu0 0.0
      %773 = vmatpush1.msra.mxu0 0.0
      %774 = vmatprep.subr.mxu0 0.0
      %775 = vmatpush1.msra.mxu0 0.0
      %776 = vmatprep.subr.mxu0 0.0
      %777 = vmatpush1.msra.mxu0 0.0
      %778 = vmatprep.subr.mxu0 0.0
      %779 = vmatpush1.msra.mxu0 0.0
      %780 = vmatprep.subr.mxu0 0.0
      %781 = vmatpush1.msra.mxu0 0.0
      %782 = vmatprep.subr.mxu0 0.0
      %783 = vmatpush1.msra.mxu0 0.0
      %784 = vmatprep.subr.mxu0 0.0
      %785 = vmatpush1.msra.mxu0 0.0
      %786 = vmatprep.subr.mxu0 0.0
      %787 = vmatpush1.msra.mxu0 0.0
      %788 = vmatprep.subr.mxu0 0.0
      %789 = vmatpush1.msra.mxu0 0.0
      %790 = vmatprep.subr.mxu0 0.0
      %791 = vmatpush1.msra.mxu0 0.0
      %792 = vmatprep.subr.mxu0 0.0
      %793 = vmatpush1.msra.mxu0 0.0
      %794 = vmatprep.subr.mxu0 0.0
      %795 = vmatpush1.msra.mxu0 0.0
      %796 = vmatprep.subr.mxu0 0.0
      %797 = vmatpush1.msra.mxu0 0.0
      %798 = vmatprep.subr.mxu0 0.0
      %799 = vmatpush1.msra.mxu0 0.0
      %800 = vmatprep.subr.mxu0 0.0
      %801 = vmatpush1.msra.mxu0 %v615
      %802 = vmatprep.subr.mxu0 0.0
      %803 = vmatpush1.msra.mxu0 %v610
      %804 = vmatprep.subr.mxu0 0.0
      %805 = vmatpush2.msra.mxu0 0.0
      %806 = vmatprep.subr.mxu0 0.0
      %807 = vmatpush2.msra.mxu0 0.0
      %808 = vmatprep.subr.mxu0 0.0
      %809 = vmatpush2.msra.mxu0 0.0
      %810 = vmatprep.subr.mxu0 0.0
      %811 = vmatpush2.msra.mxu0 0.0
      %812 = vmatprep.subr.mxu0 0.0
      %813 = vmatpush2.msra.mxu0 0.0
      %814 = vmatprep.subr.mxu0 0.0
      %815 = vmatpush2.msra.mxu0 0.0
      %816 = vmatprep.subr.mxu0 0.0
      %817 = vmatpush2.msra.mxu0 0.0
      %818 = vmatprep.subr.mxu0 0.0
      %819 = vmatpush2.msra.mxu0 0.0
      %820 = vmatprep.subr.mxu0 0.0
      %821 = vmatpush2.msra.mxu0 0.0
      %822 = vmatprep.subr.mxu0 0.0
      %823 = vmatpush2.msra.mxu0 0.0
      %824 = vmatprep.subr.mxu0 0.0
      %825 = vmatpush2.msra.mxu0 0.0
      %826 = vmatprep.subr.mxu0 0.0
      %827 = vmatpush2.msra.mxu0 0.0
      %828 = vmatprep.subr.mxu0 0.0
      %829 = vmatpush2.msra.mxu0 0.0
      %830 = vmatprep.subr.mxu0 0.0
      %831 = vmatpush2.msra.mxu0 0.0
      %832 = vmatprep.subr.mxu0 0.0
      %833 = vmatpush2.msra.mxu0 0.0
      %834 = vmatprep.subr.mxu0 0.0
      %835 = vmatpush2.msra.mxu0 0.0
      %836 = vmatprep.mubr.f32.mxu0 0.0
      %837 = vmatmul.mubr.f32.gmra.mxu0 %v630
      %v838 = vpop.f32.mrf.mxu0
      %v839 = vadd.f32 0.0, %v838
      %v840 = vpop.f32.mrf.mxu0
      %841 = vdwg.mxu0
      %842 = vmatprep.subr.mxu0 0.0
      %843 = vmatpush1.msra.mxu0 0.0
      %844 = vmatprep.subr.mxu0 0.0
      %845 = vmatpush1.msra.mxu0 0.0
      %846 = vmatprep.subr.mxu0 0.0
      %847 = vmatpush1.msra.mxu0 0.0
      %848 = vmatprep.subr.mxu0 0.0
      %849 = vmatpush1.msra.mxu0 0.0
      %850 = vmatprep.subr.mxu0 0.0
      %851 = vmatpush1.msra.mxu0 0.0
      %852 = vmatprep.subr.mxu0 0.0
      %853 = vmatpush1.msra.mxu0 0.0
      %854 = vmatprep.subr.mxu0 0.0
      %855 = vmatpush1.msra.mxu0 0.0
      %856 = vmatprep.subr.mxu0 0.0
      %857 = vmatpush1.msra.mxu0 0.0
      %858 = vmatprep.subr.mxu0 0.0
      %859 = vmatpush1.msra.mxu0 0.0
      %860 = vmatprep.subr.mxu0 0.0
      %861 = vmatpush1.msra.mxu0 0.0
      %862 = vmatprep.subr.mxu0 0.0
      %863 = vmatpush1.msra.mxu0 0.0
      %864 = vmatprep.subr.mxu0 0.0
      %865 = vmatpush1.msra.mxu0 0.0
      %866 = vmatprep.subr.mxu0 0.0
      %867 = vmatpush1.msra.mxu0 0.0
      %868 = vmatprep.subr.mxu0 0.0
      %869 = vmatpush1.msra.mxu0 0.0
      %870 = vmatprep.subr.mxu0 0.0
      %871 = vmatpush1.msra.mxu0 %v625
      %872 = vmatprep.subr.mxu0 0.0
      %873 = vmatpush1.msra.mxu0 %v620
      %874 = vmatprep.subr.mxu0 0.0
      %875 = vmatpush2.msra.mxu0 0.0
      %876 = vmatprep.subr.mxu0 0.0
      %877 = vmatpush2.msra.mxu0 0.0
      %878 = vmatprep.subr.mxu0 0.0
      %879 = vmatpush2.msra.mxu0 0.0
      %880 = vmatprep.subr.mxu0 0.0
      %881 = vmatpush2.msra.mxu0 0.0
      %882 = vmatprep.subr.mxu0 0.0
      %883 = vmatpush2.msra.mxu0 0.0
      %884 = vmatprep.subr.mxu0 0.0
      %885 = vmatpush2.msra.mxu0 0.0
      %886 = vmatprep.subr.mxu0 0.0
      %887 = vmatpush2.msra.mxu0 0.0
      %888 = vmatprep.subr.mxu0 0.0
      %889 = vmatpush2.msra.mxu0 0.0
      %890 = vmatprep.subr.mxu0 0.0
      %891 = vmatpush2.msra.mxu0 0.0
      %892 = vmatprep.subr.mxu0 0.0
      %893 = vmatpush2.msra.mxu0 0.0
      %894 = vmatprep.subr.mxu0 0.0
      %895 = vmatpush2.msra.mxu0 0.0
      %896 = vmatprep.subr.mxu0 0.0
      %897 = vmatpush2.msra.mxu0 0.0
      %898 = vmatprep.subr.mxu0 0.0
      %899 = vmatpush2.msra.mxu0 0.0
      %900 = vmatprep.subr.mxu0 0.0
      %901 = vmatpush2.msra.mxu0 0.0
      %902 = vmatprep.subr.mxu0 0.0
      %903 = vmatpush2.msra.mxu0 0.0
      %904 = vmatprep.subr.mxu0 0.0
      %905 = vmatpush2.msra.mxu0 0.0
      %906 = vmatprep.mubr.f32.mxu0 0.0
      %907 = vmatmul.mubr.f32.gmra.mxu0 %v630
      %v908 = vpop.f32.mrf.mxu0
      %v909 = vadd.f32 0.0, %v908
      %v910 = vpop.f32.mrf.mxu0
      %911 = vdwg.mxu0
      %v916 = vrot.slane %v699, 4
      %v917 = vrot.slane %v769, 4
      %v918 = vrot.slane %v839, 4
      %v919 = vrot.slane %v909, 4
      %920 = vrot.lane.b32.xlu0 %v916, 124
      %v921 = vpop.permute.xlu0 %920
      %922 = vrot.lane.b32.xlu0 %v917, 124
      %v923 = vpop.permute.xlu0 %922
      %924 = vrot.lane.b32.xlu0 %v918, 124
      %v925 = vpop.permute.xlu0 %924
      %926 = vrot.lane.b32.xlu0 %v919, 124
      %v927 = vpop.permute.xlu0 %926
      %v932 = vsub.f32 %v699, %v921
      %v933 = vsub.f32 %v769, %v923
      %v934 = vsub.f32 %v839, %v925
      %v935 = vsub.f32 %v909, %v927
      %936 = vrot.lane.b32.xlu0 %v916, 4
      %v937 = vpop.permute.xlu0 %936
      %938 = vrot.lane.b32.xlu0 %v917, 4
      %v939 = vpop.permute.xlu0 %938
      %940 = vrot.lane.b32.xlu0 %v918, 4
      %v941 = vpop.permute.xlu0 %940
      %942 = vrot.lane.b32.xlu0 %v919, 4
      %v943 = vpop.permute.xlu0 %942
      %v948 = vadd.f32 %v699, %v937
      %v949 = vadd.f32 %v769, %v939
      %v950 = vadd.f32 %v839, %v941
      %v951 = vadd.f32 %v909, %v943
      %v952 = vld [vmem:[%s6] sm:$0xf]
      %v953 = vld [vmem:[%s6 + $0x4] sm:$0xf]
      %v954 = vld [vmem:[%s6 + $0x8] sm:$0xf]
      %v955 = vld [vmem:[%s6 + $0xc] sm:$0xf]
      %v956 = vld [vmem:[%s6 + $0x10] sm:$0xf]
      %v957 = vld [vmem:[%s6 + $0x14] sm:$0xf]
      %v958 = vld [vmem:[%s6 + $0x18] sm:$0xf]
      %v959 = vld [vmem:[%s6 + $0x1c] sm:$0xf]
      %v960 = vld [vmem:[%s6 + $0x20] sm:$0xf]
      %v961 = vld [vmem:[%s6 + $0x24] sm:$0xf]
      %v962 = vld [vmem:[%s6 + $0x28] sm:$0xf]
      %v963 = vld [vmem:[%s6 + $0x2c] sm:$0xf]
      %v964 = vld [vmem:[%s6 + $0x30] sm:$0xf]
      %v965 = vld [vmem:[%s6 + $0x34] sm:$0xf]
      %v966 = vld [vmem:[%s6 + $0x38] sm:$0xf]
      %v967 = vld [vmem:[%s6 + $0x3c] sm:$0xf]
      %v968 = vld [vmem:[%s7] sm:$0xf]
      %v969 = vld [vmem:[%s7 + $0x4] sm:$0xf]
      %v970 = vld [vmem:[%s7 + $0x8] sm:$0xf]
      %v971 = vld [vmem:[%s7 + $0xc] sm:$0xf]
      %v972 = vld [vmem:[%s7 + $0x10] sm:$0xf]
      %v973 = vld [vmem:[%s7 + $0x14] sm:$0xf]
      %v974 = vld [vmem:[%s7 + $0x18] sm:$0xf]
      %v975 = vld [vmem:[%s7 + $0x1c] sm:$0xf]
      %v976 = vld [vmem:[%s7 + $0x20] sm:$0xf]
      %v977 = vld [vmem:[%s7 + $0x24] sm:$0xf]
      %v978 = vld [vmem:[%s7 + $0x28] sm:$0xf]
      %v979 = vld [vmem:[%s7 + $0x2c] sm:$0xf]
      %v980 = vld [vmem:[%s7 + $0x30] sm:$0xf]
      %v981 = vld [vmem:[%s7 + $0x34] sm:$0xf]
      %v982 = vld [vmem:[%s7 + $0x38] sm:$0xf]
      %v983 = vld [vmem:[%s7 + $0x3c] sm:$0xf]
      %v984 = vmul.f32 %v932, %v952
      %v985 = vmul.f32 %v932, %v953
      %v986 = vmul.f32 %v932, %v954
      %v987 = vmul.f32 %v932, %v955
      %v988 = vmul.f32 %v933, %v956
      %v989 = vmul.f32 %v933, %v957
      %v990 = vmul.f32 %v933, %v958
      %v991 = vmul.f32 %v933, %v959
      %v992 = vmul.f32 %v934, %v960
      %v993 = vmul.f32 %v934, %v961
      %v994 = vmul.f32 %v934, %v962
      %v995 = vmul.f32 %v934, %v963
      %v996 = vmul.f32 %v935, %v964
      %v997 = vmul.f32 %v935, %v965
      %v998 = vmul.f32 %v935, %v966
      %v999 = vmul.f32 %v935, %v967
      %1016 = vrot.lane.b32.xlu0 %v968, 4
      %v1017 = vpop.permute.xlu0 %1016
      %1018 = vrot.lane.b32.xlu0 %v969, 4
      %v1019 = vpop.permute.xlu0 %1018
      %1020 = vrot.lane.b32.xlu0 %v970, 4
      %v1021 = vpop.permute.xlu0 %1020
      %1022 = vrot.lane.b32.xlu0 %v971, 4
      %v1023 = vpop.permute.xlu0 %1022
      %1024 = vrot.lane.b32.xlu0 %v972, 4
      %v1025 = vpop.permute.xlu0 %1024
      %1026 = vrot.lane.b32.xlu0 %v973, 4
      %v1027 = vpop.permute.xlu0 %1026
      %1028 = vrot.lane.b32.xlu0 %v974, 4
      %v1029 = vpop.permute.xlu0 %1028
      %1030 = vrot.lane.b32.xlu0 %v975, 4
      %v1031 = vpop.permute.xlu0 %1030
      %1032 = vrot.lane.b32.xlu0 %v976, 4
      %v1033 = vpop.permute.xlu0 %1032
      %1034 = vrot.lane.b32.xlu0 %v977, 4
      %v1035 = vpop.permute.xlu0 %1034
      %1036 = vrot.lane.b32.xlu0 %v978, 4
      %v1037 = vpop.permute.xlu0 %1036
      %1038 = vrot.lane.b32.xlu0 %v979, 4
      %v1039 = vpop.permute.xlu0 %1038
      %1040 = vrot.lane.b32.xlu0 %v980, 4
      %v1041 = vpop.permute.xlu0 %1040
      %1042 = vrot.lane.b32.xlu0 %v981, 4
      %v1043 = vpop.permute.xlu0 %1042
      %1044 = vrot.lane.b32.xlu0 %v982, 4
      %v1045 = vpop.permute.xlu0 %1044
      %1046 = vrot.lane.b32.xlu0 %v983, 4
      %v1047 = vpop.permute.xlu0 %1046
      %v1064 = vmul.f32 %v948, %v1017
      %v1065 = vmul.f32 %v948, %v1019
      %v1066 = vmul.f32 %v948, %v1021
      %v1067 = vmul.f32 %v948, %v1023
      %v1068 = vmul.f32 %v949, %v1025
      %v1069 = vmul.f32 %v949, %v1027
      %v1070 = vmul.f32 %v949, %v1029
      %v1071 = vmul.f32 %v949, %v1031
      %v1072 = vmul.f32 %v950, %v1033
      %v1073 = vmul.f32 %v950, %v1035
      %v1074 = vmul.f32 %v950, %v1037
      %v1075 = vmul.f32 %v950, %v1039
      %v1076 = vmul.f32 %v951, %v1041
      %v1077 = vmul.f32 %v951, %v1043
      %v1078 = vmul.f32 %v951, %v1045
      %v1079 = vmul.f32 %v951, %v1047
      %1096 = vrot.lane.b32.xlu0 %v1064, 124
      %v1097 = vpop.permute.xlu0 %1096
      %1098 = vrot.lane.b32.xlu0 %v1065, 124
      %v1099 = vpop.permute.xlu0 %1098
      %1100 = vrot.lane.b32.xlu0 %v1066, 124
      %v1101 = vpop.permute.xlu0 %1100
      %1102 = vrot.lane.b32.xlu0 %v1067, 124
      %v1103 = vpop.permute.xlu0 %1102
      %1104 = vrot.lane.b32.xlu0 %v1068, 124
      %v1105 = vpop.permute.xlu0 %1104
      %1106 = vrot.lane.b32.xlu0 %v1069, 124
      %v1107 = vpop.permute.xlu0 %1106
      %1108 = vrot.lane.b32.xlu0 %v1070, 124
      %v1109 = vpop.permute.xlu0 %1108
      %1110 = vrot.lane.b32.xlu0 %v1071, 124
      %v1111 = vpop.permute.xlu0 %1110
      %1112 = vrot.lane.b32.xlu0 %v1072, 124
      %v1113 = vpop.permute.xlu0 %1112
      %1114 = vrot.lane.b32.xlu0 %v1073, 124
      %v1115 = vpop.permute.xlu0 %1114
      %1116 = vrot.lane.b32.xlu0 %v1074, 124
      %v1117 = vpop.permute.xlu0 %1116
      %1118 = vrot.lane.b32.xlu0 %v1075, 124
      %v1119 = vpop.permute.xlu0 %1118
      %1120 = vrot.lane.b32.xlu0 %v1076, 124
      %v1121 = vpop.permute.xlu0 %1120
      %1122 = vrot.lane.b32.xlu0 %v1077, 124
      %v1123 = vpop.permute.xlu0 %1122
      %1124 = vrot.lane.b32.xlu0 %v1078, 124
      %v1125 = vpop.permute.xlu0 %1124
      %1126 = vrot.lane.b32.xlu0 %v1079, 124
      %v1127 = vpop.permute.xlu0 %1126
      %v1144 = vsub.f32 %v984, %v1097
      %v1145 = vsub.f32 %v985, %v1099
      %v1146 = vsub.f32 %v986, %v1101
      %v1147 = vsub.f32 %v987, %v1103
      %v1148 = vsub.f32 %v988, %v1105
      %v1149 = vsub.f32 %v989, %v1107
      %v1150 = vsub.f32 %v990, %v1109
      %v1151 = vsub.f32 %v991, %v1111
      %v1152 = vsub.f32 %v992, %v1113
      %v1153 = vsub.f32 %v993, %v1115
      %v1154 = vsub.f32 %v994, %v1117
      %v1155 = vsub.f32 %v995, %v1119
      %v1156 = vsub.f32 %v996, %v1121
      %v1157 = vsub.f32 %v997, %v1123
      %v1158 = vsub.f32 %v998, %v1125
      %v1159 = vsub.f32 %v999, %v1127
      %vm1160 = vcmask 27648
      %v1161 = vsel %vm1160, %v1144, 0.0
      %v1162 = vsel %vm1160, %v1148, 0.0
      %v1163 = vadd.f32 %v1161, %v1162
      %v1164 = vsel %vm1160, %v1152, 0.0
      %v1165 = vadd.f32 %v1163, %v1164
      %v1166 = vsel %vm1160, %v1156, 0.0
      %v1167 = vadd.f32 %v1165, %v1166
      %v1168 = vsel %vm1160, %v1145, 0.0
      %v1169 = vsel %vm1160, %v1149, 0.0
      %v1170 = vadd.f32 %v1168, %v1169
      %v1171 = vsel %vm1160, %v1153, 0.0
      %v1172 = vadd.f32 %v1170, %v1171
      %v1173 = vsel %vm1160, %v1157, 0.0
      %v1174 = vadd.f32 %v1172, %v1173
      %v1175 = vsel %vm1160, %v1146, 0.0
      %v1176 = vsel %vm1160, %v1150, 0.0
      %v1177 = vadd.f32 %v1175, %v1176
      %v1178 = vsel %vm1160, %v1154, 0.0
      %v1179 = vadd.f32 %v1177, %v1178
      %v1180 = vsel %vm1160, %v1158, 0.0
      %v1181 = vadd.f32 %v1179, %v1180
      %v1182 = vsel %vm1160, %v1147, 0.0
      %v1183 = vsel %vm1160, %v1151, 0.0
      %v1184 = vadd.f32 %v1182, %v1183
      %v1185 = vsel %vm1160, %v1155, 0.0
      %v1186 = vadd.f32 %v1184, %v1185
      %v1187 = vsel %vm1160, %v1159, 0.0
      %v1188 = vadd.f32 %v1186, %v1187
      %v1189 = vmul.f32 %v932, %v968
      %v1190 = vmul.f32 %v932, %v969
      %v1191 = vmul.f32 %v932, %v970
      %v1192 = vmul.f32 %v932, %v971
      %v1193 = vmul.f32 %v933, %v972
      %v1194 = vmul.f32 %v933, %v973
      %v1195 = vmul.f32 %v933, %v974
      %v1196 = vmul.f32 %v933, %v975
      %v1197 = vmul.f32 %v934, %v976
      %v1198 = vmul.f32 %v934, %v977
      %v1199 = vmul.f32 %v934, %v978
      %v1200 = vmul.f32 %v934, %v979
      %v1201 = vmul.f32 %v935, %v980
      %v1202 = vmul.f32 %v935, %v981
      %v1203 = vmul.f32 %v935, %v982
      %v1204 = vmul.f32 %v935, %v983
      %1221 = vrot.lane.b32.xlu0 %v952, 4
      %v1222 = vpop.permute.xlu0 %1221
      %1223 = vrot.lane.b32.xlu0 %v953, 4
      %v1224 = vpop.permute.xlu0 %1223
      %1225 = vrot.lane.b32.xlu0 %v954, 4
      %v1226 = vpop.permute.xlu0 %1225
      %1227 = vrot.lane.b32.xlu0 %v955, 4
      %v1228 = vpop.permute.xlu0 %1227
      %1229 = vrot.lane.b32.xlu0 %v956, 4
      %v1230 = vpop.permute.xlu0 %1229
      %1231 = vrot.lane.b32.xlu0 %v957, 4
      %v1232 = vpop.permute.xlu0 %1231
      %1233 = vrot.lane.b32.xlu0 %v958, 4
      %v1234 = vpop.permute.xlu0 %1233
      %1235 = vrot.lane.b32.xlu0 %v959, 4
      %v1236 = vpop.permute.xlu0 %1235
      %1237 = vrot.lane.b32.xlu0 %v960, 4
      %v1238 = vpop.permute.xlu0 %1237
      %1239 = vrot.lane.b32.xlu0 %v961, 4
      %v1240 = vpop.permute.xlu0 %1239
      %1241 = vrot.lane.b32.xlu0 %v962, 4
      %v1242 = vpop.permute.xlu0 %1241
      %1243 = vrot.lane.b32.xlu0 %v963, 4
      %v1244 = vpop.permute.xlu0 %1243
      %1245 = vrot.lane.b32.xlu0 %v964, 4
      %v1246 = vpop.permute.xlu0 %1245
      %1247 = vrot.lane.b32.xlu0 %v965, 4
      %v1248 = vpop.permute.xlu0 %1247
      %1249 = vrot.lane.b32.xlu0 %v966, 4
      %v1250 = vpop.permute.xlu0 %1249
      %1251 = vrot.lane.b32.xlu0 %v967, 4
      %v1252 = vpop.permute.xlu0 %1251
      %v1269 = vmul.f32 %v948, %v1222
      %v1270 = vmul.f32 %v948, %v1224
      %v1271 = vmul.f32 %v948, %v1226
      %v1272 = vmul.f32 %v948, %v1228
      %v1273 = vmul.f32 %v949, %v1230
      %v1274 = vmul.f32 %v949, %v1232
      %v1275 = vmul.f32 %v949, %v1234
      %v1276 = vmul.f32 %v949, %v1236
      %v1277 = vmul.f32 %v950, %v1238
      %v1278 = vmul.f32 %v950, %v1240
      %v1279 = vmul.f32 %v950, %v1242
      %v1280 = vmul.f32 %v950, %v1244
      %v1281 = vmul.f32 %v951, %v1246
      %v1282 = vmul.f32 %v951, %v1248
      %v1283 = vmul.f32 %v951, %v1250
      %v1284 = vmul.f32 %v951, %v1252
      %1301 = vrot.lane.b32.xlu0 %v1269, 124
      %v1302 = vpop.permute.xlu0 %1301
      %1303 = vrot.lane.b32.xlu0 %v1270, 124
      %v1304 = vpop.permute.xlu0 %1303
      %1305 = vrot.lane.b32.xlu0 %v1271, 124
      %v1306 = vpop.permute.xlu0 %1305
      %1307 = vrot.lane.b32.xlu0 %v1272, 124
      %v1308 = vpop.permute.xlu0 %1307
      %1309 = vrot.lane.b32.xlu0 %v1273, 124
      %v1310 = vpop.permute.xlu0 %1309
      %1311 = vrot.lane.b32.xlu0 %v1274, 124
      %v1312 = vpop.permute.xlu0 %1311
      %1313 = vrot.lane.b32.xlu0 %v1275, 124
      %v1314 = vpop.permute.xlu0 %1313
      %1315 = vrot.lane.b32.xlu0 %v1276, 124
      %v1316 = vpop.permute.xlu0 %1315
      %1317 = vrot.lane.b32.xlu0 %v1277, 124
      %v1318 = vpop.permute.xlu0 %1317
      %1319 = vrot.lane.b32.xlu0 %v1278, 124
      %v1320 = vpop.permute.xlu0 %1319
      %1321 = vrot.lane.b32.xlu0 %v1279, 124
      %v1322 = vpop.permute.xlu0 %1321
      %1323 = vrot.lane.b32.xlu0 %v1280, 124
      %v1324 = vpop.permute.xlu0 %1323
      %1325 = vrot.lane.b32.xlu0 %v1281, 124
      %v1326 = vpop.permute.xlu0 %1325
      %1327 = vrot.lane.b32.xlu0 %v1282, 124
      %v1328 = vpop.permute.xlu0 %1327
      %1329 = vrot.lane.b32.xlu0 %v1283, 124
      %v1330 = vpop.permute.xlu0 %1329
      %1331 = vrot.lane.b32.xlu0 %v1284, 124
      %v1332 = vpop.permute.xlu0 %1331
      %v1349 = vadd.f32 %v1189, %v1302
      %v1350 = vadd.f32 %v1190, %v1304
      %v1351 = vadd.f32 %v1191, %v1306
      %v1352 = vadd.f32 %v1192, %v1308
      %v1353 = vadd.f32 %v1193, %v1310
      %v1354 = vadd.f32 %v1194, %v1312
      %v1355 = vadd.f32 %v1195, %v1314
      %v1356 = vadd.f32 %v1196, %v1316
      %v1357 = vadd.f32 %v1197, %v1318
      %v1358 = vadd.f32 %v1198, %v1320
      %v1359 = vadd.f32 %v1199, %v1322
      %v1360 = vadd.f32 %v1200, %v1324
      %v1361 = vadd.f32 %v1201, %v1326
      %v1362 = vadd.f32 %v1202, %v1328
      %v1363 = vadd.f32 %v1203, %v1330
      %v1364 = vadd.f32 %v1204, %v1332
      %v1365 = vsel %vm1160, %v1349, 0.0
      %v1366 = vsel %vm1160, %v1353, 0.0
      %v1367 = vadd.f32 %v1365, %v1366
      %v1368 = vsel %vm1160, %v1357, 0.0
      %v1369 = vadd.f32 %v1367, %v1368
      %v1370 = vsel %vm1160, %v1361, 0.0
      %v1371 = vadd.f32 %v1369, %v1370
      %v1372 = vsel %vm1160, %v1350, 0.0
      %v1373 = vsel %vm1160, %v1354, 0.0
      %v1374 = vadd.f32 %v1372, %v1373
      %v1375 = vsel %vm1160, %v1358, 0.0
      %v1376 = vadd.f32 %v1374, %v1375
      %v1377 = vsel %vm1160, %v1362, 0.0
      %v1378 = vadd.f32 %v1376, %v1377
      %v1379 = vsel %vm1160, %v1351, 0.0
      %v1380 = vsel %vm1160, %v1355, 0.0
      %v1381 = vadd.f32 %v1379, %v1380
      %v1382 = vsel %vm1160, %v1359, 0.0
      %v1383 = vadd.f32 %v1381, %v1382
      %v1384 = vsel %vm1160, %v1363, 0.0
      %v1385 = vadd.f32 %v1383, %v1384
      %v1386 = vsel %vm1160, %v1352, 0.0
      %v1387 = vsel %vm1160, %v1356, 0.0
      %v1388 = vadd.f32 %v1386, %v1387
      %v1389 = vsel %vm1160, %v1360, 0.0
      %v1390 = vadd.f32 %v1388, %v1389
      %v1391 = vsel %vm1160, %v1364, 0.0
      %v1392 = vadd.f32 %v1390, %v1391
      %1397 = vrot.lane.b32.xlu0 %v1371, 4
      %v1398 = vpop.permute.xlu0 %1397
      %1399 = vrot.lane.b32.xlu0 %v1378, 4
      %v1400 = vpop.permute.xlu0 %1399
      %1401 = vrot.lane.b32.xlu0 %v1385, 4
      %v1402 = vpop.permute.xlu0 %1401
      %1403 = vrot.lane.b32.xlu0 %v1392, 4
      %v1404 = vpop.permute.xlu0 %1403
      %vm1409 = vcmask 31744
      %v1410 = vsel %vm1409, %v1167, %v1398
      %v1411 = vsel %vm1409, %v1174, %v1400
      %v1412 = vsel %vm1409, %v1181, %v1402
      %v1413 = vsel %vm1409, %v1188, %v1404
      %v1414 = vld [vmem:[%s5] sm:$0xff]
      %vm1415 = vcmask 64512
      %v1417 = vsel %vm1415, %v1410, 0
      %1419 = vmatprep.subr.mxu0 0.0
      %1420 = vmatpush1.msra.mxu0 0.0
      %1421 = vmatprep.subr.mxu0 0.0
      %1422 = vmatpush1.msra.mxu0 0.0
      %1423 = vmatprep.subr.mxu0 0.0
      %1424 = vmatpush1.msra.mxu0 0.0
      %1425 = vmatprep.subr.mxu0 0.0
      %1426 = vmatpush1.msra.mxu0 0.0
      %1427 = vmatprep.subr.mxu0 0.0
      %1428 = vmatpush1.msra.mxu0 0.0
      %1429 = vmatprep.subr.mxu0 0.0
      %1430 = vmatpush1.msra.mxu0 0.0
      %1431 = vmatprep.subr.mxu0 0.0
      %1432 = vmatpush1.msra.mxu0 0.0
      %1433 = vmatprep.subr.mxu0 0.0
      %1434 = vmatpush1.msra.mxu0 0.0
      %1435 = vmatprep.subr.mxu0 0.0
      %1436 = vmatpush1.msra.mxu0 0.0
      %1437 = vmatprep.subr.mxu0 0.0
      %1438 = vmatpush1.msra.mxu0 0.0
      %1439 = vmatprep.subr.mxu0 0.0
      %1440 = vmatpush1.msra.mxu0 0.0
      %1441 = vmatprep.subr.mxu0 0.0
      %1442 = vmatpush1.msra.mxu0 0.0
      %1443 = vmatprep.subr.mxu0 0.0
      %1444 = vmatpush1.msra.mxu0 0.0
      %1445 = vmatprep.subr.mxu0 0.0
      %1446 = vmatpush1.msra.mxu0 0.0
      %1447 = vmatprep.subr.mxu0 0.0
      %1448 = vmatpush1.msra.mxu0 0.0
      %1449 = vmatprep.subr.mxu0 0.0
      %1450 = vmatpush1.msra.mxu0 %v1414
      %1451 = vmatprep.subr.mxu0 0.0
      %1452 = vmatpush2.msra.mxu0 0.0
      %1453 = vmatprep.subr.mxu0 0.0
      %1454 = vmatpush2.msra.mxu0 0.0
      %1455 = vmatprep.subr.mxu0 0.0
      %1456 = vmatpush2.msra.mxu0 0.0
      %1457 = vmatprep.subr.mxu0 0.0
      %1458 = vmatpush2.msra.mxu0 0.0
      %1459 = vmatprep.subr.mxu0 0.0
      %1460 = vmatpush2.msra.mxu0 0.0
      %1461 = vmatprep.subr.mxu0 0.0
      %1462 = vmatpush2.msra.mxu0 0.0
      %1463 = vmatprep.subr.mxu0 0.0
      %1464 = vmatpush2.msra.mxu0 0.0
      %1465 = vmatprep.subr.mxu0 0.0
      %1466 = vmatpush2.msra.mxu0 0.0
      %1467 = vmatprep.subr.mxu0 0.0
      %1468 = vmatpush2.msra.mxu0 0.0
      %1469 = vmatprep.subr.mxu0 0.0
      %1470 = vmatpush2.msra.mxu0 0.0
      %1471 = vmatprep.subr.mxu0 0.0
      %1472 = vmatpush2.msra.mxu0 0.0
      %1473 = vmatprep.subr.mxu0 0.0
      %1474 = vmatpush2.msra.mxu0 0.0
      %1475 = vmatprep.subr.mxu0 0.0
      %1476 = vmatpush2.msra.mxu0 0.0
      %1477 = vmatprep.subr.mxu0 0.0
      %1478 = vmatpush2.msra.mxu0 0.0
      %1479 = vmatprep.subr.mxu0 0.0
      %1480 = vmatpush2.msra.mxu0 0.0
      %1481 = vmatprep.subr.mxu0 0.0
      %1482 = vmatpush2.msra.mxu0 0.0
      %1483 = vmatprep.mubr.f32.mxu0 0.0
      %1484 = vmatmul.mubr.f32.gmra.mxu0 %v1417
      %v1485 = vpop.f32.mrf.mxu0
      %v1486 = vadd.f32 0.0, %v1485
      %v1487 = vpop.f32.mrf.mxu0
      %1488 = vdwg.mxu0
      %v1490 = vsel %vm1415, %v1411, 0
      %1492 = vmatprep.subr.mxu0 0.0
      %1493 = vmatpush1.msra.mxu0 0.0
      %1494 = vmatprep.subr.mxu0 0.0
      %1495 = vmatpush1.msra.mxu0 0.0
      %1496 = vmatprep.subr.mxu0 0.0
      %1497 = vmatpush1.msra.mxu0 0.0
      %1498 = vmatprep.subr.mxu0 0.0
      %1499 = vmatpush1.msra.mxu0 0.0
      %1500 = vmatprep.subr.mxu0 0.0
      %1501 = vmatpush1.msra.mxu0 0.0
      %1502 = vmatprep.subr.mxu0 0.0
      %1503 = vmatpush1.msra.mxu0 0.0
      %1504 = vmatprep.subr.mxu0 0.0
      %1505 = vmatpush1.msra.mxu0 0.0
      %1506 = vmatprep.subr.mxu0 0.0
      %1507 = vmatpush1.msra.mxu0 0.0
      %1508 = vmatprep.subr.mxu0 0.0
      %1509 = vmatpush1.msra.mxu0 0.0
      %1510 = vmatprep.subr.mxu0 0.0
      %1511 = vmatpush1.msra.mxu0 0.0
      %1512 = vmatprep.subr.mxu0 0.0
      %1513 = vmatpush1.msra.mxu0 0.0
      %1514 = vmatprep.subr.mxu0 0.0
      %1515 = vmatpush1.msra.mxu0 0.0
      %1516 = vmatprep.subr.mxu0 0.0
      %1517 = vmatpush1.msra.mxu0 0.0
      %1518 = vmatprep.subr.mxu0 0.0
      %1519 = vmatpush1.msra.mxu0 0.0
      %1520 = vmatprep.subr.mxu0 0.0
      %1521 = vmatpush1.msra.mxu0 0.0
      %1522 = vmatprep.subr.mxu0 0.0
      %1523 = vmatpush1.msra.mxu0 %v1414
      %1524 = vmatprep.subr.mxu0 0.0
      %1525 = vmatpush2.msra.mxu0 0.0
      %1526 = vmatprep.subr.mxu0 0.0
      %1527 = vmatpush2.msra.mxu0 0.0
      %1528 = vmatprep.subr.mxu0 0.0
      %1529 = vmatpush2.msra.mxu0 0.0
      %1530 = vmatprep.subr.mxu0 0.0
      %1531 = vmatpush2.msra.mxu0 0.0
      %1532 = vmatprep.subr.mxu0 0.0
      %1533 = vmatpush2.msra.mxu0 0.0
      %1534 = vmatprep.subr.mxu0 0.0
      %1535 = vmatpush2.msra.mxu0 0.0
      %1536 = vmatprep.subr.mxu0 0.0
      %1537 = vmatpush2.msra.mxu0 0.0
      %1538 = vmatprep.subr.mxu0 0.0
      %1539 = vmatpush2.msra.mxu0 0.0
      %1540 = vmatprep.subr.mxu0 0.0
      %1541 = vmatpush2.msra.mxu0 0.0
      %1542 = vmatprep.subr.mxu0 0.0
      %1543 = vmatpush2.msra.mxu0 0.0
      %1544 = vmatprep.subr.mxu0 0.0
      %1545 = vmatpush2.msra.mxu0 0.0
      %1546 = vmatprep.subr.mxu0 0.0
      %1547 = vmatpush2.msra.mxu0 0.0
      %1548 = vmatprep.subr.mxu0 0.0
      %1549 = vmatpush2.msra.mxu0 0.0
      %1550 = vmatprep.subr.mxu0 0.0
      %1551 = vmatpush2.msra.mxu0 0.0
      %1552 = vmatprep.subr.mxu0 0.0
      %1553 = vmatpush2.msra.mxu0 0.0
      %1554 = vmatprep.subr.mxu0 0.0
      %1555 = vmatpush2.msra.mxu0 0.0
      %1556 = vmatprep.mubr.f32.mxu0 0.0
      %1557 = vmatmul.mubr.f32.gmra.mxu0 %v1490
      %v1558 = vpop.f32.mrf.mxu0
      %v1559 = vadd.f32 0.0, %v1558
      %v1560 = vpop.f32.mrf.mxu0
      %1561 = vdwg.mxu0
      %v1563 = vsel %vm1415, %v1412, 0
      %1565 = vmatprep.subr.mxu0 0.0
      %1566 = vmatpush1.msra.mxu0 0.0
      %1567 = vmatprep.subr.mxu0 0.0
      %1568 = vmatpush1.msra.mxu0 0.0
      %1569 = vmatprep.subr.mxu0 0.0
      %1570 = vmatpush1.msra.mxu0 0.0
      %1571 = vmatprep.subr.mxu0 0.0
      %1572 = vmatpush1.msra.mxu0 0.0
      %1573 = vmatprep.subr.mxu0 0.0
      %1574 = vmatpush1.msra.mxu0 0.0
      %1575 = vmatprep.subr.mxu0 0.0
      %1576 = vmatpush1.msra.mxu0 0.0
      %1577 = vmatprep.subr.mxu0 0.0
      %1578 = vmatpush1.msra.mxu0 0.0
      %1579 = vmatprep.subr.mxu0 0.0
      %1580 = vmatpush1.msra.mxu0 0.0
      %1581 = vmatprep.subr.mxu0 0.0
      %1582 = vmatpush1.msra.mxu0 0.0
      %1583 = vmatprep.subr.mxu0 0.0
      %1584 = vmatpush1.msra.mxu0 0.0
      %1585 = vmatprep.subr.mxu0 0.0
      %1586 = vmatpush1.msra.mxu0 0.0
      %1587 = vmatprep.subr.mxu0 0.0
      %1588 = vmatpush1.msra.mxu0 0.0
      %1589 = vmatprep.subr.mxu0 0.0
      %1590 = vmatpush1.msra.mxu0 0.0
      %1591 = vmatprep.subr.mxu0 0.0
      %1592 = vmatpush1.msra.mxu0 0.0
      %1593 = vmatprep.subr.mxu0 0.0
      %1594 = vmatpush1.msra.mxu0 0.0
      %1595 = vmatprep.subr.mxu0 0.0
      %1596 = vmatpush1.msra.mxu0 %v1414
      %1597 = vmatprep.subr.mxu0 0.0
      %1598 = vmatpush2.msra.mxu0 0.0
      %1599 = vmatprep.subr.mxu0 0.0
      %1600 = vmatpush2.msra.mxu0 0.0
      %1601 = vmatprep.subr.mxu0 0.0
      %1602 = vmatpush2.msra.mxu0 0.0
      %1603 = vmatprep.subr.mxu0 0.0
      %1604 = vmatpush2.msra.mxu0 0.0
      %1605 = vmatprep.subr.mxu0 0.0
      %1606 = vmatpush2.msra.mxu0 0.0
      %1607 = vmatprep.subr.mxu0 0.0
      %1608 = vmatpush2.msra.mxu0 0.0
      %1609 = vmatprep.subr.mxu0 0.0
      %1610 = vmatpush2.msra.mxu0 0.0
      %1611 = vmatprep.subr.mxu0 0.0
      %1612 = vmatpush2.msra.mxu0 0.0
      %1613 = vmatprep.subr.mxu0 0.0
      %1614 = vmatpush2.msra.mxu0 0.0
      %1615 = vmatprep.subr.mxu0 0.0
      %1616 = vmatpush2.msra.mxu0 0.0
      %1617 = vmatprep.subr.mxu0 0.0
      %1618 = vmatpush2.msra.mxu0 0.0
      %1619 = vmatprep.subr.mxu0 0.0
      %1620 = vmatpush2.msra.mxu0 0.0
      %1621 = vmatprep.subr.mxu0 0.0
      %1622 = vmatpush2.msra.mxu0 0.0
      %1623 = vmatprep.subr.mxu0 0.0
      %1624 = vmatpush2.msra.mxu0 0.0
      %1625 = vmatprep.subr.mxu0 0.0
      %1626 = vmatpush2.msra.mxu0 0.0
      %1627 = vmatprep.subr.mxu0 0.0
      %1628 = vmatpush2.msra.mxu0 0.0
      %1629 = vmatprep.mubr.f32.mxu0 0.0
      %1630 = vmatmul.mubr.f32.gmra.mxu0 %v1563
      %v1631 = vpop.f32.mrf.mxu0
      %v1632 = vadd.f32 0.0, %v1631
      %v1633 = vpop.f32.mrf.mxu0
      %1634 = vdwg.mxu0
      %v1636 = vsel %vm1415, %v1413, 0
      %1638 = vmatprep.subr.mxu0 0.0
      %1639 = vmatpush1.msra.mxu0 0.0
      %1640 = vmatprep.subr.mxu0 0.0
      %1641 = vmatpush1.msra.mxu0 0.0
      %1642 = vmatprep.subr.mxu0 0.0
      %1643 = vmatpush1.msra.mxu0 0.0
      %1644 = vmatprep.subr.mxu0 0.0
      %1645 = vmatpush1.msra.mxu0 0.0
      %1646 = vmatprep.subr.mxu0 0.0
      %1647 = vmatpush1.msra.mxu0 0.0
      %1648 = vmatprep.subr.mxu0 0.0
      %1649 = vmatpush1.msra.mxu0 0.0
      %1650 = vmatprep.subr.mxu0 0.0
      %1651 = vmatpush1.msra.mxu0 0.0
      %1652 = vmatprep.subr.mxu0 0.0
      %1653 = vmatpush1.msra.mxu0 0.0
      %1654 = vmatprep.subr.mxu0 0.0
      %1655 = vmatpush1.msra.mxu0 0.0
      %1656 = vmatprep.subr.mxu0 0.0
      %1657 = vmatpush1.msra.mxu0 0.0
      %1658 = vmatprep.subr.mxu0 0.0
      %1659 = vmatpush1.msra.mxu0 0.0
      %1660 = vmatprep.subr.mxu0 0.0
      %1661 = vmatpush1.msra.mxu0 0.0
      %1662 = vmatprep.subr.mxu0 0.0
      %1663 = vmatpush1.msra.mxu0 0.0
      %1664 = vmatprep.subr.mxu0 0.0
      %1665 = vmatpush1.msra.mxu0 0.0
      %1666 = vmatprep.subr.mxu0 0.0
      %1667 = vmatpush1.msra.mxu0 0.0
      %1668 = vmatprep.subr.mxu0 0.0
      %1669 = vmatpush1.msra.mxu0 %v1414
      %1670 = vmatprep.subr.mxu0 0.0
      %1671 = vmatpush2.msra.mxu0 0.0
      %1672 = vmatprep.subr.mxu0 0.0
      %1673 = vmatpush2.msra.mxu0 0.0
      %1674 = vmatprep.subr.mxu0 0.0
      %1675 = vmatpush2.msra.mxu0 0.0
      %1676 = vmatprep.subr.mxu0 0.0
      %1677 = vmatpush2.msra.mxu0 0.0
      %1678 = vmatprep.subr.mxu0 0.0
      %1679 = vmatpush2.msra.mxu0 0.0
      %1680 = vmatprep.subr.mxu0 0.0
      %1681 = vmatpush2.msra.mxu0 0.0
      %1682 = vmatprep.subr.mxu0 0.0
      %1683 = vmatpush2.msra.mxu0 0.0
      %1684 = vmatprep.subr.mxu0 0.0
      %1685 = vmatpush2.msra.mxu0 0.0
      %1686 = vmatprep.subr.mxu0 0.0
      %1687 = vmatpush2.msra.mxu0 0.0
      %1688 = vmatprep.subr.mxu0 0.0
      %1689 = vmatpush2.msra.mxu0 0.0
      %1690 = vmatprep.subr.mxu0 0.0
      %1691 = vmatpush2.msra.mxu0 0.0
      %1692 = vmatprep.subr.mxu0 0.0
      %1693 = vmatpush2.msra.mxu0 0.0
      %1694 = vmatprep.subr.mxu0 0.0
      %1695 = vmatpush2.msra.mxu0 0.0
      %1696 = vmatprep.subr.mxu0 0.0
      %1697 = vmatpush2.msra.mxu0 0.0
      %1698 = vmatprep.subr.mxu0 0.0
      %1699 = vmatpush2.msra.mxu0 0.0
      %1700 = vmatprep.subr.mxu0 0.0
      %1701 = vmatpush2.msra.mxu0 0.0
      %1702 = vmatprep.mubr.f32.mxu0 0.0
      %1703 = vmatmul.mubr.f32.gmra.mxu0 %v1636
      %v1704 = vpop.f32.mrf.mxu0
      %v1705 = vadd.f32 0.0, %v1704
      %v1706 = vpop.f32.mrf.mxu0
      %1707 = vdwg.mxu0
      %v1712 = vrot.slane %v1486, 4
      %v1713 = vrot.slane %v1559, 4
      %v1714 = vrot.slane %v1632, 4
      %v1715 = vrot.slane %v1705, 4
      %1716 = vrot.lane.b32.xlu0 %v1712, 112
      %v1717 = vpop.permute.xlu0 %1716
      %1718 = vrot.lane.b32.xlu0 %v1713, 112
      %v1719 = vpop.permute.xlu0 %1718
      %1720 = vrot.lane.b32.xlu0 %v1714, 112
      %v1721 = vpop.permute.xlu0 %1720
      %1722 = vrot.lane.b32.xlu0 %v1715, 112
      %v1723 = vpop.permute.xlu0 %1722
      %vm1728 = vcmask 1043456
      %v1729 = vsel %vm1728, %v1486, %v1717
      %v1730 = vsel %vm1728, %v1559, %v1719
      %v1731 = vsel %vm1728, %v1632, %v1721
      %v1732 = vsel %vm1728, %v1705, %v1723
      %v1733 = vld [vmem:[%s3] sm:$0xff]
      %v1734 = vld [vmem:[%s3 + $0x8] sm:$0xff]
      %v1736 = vsel %vm1415, %v1733, 0
      %v1739 = vsel %vm1415, %v1734, 0
      %1741 = vmatprep.subr.mxu0 0.0
      %1742 = vmatpush1.msra.mxu0 0.0
      %1743 = vmatprep.subr.mxu0 0.0
      %1744 = vmatpush1.msra.mxu0 0.0
      %1745 = vmatprep.subr.mxu0 0.0
      %1746 = vmatpush1.msra.mxu0 0.0
      %1747 = vmatprep.subr.mxu0 0.0
      %1748 = vmatpush1.msra.mxu0 0.0
      %1749 = vmatprep.subr.mxu0 0.0
      %1750 = vmatpush1.msra.mxu0 0.0
      %1751 = vmatprep.subr.mxu0 0.0
      %1752 = vmatpush1.msra.mxu0 0.0
      %1753 = vmatprep.subr.mxu0 0.0
      %1754 = vmatpush1.msra.mxu0 0.0
      %1755 = vmatprep.subr.mxu0 0.0
      %1756 = vmatpush1.msra.mxu0 0.0
      %1757 = vmatprep.subr.mxu0 0.0
      %1758 = vmatpush1.msra.mxu0 0.0
      %1759 = vmatprep.subr.mxu0 0.0
      %1760 = vmatpush1.msra.mxu0 0.0
      %1761 = vmatprep.subr.mxu0 0.0
      %1762 = vmatpush1.msra.mxu0 0.0
      %1763 = vmatprep.subr.mxu0 0.0
      %1764 = vmatpush1.msra.mxu0 0.0
      %1765 = vmatprep.subr.mxu0 0.0
      %1766 = vmatpush1.msra.mxu0 0.0
      %1767 = vmatprep.subr.mxu0 0.0
      %1768 = vmatpush1.msra.mxu0 0.0
      %1769 = vmatprep.subr.mxu0 0.0
      %1770 = vmatpush1.msra.mxu0 0.0
      %1771 = vmatprep.subr.mxu0 0.0
      %1772 = vmatpush1.msra.mxu0 %v1729
      %1773 = vmatprep.subr.mxu0 0.0
      %1774 = vmatpush2.msra.mxu0 0.0
      %1775 = vmatprep.subr.mxu0 0.0
      %1776 = vmatpush2.msra.mxu0 0.0
      %1777 = vmatprep.subr.mxu0 0.0
      %1778 = vmatpush2.msra.mxu0 0.0
      %1779 = vmatprep.subr.mxu0 0.0
      %1780 = vmatpush2.msra.mxu0 0.0
      %1781 = vmatprep.subr.mxu0 0.0
      %1782 = vmatpush2.msra.mxu0 0.0
      %1783 = vmatprep.subr.mxu0 0.0
      %1784 = vmatpush2.msra.mxu0 0.0
      %1785 = vmatprep.subr.mxu0 0.0
      %1786 = vmatpush2.msra.mxu0 0.0
      %1787 = vmatprep.subr.mxu0 0.0
      %1788 = vmatpush2.msra.mxu0 0.0
      %1789 = vmatprep.subr.mxu0 0.0
      %1790 = vmatpush2.msra.mxu0 0.0
      %1791 = vmatprep.subr.mxu0 0.0
      %1792 = vmatpush2.msra.mxu0 0.0
      %1793 = vmatprep.subr.mxu0 0.0
      %1794 = vmatpush2.msra.mxu0 0.0
      %1795 = vmatprep.subr.mxu0 0.0
      %1796 = vmatpush2.msra.mxu0 0.0
      %1797 = vmatprep.subr.mxu0 0.0
      %1798 = vmatpush2.msra.mxu0 0.0
      %1799 = vmatprep.subr.mxu0 0.0
      %1800 = vmatpush2.msra.mxu0 0.0
      %1801 = vmatprep.subr.mxu0 0.0
      %1802 = vmatpush2.msra.mxu0 0.0
      %1803 = vmatprep.subr.mxu0 0.0
      %1804 = vmatpush2.msra.mxu0 0.0
      %1805 = vmatprep.mubr.f32.mxu0 0.0
      %1806 = vmatmul.mubr.f32.gmra.mxu0 %v1736
      %v1807 = vpop.f32.mrf.mxu0
      %v1808 = vadd.f32 0.0, %v1807
      %v1809 = vpop.f32.mrf.mxu0
      %1810 = vmatprep.mubr.f32.mxu0 0.0
      %1811 = vmatmul.mubr.f32.gmra.mxu0 %v1739
      %v1812 = vpop.f32.mrf.mxu0
      %v1813 = vadd.f32 0.0, %v1812
      %v1814 = vpop.f32.mrf.mxu0
      %1815 = vdwg.mxu0
      %1816 = vmatprep.subr.mxu0 0.0
      %1817 = vmatpush1.msra.mxu0 0.0
      %1818 = vmatprep.subr.mxu0 0.0
      %1819 = vmatpush1.msra.mxu0 0.0
      %1820 = vmatprep.subr.mxu0 0.0
      %1821 = vmatpush1.msra.mxu0 0.0
      %1822 = vmatprep.subr.mxu0 0.0
      %1823 = vmatpush1.msra.mxu0 0.0
      %1824 = vmatprep.subr.mxu0 0.0
      %1825 = vmatpush1.msra.mxu0 0.0
      %1826 = vmatprep.subr.mxu0 0.0
      %1827 = vmatpush1.msra.mxu0 0.0
      %1828 = vmatprep.subr.mxu0 0.0
      %1829 = vmatpush1.msra.mxu0 0.0
      %1830 = vmatprep.subr.mxu0 0.0
      %1831 = vmatpush1.msra.mxu0 0.0
      %1832 = vmatprep.subr.mxu0 0.0
      %1833 = vmatpush1.msra.mxu0 0.0
      %1834 = vmatprep.subr.mxu0 0.0
      %1835 = vmatpush1.msra.mxu0 0.0
      %1836 = vmatprep.subr.mxu0 0.0
      %1837 = vmatpush1.msra.mxu0 0.0
      %1838 = vmatprep.subr.mxu0 0.0
      %1839 = vmatpush1.msra.mxu0 0.0
      %1840 = vmatprep.subr.mxu0 0.0
      %1841 = vmatpush1.msra.mxu0 0.0
      %1842 = vmatprep.subr.mxu0 0.0
      %1843 = vmatpush1.msra.mxu0 0.0
      %1844 = vmatprep.subr.mxu0 0.0
      %1845 = vmatpush1.msra.mxu0 0.0
      %1846 = vmatprep.subr.mxu0 0.0
      %1847 = vmatpush1.msra.mxu0 %v1730
      %1848 = vmatprep.subr.mxu0 0.0
      %1849 = vmatpush2.msra.mxu0 0.0
      %1850 = vmatprep.subr.mxu0 0.0
      %1851 = vmatpush2.msra.mxu0 0.0
      %1852 = vmatprep.subr.mxu0 0.0
      %1853 = vmatpush2.msra.mxu0 0.0
      %1854 = vmatprep.subr.mxu0 0.0
      %1855 = vmatpush2.msra.mxu0 0.0
      %1856 = vmatprep.subr.mxu0 0.0
      %1857 = vmatpush2.msra.mxu0 0.0
      %1858 = vmatprep.subr.mxu0 0.0
      %1859 = vmatpush2.msra.mxu0 0.0
      %1860 = vmatprep.subr.mxu0 0.0
      %1861 = vmatpush2.msra.mxu0 0.0
      %1862 = vmatprep.subr.mxu0 0.0
      %1863 = vmatpush2.msra.mxu0 0.0
      %1864 = vmatprep.subr.mxu0 0.0
      %1865 = vmatpush2.msra.mxu0 0.0
      %1866 = vmatprep.subr.mxu0 0.0
      %1867 = vmatpush2.msra.mxu0 0.0
      %1868 = vmatprep.subr.mxu0 0.0
      %1869 = vmatpush2.msra.mxu0 0.0
      %1870 = vmatprep.subr.mxu0 0.0
      %1871 = vmatpush2.msra.mxu0 0.0
      %1872 = vmatprep.subr.mxu0 0.0
      %1873 = vmatpush2.msra.mxu0 0.0
      %1874 = vmatprep.subr.mxu0 0.0
      %1875 = vmatpush2.msra.mxu0 0.0
      %1876 = vmatprep.subr.mxu0 0.0
      %1877 = vmatpush2.msra.mxu0 0.0
      %1878 = vmatprep.subr.mxu0 0.0
      %1879 = vmatpush2.msra.mxu0 0.0
      %1880 = vmatprep.mubr.f32.mxu0 0.0
      %1881 = vmatmul.mubr.f32.gmra.mxu0 %v1736
      %v1882 = vpop.f32.mrf.mxu0
      %v1883 = vadd.f32 0.0, %v1882
      %v1884 = vpop.f32.mrf.mxu0
      %1885 = vmatprep.mubr.f32.mxu0 0.0
      %1886 = vmatmul.mubr.f32.gmra.mxu0 %v1739
      %v1887 = vpop.f32.mrf.mxu0
      %v1888 = vadd.f32 0.0, %v1887
      %v1889 = vpop.f32.mrf.mxu0
      %1890 = vdwg.mxu0
      %1891 = vmatprep.subr.mxu0 0.0
      %1892 = vmatpush1.msra.mxu0 0.0
      %1893 = vmatprep.subr.mxu0 0.0
      %1894 = vmatpush1.msra.mxu0 0.0
      %1895 = vmatprep.subr.mxu0 0.0
      %1896 = vmatpush1.msra.mxu0 0.0
      %1897 = vmatprep.subr.mxu0 0.0
      %1898 = vmatpush1.msra.mxu0 0.0
      %1899 = vmatprep.subr.mxu0 0.0
      %1900 = vmatpush1.msra.mxu0 0.0
      %1901 = vmatprep.subr.mxu0 0.0
      %1902 = vmatpush1.msra.mxu0 0.0
      %1903 = vmatprep.subr.mxu0 0.0
      %1904 = vmatpush1.msra.mxu0 0.0
      %1905 = vmatprep.subr.mxu0 0.0
      %1906 = vmatpush1.msra.mxu0 0.0
      %1907 = vmatprep.subr.mxu0 0.0
      %1908 = vmatpush1.msra.mxu0 0.0
      %1909 = vmatprep.subr.mxu0 0.0
      %1910 = vmatpush1.msra.mxu0 0.0
      %1911 = vmatprep.subr.mxu0 0.0
      %1912 = vmatpush1.msra.mxu0 0.0
      %1913 = vmatprep.subr.mxu0 0.0
      %1914 = vmatpush1.msra.mxu0 0.0
      %1915 = vmatprep.subr.mxu0 0.0
      %1916 = vmatpush1.msra.mxu0 0.0
      %1917 = vmatprep.subr.mxu0 0.0
      %1918 = vmatpush1.msra.mxu0 0.0
      %1919 = vmatprep.subr.mxu0 0.0
      %1920 = vmatpush1.msra.mxu0 0.0
      %1921 = vmatprep.subr.mxu0 0.0
      %1922 = vmatpush1.msra.mxu0 %v1731
      %1923 = vmatprep.subr.mxu0 0.0
      %1924 = vmatpush2.msra.mxu0 0.0
      %1925 = vmatprep.subr.mxu0 0.0
      %1926 = vmatpush2.msra.mxu0 0.0
      %1927 = vmatprep.subr.mxu0 0.0
      %1928 = vmatpush2.msra.mxu0 0.0
      %1929 = vmatprep.subr.mxu0 0.0
      %1930 = vmatpush2.msra.mxu0 0.0
      %1931 = vmatprep.subr.mxu0 0.0
      %1932 = vmatpush2.msra.mxu0 0.0
      %1933 = vmatprep.subr.mxu0 0.0
      %1934 = vmatpush2.msra.mxu0 0.0
      %1935 = vmatprep.subr.mxu0 0.0
      %1936 = vmatpush2.msra.mxu0 0.0
      %1937 = vmatprep.subr.mxu0 0.0
      %1938 = vmatpush2.msra.mxu0 0.0
      %1939 = vmatprep.subr.mxu0 0.0
      %1940 = vmatpush2.msra.mxu0 0.0
      %1941 = vmatprep.subr.mxu0 0.0
      %1942 = vmatpush2.msra.mxu0 0.0
      %1943 = vmatprep.subr.mxu0 0.0
      %1944 = vmatpush2.msra.mxu0 0.0
      %1945 = vmatprep.subr.mxu0 0.0
      %1946 = vmatpush2.msra.mxu0 0.0
      %1947 = vmatprep.subr.mxu0 0.0
      %1948 = vmatpush2.msra.mxu0 0.0
      %1949 = vmatprep.subr.mxu0 0.0
      %1950 = vmatpush2.msra.mxu0 0.0
      %1951 = vmatprep.subr.mxu0 0.0
      %1952 = vmatpush2.msra.mxu0 0.0
      %1953 = vmatprep.subr.mxu0 0.0
      %1954 = vmatpush2.msra.mxu0 0.0
      %1955 = vmatprep.mubr.f32.mxu0 0.0
      %1956 = vmatmul.mubr.f32.gmra.mxu0 %v1736
      %v1957 = vpop.f32.mrf.mxu0
      %v1958 = vadd.f32 0.0, %v1957
      %v1959 = vpop.f32.mrf.mxu0
      %1960 = vmatprep.mubr.f32.mxu0 0.0
      %1961 = vmatmul.mubr.f32.gmra.mxu0 %v1739
      %v1962 = vpop.f32.mrf.mxu0
      %v1963 = vadd.f32 0.0, %v1962
      %v1964 = vpop.f32.mrf.mxu0
      %1965 = vdwg.mxu0
      %1966 = vmatprep.subr.mxu0 0.0
      %1967 = vmatpush1.msra.mxu0 0.0
      %1968 = vmatprep.subr.mxu0 0.0
      %1969 = vmatpush1.msra.mxu0 0.0
      %1970 = vmatprep.subr.mxu0 0.0
      %1971 = vmatpush1.msra.mxu0 0.0
      %1972 = vmatprep.subr.mxu0 0.0
      %1973 = vmatpush1.msra.mxu0 0.0
      %1974 = vmatprep.subr.mxu0 0.0
      %1975 = vmatpush1.msra.mxu0 0.0
      %1976 = vmatprep.subr.mxu0 0.0
      %1977 = vmatpush1.msra.mxu0 0.0
      %1978 = vmatprep.subr.mxu0 0.0
      %1979 = vmatpush1.msra.mxu0 0.0
      %1980 = vmatprep.subr.mxu0 0.0
      %1981 = vmatpush1.msra.mxu0 0.0
      %1982 = vmatprep.subr.mxu0 0.0
      %1983 = vmatpush1.msra.mxu0 0.0
      %1984 = vmatprep.subr.mxu0 0.0
      %1985 = vmatpush1.msra.mxu0 0.0
      %1986 = vmatprep.subr.mxu0 0.0
      %1987 = vmatpush1.msra.mxu0 0.0
      %1988 = vmatprep.subr.mxu0 0.0
      %1989 = vmatpush1.msra.mxu0 0.0
      %1990 = vmatprep.subr.mxu0 0.0
      %1991 = vmatpush1.msra.mxu0 0.0
      %1992 = vmatprep.subr.mxu0 0.0
      %1993 = vmatpush1.msra.mxu0 0.0
      %1994 = vmatprep.subr.mxu0 0.0
      %1995 = vmatpush1.msra.mxu0 0.0
      %1996 = vmatprep.subr.mxu0 0.0
      %1997 = vmatpush1.msra.mxu0 %v1732
      %1998 = vmatprep.subr.mxu0 0.0
      %1999 = vmatpush2.msra.mxu0 0.0
      %2000 = vmatprep.subr.mxu0 0.0
      %2001 = vmatpush2.msra.mxu0 0.0
      %2002 = vmatprep.subr.mxu0 0.0
      %2003 = vmatpush2.msra.mxu0 0.0
      %2004 = vmatprep.subr.mxu0 0.0
      %2005 = vmatpush2.msra.mxu0 0.0
      %2006 = vmatprep.subr.mxu0 0.0
      %2007 = vmatpush2.msra.mxu0 0.0
      %2008 = vmatprep.subr.mxu0 0.0
      %2009 = vmatpush2.msra.mxu0 0.0
      %2010 = vmatprep.subr.mxu0 0.0
      %2011 = vmatpush2.msra.mxu0 0.0
      %2012 = vmatprep.subr.mxu0 0.0
      %2013 = vmatpush2.msra.mxu0 0.0
      %2014 = vmatprep.subr.mxu0 0.0
      %2015 = vmatpush2.msra.mxu0 0.0
      %2016 = vmatprep.subr.mxu0 0.0
      %2017 = vmatpush2.msra.mxu0 0.0
      %2018 = vmatprep.subr.mxu0 0.0
      %2019 = vmatpush2.msra.mxu0 0.0
      %2020 = vmatprep.subr.mxu0 0.0
      %2021 = vmatpush2.msra.mxu0 0.0
      %2022 = vmatprep.subr.mxu0 0.0
      %2023 = vmatpush2.msra.mxu0 0.0
      %2024 = vmatprep.subr.mxu0 0.0
      %2025 = vmatpush2.msra.mxu0 0.0
      %2026 = vmatprep.subr.mxu0 0.0
      %2027 = vmatpush2.msra.mxu0 0.0
      %2028 = vmatprep.subr.mxu0 0.0
      %2029 = vmatpush2.msra.mxu0 0.0
      %2030 = vmatprep.mubr.f32.mxu0 0.0
      %2031 = vmatmul.mubr.f32.gmra.mxu0 %v1736
      %v2032 = vpop.f32.mrf.mxu0
      %v2033 = vadd.f32 0.0, %v2032
      %v2034 = vpop.f32.mrf.mxu0
      %2035 = vmatprep.mubr.f32.mxu0 0.0
      %2036 = vmatmul.mubr.f32.gmra.mxu0 %v1739
      %v2037 = vpop.f32.mrf.mxu0
      %v2038 = vadd.f32 0.0, %v2037
      %v2039 = vpop.f32.mrf.mxu0
      %2040 = vdwg.mxu0
      %v2041 = vmul.f32 %v1808, 0.00390625
      %v2042 = vmul.f32 %v1813, 0.00390625
      %v2043 = vmul.f32 %v1883, 0.00390625
      %v2044 = vmul.f32 %v1888, 0.00390625
      %v2045 = vmul.f32 %v1958, 0.00390625
      %v2046 = vmul.f32 %v1963, 0.00390625
      %v2047 = vmul.f32 %v2033, 0.00390625
      %v2048 = vmul.f32 %v2038, 0.00390625
      %v2049 = vcombine.low %v2041, %v2045
      %v2050 = vcombine.high %v2041, %v2045
      %v2052 = vunpack.c.l.s4 1983009808
      %v2053 = vunpack.c.0.s8 %v2052
      %v2054 = vlaneseq
      %v2055 = vshrl.u32 %v2054, 7
      %v2056 = vsub.s32 %v2053, %v2055
      %v2057 = vrot.slane %v2049, %v2056
      %v2059 = vunpack.c.l.s4 1983009808
      %v2060 = vunpack.c.0.s8 %v2059
      %v2061 = vlaneseq
      %v2062 = vshrl.u32 %v2061, 7
      %v2063 = vsub.s32 %v2060, %v2062
      %v2064 = vrot.slane %v2050, %v2063
      %v2065 = vcombine.low %v2043, %v2047
      %v2066 = vcombine.high %v2043, %v2047
      %v2068 = vunpack.c.l.s4 1983009808
      %v2069 = vunpack.c.0.s8 %v2068
      %v2070 = vlaneseq
      %v2071 = vshrl.u32 %v2070, 7
      %v2072 = vsub.s32 %v2069, %v2071
      %v2073 = vrot.slane %v2065, %v2072
      %v2075 = vunpack.c.l.s4 1983009808
      %v2076 = vunpack.c.0.s8 %v2075
      %v2077 = vlaneseq
      %v2078 = vshrl.u32 %v2077, 7
      %v2079 = vsub.s32 %v2076, %v2078
      %v2080 = vrot.slane %v2066, %v2079
      %v2081 = vcombine.low %v2057, %v2073
      %v2082 = vcombine.high %v2057, %v2073
      %v2084 = vunpack.c.l.s4 1934713408
      %v2085 = vunpack.c.0.s8 %v2084
      %v2086 = vlaneseq
      %v2087 = vshrl.u32 %v2086, 7
      %v2088 = vsub.s32 %v2085, %v2087
      %v2089 = vrot.slane %v2081, %v2088
      %v2091 = vunpack.c.l.s4 1934713408
      %v2092 = vunpack.c.0.s8 %v2091
      %v2093 = vlaneseq
      %v2094 = vshrl.u32 %v2093, 7
      %v2095 = vsub.s32 %v2092, %v2094
      %v2096 = vrot.slane %v2082, %v2095
      %v2097 = vcombine.low %v2064, %v2080
      %v2098 = vcombine.high %v2064, %v2080
      %v2100 = vunpack.c.l.s4 1934713408
      %v2101 = vunpack.c.0.s8 %v2100
      %v2102 = vlaneseq
      %v2103 = vshrl.u32 %v2102, 7
      %v2104 = vsub.s32 %v2101, %v2103
      %v2105 = vrot.slane %v2097, %v2104
      %v2107 = vunpack.c.l.s4 1934713408
      %v2108 = vunpack.c.0.s8 %v2107
      %v2109 = vlaneseq
      %v2110 = vshrl.u32 %v2109, 7
      %v2111 = vsub.s32 %v2108, %v2110
      %v2112 = vrot.slane %v2098, %v2111
      %v2113 = vcombine.high %v2089, 0.0
      %v2114 = vcombine.high %v2096, 0.0
      %v2115 = vcombine.high %v2105, 0.0
      %v2116 = vcombine.high %v2112, 0.0
      %v2117 = vcombine.low %v2042, %v2046
      %v2118 = vcombine.high %v2042, %v2046
      %v2120 = vunpack.c.l.s4 1983009808
      %v2121 = vunpack.c.0.s8 %v2120
      %v2122 = vlaneseq
      %v2123 = vshrl.u32 %v2122, 7
      %v2124 = vsub.s32 %v2121, %v2123
      %v2125 = vrot.slane %v2117, %v2124
      %v2127 = vunpack.c.l.s4 1983009808
      %v2128 = vunpack.c.0.s8 %v2127
      %v2129 = vlaneseq
      %v2130 = vshrl.u32 %v2129, 7
      %v2131 = vsub.s32 %v2128, %v2130
      %v2132 = vrot.slane %v2118, %v2131
      %v2133 = vcombine.low %v2044, %v2048
      %v2134 = vcombine.high %v2044, %v2048
      %v2136 = vunpack.c.l.s4 1983009808
      %v2137 = vunpack.c.0.s8 %v2136
      %v2138 = vlaneseq
      %v2139 = vshrl.u32 %v2138, 7
      %v2140 = vsub.s32 %v2137, %v2139
      %v2141 = vrot.slane %v2133, %v2140
      %v2143 = vunpack.c.l.s4 1983009808
      %v2144 = vunpack.c.0.s8 %v2143
      %v2145 = vlaneseq
      %v2146 = vshrl.u32 %v2145, 7
      %v2147 = vsub.s32 %v2144, %v2146
      %v2148 = vrot.slane %v2134, %v2147
      %v2149 = vcombine.low %v2125, %v2141
      %v2150 = vcombine.high %v2125, %v2141
      %v2152 = vunpack.c.l.s4 1934713408
      %v2153 = vunpack.c.0.s8 %v2152
      %v2154 = vlaneseq
      %v2155 = vshrl.u32 %v2154, 7
      %v2156 = vsub.s32 %v2153, %v2155
      %v2157 = vrot.slane %v2149, %v2156
      %v2159 = vunpack.c.l.s4 1934713408
      %v2160 = vunpack.c.0.s8 %v2159
      %v2161 = vlaneseq
      %v2162 = vshrl.u32 %v2161, 7
      %v2163 = vsub.s32 %v2160, %v2162
      %v2164 = vrot.slane %v2150, %v2163
      %v2165 = vcombine.low %v2132, %v2148
      %v2166 = vcombine.high %v2132, %v2148
      %v2168 = vunpack.c.l.s4 1934713408
      %v2169 = vunpack.c.0.s8 %v2168
      %v2170 = vlaneseq
      %v2171 = vshrl.u32 %v2170, 7
      %v2172 = vsub.s32 %v2169, %v2171
      %v2173 = vrot.slane %v2165, %v2172
      %v2175 = vunpack.c.l.s4 1934713408
      %v2176 = vunpack.c.0.s8 %v2175
      %v2177 = vlaneseq
      %v2178 = vshrl.u32 %v2177, 7
      %v2179 = vsub.s32 %v2176, %v2178
      %v2180 = vrot.slane %v2166, %v2179
      %v2181 = vcombine.high %v2157, 0.0
      %v2182 = vcombine.high %v2164, 0.0
      %v2183 = vcombine.high %v2173, 0.0
      %v2184 = vcombine.high %v2180, 0.0
      %2186 = vrot.lane.b32.xlu0 %v2113, 16
      %v2187 = vpop.permute.xlu0 %2186
      %2190 = vrot.lane.b32.xlu0 %v2096, 32
      %v2191 = vpop.permute.xlu0 %2190
      %2194 = vrot.lane.b32.xlu0 %v2114, 48
      %v2195 = vpop.permute.xlu0 %2194
      %2198 = vrot.lane.b32.xlu0 %v2105, 64
      %v2199 = vpop.permute.xlu0 %2198
      %2202 = vrot.lane.b32.xlu0 %v2115, 80
      %v2203 = vpop.permute.xlu0 %2202
      %2206 = vrot.lane.b32.xlu0 %v2112, 96
      %v2207 = vpop.permute.xlu0 %2206
      %2210 = vrot.lane.b32.xlu0 %v2116, 112
      %v2211 = vpop.permute.xlu0 %2210
      %2214 = vrot.lane.b32.xlu0 %v2181, 16
      %v2215 = vpop.permute.xlu0 %2214
      %2218 = vrot.lane.b32.xlu0 %v2164, 32
      %v2219 = vpop.permute.xlu0 %2218
      %2222 = vrot.lane.b32.xlu0 %v2182, 48
      %v2223 = vpop.permute.xlu0 %2222
      %2226 = vrot.lane.b32.xlu0 %v2173, 64
      %v2227 = vpop.permute.xlu0 %2226
      %2230 = vrot.lane.b32.xlu0 %v2183, 80
      %v2231 = vpop.permute.xlu0 %2230
      %2234 = vrot.lane.b32.xlu0 %v2180, 96
      %v2235 = vpop.permute.xlu0 %2234
      %2238 = vrot.lane.b32.xlu0 %v2184, 112
      %v2239 = vpop.permute.xlu0 %2238
      %v2241 = vsel %vm498, %v2089, %v2187
      %vm2242 = vcmask 261120
      %v2243 = vsel %vm2242, %v2241, %v2191
      %vm2244 = vcmask 392192
      %v2245 = vsel %vm2244, %v2243, %v2195
      %vm2246 = vcmask 523264
      %v2247 = vsel %vm2246, %v2245, %v2199
      %vm2248 = vcmask 654336
      %v2249 = vsel %vm2248, %v2247, %v2203
      %vm2250 = vcmask 785408
      %v2251 = vsel %vm2250, %v2249, %v2207
      %vm2252 = vcmask 916480
      %v2253 = vsel %vm2252, %v2251, %v2211
      %v2254 = vsel %vm498, %v2157, %v2215
      %v2255 = vsel %vm2242, %v2254, %v2219
      %v2256 = vsel %vm2244, %v2255, %v2223
      %v2257 = vsel %vm2246, %v2256, %v2227
      %v2258 = vsel %vm2248, %v2257, %v2231
      %v2259 = vsel %vm2250, %v2258, %v2235
      %v2260 = vsel %vm2252, %v2259, %v2239
      %v2261 = vld [vmem:[%s8] sm:$0xf]
      %v2262 = vld [vmem:[%s9] sm:$0xf]
      %2264 = vset.pattern.permute.xlu0 0
      %2265 = vperm.xlu0 %2264, %v2262
      %v2266 = vpop.permute.xlu0 %2265
      %v2269 = vsel %vm1409, %v2261, 0
      %v2272 = vsel %vm1728, %v2253, 0
      %v2275 = vsel %vm1728, %v2260, 0
      %2277 = vmatprep.subr.mxu0 0.0
      %2278 = vmatpush1.msra.mxu0 0.0
      %2279 = vmatprep.subr.mxu0 0.0
      %2280 = vmatpush1.msra.mxu0 0.0
      %2281 = vmatprep.subr.mxu0 0.0
      %2282 = vmatpush1.msra.mxu0 0.0
      %2283 = vmatprep.subr.mxu0 0.0
      %2284 = vmatpush1.msra.mxu0 0.0
      %2285 = vmatprep.subr.mxu0 0.0
      %2286 = vmatpush1.msra.mxu0 0.0
      %2287 = vmatprep.subr.mxu0 0.0
      %2288 = vmatpush1.msra.mxu0 0.0
      %2289 = vmatprep.subr.mxu0 0.0
      %2290 = vmatpush1.msra.mxu0 0.0
      %2291 = vmatprep.subr.mxu0 0.0
      %2292 = vmatpush1.msra.mxu0 0.0
      %2293 = vmatprep.subr.mxu0 0.0
      %2294 = vmatpush1.msra.mxu0 0.0
      %2295 = vmatprep.subr.mxu0 0.0
      %2296 = vmatpush1.msra.mxu0 0.0
      %2297 = vmatprep.subr.mxu0 0.0
      %2298 = vmatpush1.msra.mxu0 0.0
      %2299 = vmatprep.subr.mxu0 0.0
      %2300 = vmatpush1.msra.mxu0 0.0
      %2301 = vmatprep.subr.mxu0 0.0
      %2302 = vmatpush1.msra.mxu0 0.0
      %2303 = vmatprep.subr.mxu0 0.0
      %2304 = vmatpush1.msra.mxu0 0.0
      %2305 = vmatprep.subr.mxu0 0.0
      %2306 = vmatpush1.msra.mxu0 0.0
      %2307 = vmatprep.subr.mxu0 %v2275
      %2308 = vmatpush1.msra.mxu0 %v2272
      %2309 = vmatprep.subr.mxu0 0.0
      %2310 = vmatpush2.msra.mxu0 0.0
      %2311 = vmatprep.subr.mxu0 0.0
      %2312 = vmatpush2.msra.mxu0 0.0
      %2313 = vmatprep.subr.mxu0 0.0
      %2314 = vmatpush2.msra.mxu0 0.0
      %2315 = vmatprep.subr.mxu0 0.0
      %2316 = vmatpush2.msra.mxu0 0.0
      %2317 = vmatprep.subr.mxu0 0.0
      %2318 = vmatpush2.msra.mxu0 0.0
      %2319 = vmatprep.subr.mxu0 0.0
      %2320 = vmatpush2.msra.mxu0 0.0
      %2321 = vmatprep.subr.mxu0 0.0
      %2322 = vmatpush2.msra.mxu0 0.0
      %2323 = vmatprep.subr.mxu0 0.0
      %2324 = vmatpush2.msra.mxu0 0.0
      %2325 = vmatprep.subr.mxu0 0.0
      %2326 = vmatpush2.msra.mxu0 0.0
      %2327 = vmatprep.subr.mxu0 0.0
      %2328 = vmatpush2.msra.mxu0 0.0
      %2329 = vmatprep.subr.mxu0 0.0
      %2330 = vmatpush2.msra.mxu0 0.0
      %2331 = vmatprep.subr.mxu0 0.0
      %2332 = vmatpush2.msra.mxu0 0.0
      %2333 = vmatprep.subr.mxu0 0.0
      %2334 = vmatpush2.msra.mxu0 0.0
      %2335 = vmatprep.subr.mxu0 0.0
      %2336 = vmatpush2.msra.mxu0 0.0
      %2337 = vmatprep.subr.mxu0 0.0
      %2338 = vmatpush2.msra.mxu0 0.0
      %2339 = vmatprep.subr.mxu0 0.0
      %2340 = vmatpush2.msra.mxu0 0.0
      %2341 = vmatprep.mubr.f32.mxu0 0.0
      %2342 = vmatmul.mubr.f32.gmra.mxu0 %v2269
      %v2343 = vpop.f32.mrf.mxu0
      %v2344 = vadd.f32 %v2266, %v2343
      %v2345 = vpop.f32.mrf.mxu0
      %v2346 = vadd.f32 %v2266, %v2345
      %2347 = vdwg.mxu0
      %v2348 = vsel %vm1728, %v2344, 0.0
      %v2349 = vrot.slane %v2348, 4
      %v2350 = vadd.f32 %v2348, %v2349
      %v2351 = vrot.slane %v2350, 2
      %v2352 = vadd.f32 %v2350, %v2351
      %v2353 = vrot.slane %v2352, 1
      %v2354 = vadd.f32 %v2352, %v2353
      %v2355 = vsel %vm1728, %v2346, 0.0
      %v2356 = vrot.slane %v2355, 4
      %v2357 = vadd.f32 %v2355, %v2356
      %v2358 = vrot.slane %v2357, 2
      %v2359 = vadd.f32 %v2357, %v2358
      %v2360 = vrot.slane %v2359, 1
      %v2361 = vadd.f32 %v2359, %v2360
      %v2362 = vrcp.pop 4.0
      %v2363 = vmul.f32 %v2354, %v2362
      %v2364 = vmul.f32 %v2361, %v2362
      %v2365 = vsub.f32 %v2344, %v2363
      %v2366 = vsub.f32 %v2346, %v2364
      %v2367 = vmul.f32 %v2365, %v2365
      %v2368 = vmul.f32 %v2366, %v2366
      %v2369 = vsel %vm1728, %v2367, 0.0
      %v2370 = vrot.slane %v2369, 4
      %v2371 = vadd.f32 %v2369, %v2370
      %v2372 = vrot.slane %v2371, 2
      %v2373 = vadd.f32 %v2371, %v2372
      %v2374 = vrot.slane %v2373, 1
      %v2375 = vadd.f32 %v2373, %v2374
      %v2376 = vsel %vm1728, %v2368, 0.0
      %v2377 = vrot.slane %v2376, 4
      %v2378 = vadd.f32 %v2376, %v2377
      %v2379 = vrot.slane %v2378, 2
      %v2380 = vadd.f32 %v2378, %v2379
      %v2381 = vrot.slane %v2380, 1
      %v2382 = vadd.f32 %v2380, %v2381
      %v2383 = vmul.f32 %v2375, %v2362
      %v2384 = vmul.f32 %v2382, %v2362
      %v2385 = vadd.f32 %v2383, 1e-06
      %v2386 = vadd.f32 %v2384, 1e-06
      %v2387 = vrsqrt.pop %v2385
      %v2388 = vrsqrt.pop %v2386
      %v2389 = vmul.f32 %v2365, %v2387
      %v2390 = vmul.f32 %v2366, %v2388
      %v2391 = vld [vmem:[%s10] sm:$0xf]
      %2393 = vset.pattern.permute.xlu0 0
      %2394 = vperm.xlu0 %2393, %v2391
      %v2395 = vpop.permute.xlu0 %2394
      %v2397 = vmul.f32 %v2389, %v2395
      %v2398 = vmul.f32 %v2390, %v2395
      %v2399 = vld [vmem:[%s11] sm:$0xf]
      %2401 = vset.pattern.permute.xlu0 0
      %2402 = vperm.xlu0 %2401, %v2399
      %v2403 = vpop.permute.xlu0 %2402
      %v2405 = vadd.f32 %v2397, %v2403
      %v2406 = vadd.f32 %v2398, %v2403
      %v2407 = vmul.f32 %v2405, 0.5
      %v2408 = vmul.f32 %v2406, 0.5
      %v2409 = vmul.f32 %v2405, 0.044715
      %v2410 = vmul.f32 %v2406, 0.044715
      %v2411 = vmul.f32 %v2409, %v2405
      %v2412 = vmul.f32 %v2410, %v2406
      %v2413 = vmul.f32 %v2411, %v2405
      %v2414 = vmul.f32 %v2412, %v2406
      %v2415 = vadd.f32 %v2405, %v2413
      %v2416 = vadd.f32 %v2406, %v2414
      %v2417 = vmul.f32 %v2415, 0.7978846
      %v2418 = vmul.f32 %v2416, 0.7978846
      %v2419 = vtanh.pop %v2417
      %v2420 = vtanh.pop %v2418
      %v2421 = vadd.f32 %v2419, 1.0
      %v2422 = vadd.f32 %v2420, 1.0
      %v2423 = vmul.f32 %v2407, %v2421
      %v2424 = vmul.f32 %v2408, %v2422
      %v2425 = vld [vmem:[%s12] sm:$0xf]
      %v2426 = vld [vmem:[%s482] sm:$0xff]
      %v2427 = vld [vmem:[%s13] sm:$0xf]
      %2429 = vset.pattern.permute.xlu0 0
      %2430 = vperm.xlu0 %2429, %v2427
      %v2431 = vpop.permute.xlu0 %2430
      %v2434 = vcombine.high %v2426, %v2426
      %v2436 = vsel %vm1409, %v2425, 0
      %v2438 = vsel %vm1728, %v2426, 0
      %v2440 = vsel %vm1728, %v2434, 0
      %2442 = vmatprep.subr.mxu0 0.0
      %2443 = vmatpush1.msra.mxu0 0.0
      %2444 = vmatprep.subr.mxu0 0.0
      %2445 = vmatpush1.msra.mxu0 0.0
      %2446 = vmatprep.subr.mxu0 0.0
      %2447 = vmatpush1.msra.mxu0 0.0
      %2448 = vmatprep.subr.mxu0 0.0
      %2449 = vmatpush1.msra.mxu0 0.0
      %2450 = vmatprep.subr.mxu0 0.0
      %2451 = vmatpush1.msra.mxu0 0.0
      %2452 = vmatprep.subr.mxu0 0.0
      %2453 = vmatpush1.msra.mxu0 0.0
      %2454 = vmatprep.subr.mxu0 0.0
      %2455 = vmatpush1.msra.mxu0 0.0
      %2456 = vmatprep.subr.mxu0 0.0
      %2457 = vmatpush1.msra.mxu0 0.0
      %2458 = vmatprep.subr.mxu0 0.0
      %2459 = vmatpush1.msra.mxu0 0.0
      %2460 = vmatprep.subr.mxu0 0.0
      %2461 = vmatpush1.msra.mxu0 0.0
      %2462 = vmatprep.subr.mxu0 0.0
      %2463 = vmatpush1.msra.mxu0 0.0
      %2464 = vmatprep.subr.mxu0 0.0
      %2465 = vmatpush1.msra.mxu0 0.0
      %2466 = vmatprep.subr.mxu0 0.0
      %2467 = vmatpush1.msra.mxu0 0.0
      %2468 = vmatprep.subr.mxu0 0.0
      %2469 = vmatpush1.msra.mxu0 0.0
      %2470 = vmatprep.subr.mxu0 0.0
      %2471 = vmatpush1.msra.mxu0 0.0
      %2472 = vmatprep.subr.mxu0 %v2440
      %2473 = vmatpush1.msra.mxu0 %v2438
      %2474 = vmatprep.subr.mxu0 0.0
      %2475 = vmatpush2.msra.mxu0 0.0
      %2476 = vmatprep.subr.mxu0 0.0
      %2477 = vmatpush2.msra.mxu0 0.0
      %2478 = vmatprep.subr.mxu0 0.0
      %2479 = vmatpush2.msra.mxu0 0.0
      %2480 = vmatprep.subr.mxu0 0.0
      %2481 = vmatpush2.msra.mxu0 0.0
      %2482 = vmatprep.subr.mxu0 0.0
      %2483 = vmatpush2.msra.mxu0 0.0
      %2484 = vmatprep.subr.mxu0 0.0
      %2485 = vmatpush2.msra.mxu0 0.0
      %2486 = vmatprep.subr.mxu0 0.0
      %2487 = vmatpush2.msra.mxu0 0.0
      %2488 = vmatprep.subr.mxu0 0.0
      %2489 = vmatpush2.msra.mxu0 0.0
      %2490 = vmatprep.subr.mxu0 0.0
      %2491 = vmatpush2.msra.mxu0 0.0
      %2492 = vmatprep.subr.mxu0 0.0
      %2493 = vmatpush2.msra.mxu0 0.0
      %2494 = vmatprep.subr.mxu0 0.0
      %2495 = vmatpush2.msra.mxu0 0.0
      %2496 = vmatprep.subr.mxu0 0.0
      %2497 = vmatpush2.msra.mxu0 0.0
      %2498 = vmatprep.subr.mxu0 0.0
      %2499 = vmatpush2.msra.mxu0 0.0
      %2500 = vmatprep.subr.mxu0 0.0
      %2501 = vmatpush2.msra.mxu0 0.0
      %2502 = vmatprep.subr.mxu0 0.0
      %2503 = vmatpush2.msra.mxu0 0.0
      %2504 = vmatprep.subr.mxu0 0.0
      %2505 = vmatpush2.msra.mxu0 0.0
      %2506 = vmatprep.mubr.f32.mxu0 0.0
      %2507 = vmatmul.mubr.f32.gmra.mxu0 %v2436
      %v2508 = vpop.f32.mrf.mxu0
      %v2509 = vadd.f32 %v2431, %v2508
      %v2510 = vpop.f32.mrf.mxu0
      %v2511 = vadd.f32 %v2431, %v2510
      %2512 = vdwg.mxu0
      %v2513 = vadd.f32 %v2423, %v2509
      %v2514 = vadd.f32 %v2424, %v2511
      %v2515 = vmul.f32 %v2513, 0.5
      %v2516 = vmul.f32 %v2514, 0.5
      %v2517 = vmul.f32 %v2513, 0.044715
      %v2518 = vmul.f32 %v2514, 0.044715
      %v2519 = vmul.f32 %v2517, %v2513
      %v2520 = vmul.f32 %v2518, %v2514
      %v2521 = vmul.f32 %v2519, %v2513
      %v2522 = vmul.f32 %v2520, %v2514
      %v2523 = vadd.f32 %v2513, %v2521
      %v2524 = vadd.f32 %v2514, %v2522
      %v2525 = vmul.f32 %v2523, 0.7978846
      %v2526 = vmul.f32 %v2524, 0.7978846
      %v2527 = vtanh.pop %v2525
      %v2528 = vtanh.pop %v2526
      %v2529 = vadd.f32 %v2527, 1.0
      %v2530 = vadd.f32 %v2528, 1.0
      %v2531 = vmul.f32 %v2515, %v2529
      %v2532 = vmul.f32 %v2516, %v2530
      %v2535 = vcombine.low %v2531, %v2532
      %2537 = vst [vmem:[%s487] sm:$0xff] %v2535
      %p2538 = scmp.lt.s32.totalorder %s25, 1
      %s2539 = scalar_select %p2538, %s25, 1
      %s2540 = smul.addr %s2539, 2
      %s2541 = smul.addr %s2540, 4
      %s2542 = scalar_lea.vmem %s14, %s2541
      // Predicated region
      $region77: #{lit_block_forward.3} parent=75 // pred_check
        %p2543 = pneg %p347
      $region78: #{lit_block_forward.3} parent=75 // pred_check_branch
        %2545 = sbr.rel (%p2543) target = $region80
      $region79: #{lit_block_forward.3} parent=75 // pred_region
        _
      $region80: #{lit_block_forward.3} parent=75 // pred_fallthru
        _
    $region76: #{lit_block_forward.3} parent=5 // pred_fallthru
      _
    %p2546 = scmp.le.s32.totalorder 2, %s20
    // Predicated region
    $region81: #{lit_block_forward.3} parent=5 // pred_check
      %p2547 = pneg %p2546
    $region82: #{lit_block_forward.3} parent=5 // pred_check_branch
      %2549 = sbr.rel (%p2547) target = $region84
    $region83: #{lit_block_forward.3} parent=5 // pred_region
      %s2550 = ssub.s32 %s20, 2
      // Predicated region
      $region85: #{lit_block_forward.3} parent=83 // pred_check
        %p2551 = pneg %p353
      $region86: #{lit_block_forward.3} parent=83 // pred_check_branch
        %2553 = sbr.rel (%p2551) target = $region88
      $region87: #{lit_block_forward.3} parent=83 // pred_region
        %p2554 = scmp.lt.s32.totalorder %s26, 1
        %s2555 = scalar_select %p2554, %s26, 1
        %s2556 = smul.addr %s2555, 2
        %s2557 = smul.addr %s2556, 4
        %s2558 = scalar_lea.vmem %s14, %s2557
      $region88: #{lit_block_forward.3} parent=83 // pred_fallthru
        _
    $region84: #{lit_block_forward.3} parent=5 // pred_fallthru
      _
  $region6: #{lit_block_forward.3} parent=0 // loop_footer
    %s24 = sadd.s32 1, %s20
  $region7: #{lit_block_forward.3} parent=0 // loop_footer_branch
    %19 = sbr.rel target = $region3
  $region8: #{lit_block_forward.3} parent=0 // loop_exit
    _

</llo_original>
